<compile_context>
chip_gen: v6e
topology: v6e:2x2x1
jax: 0.10.0
libtpu: 0.0.40
codegen_flags: <defaults>
</compile_context>

<pallas_src>
import math

import jax
import jax.numpy as jnp
from jax.experimental import pallas as pl
from jax.experimental.pallas import tpu as pltpu

# ---- scaled-down BERT config -------------------------------------------------
VOCAB = 100
MAX_POS = 16
TYPE_VOCAB = 2
HIDDEN = 32
N_HEADS = 4
HEAD_DIM = HIDDEN // N_HEADS
INTERMEDIATE = 64
N_LAYERS = 2
LN_EPS = 1e-12


# ---- fused whole-model Pallas kernel ------------------------------------------
def _bert_kernel(emb_ref, mask_ref,
                 emb_ln_g_ref, emb_ln_b_ref,
                 qkv_w_ref, qkv_b_ref, ao_w_ref, ao_b_ref,
                 attn_ln_g_ref, attn_ln_b_ref,
                 ffn_w1_ref, ffn_b1_ref, ffn_w2_ref, ffn_b2_ref,
                 ffn_ln_g_ref, ffn_ln_b_ref,
                 pooler_w_ref, pooler_b_ref, fc_w_ref, fc_b_ref,
                 out_ref):
    B, S = mask_ref.shape
    scale = 1.0 / math.sqrt(HEAD_DIM)

    def ln(x, g, b):  # f32 LayerNorm over the last (lane) axis
        mean = jnp.mean(x, axis=-1, keepdims=True)
        xc = x - mean
        var = jnp.mean(xc * xc, axis=-1, keepdims=True)
        return xc * jax.lax.rsqrt(var + LN_EPS) * g + b

    def mm(a, w):  # bf16 MXU inputs, f32 accumulation
        return jnp.dot(a.astype(jnp.bfloat16), w.astype(jnp.bfloat16),
                       preferred_element_type=jnp.float32)

    def gelu(y):
        # TODO(synk): tanh-approx GELU; HF BERT uses erf-GELU (~1e-3 deviation).
        return 0.5 * y * (1.0 + jnp.tanh(0.7978845608028654 *
                                         (y + 0.044715 * y * y * y)))

    mask = mask_ref[...]                                    # (B, S) additive bias
    x = ln(emb_ref[...].astype(jnp.float32),
           emb_ln_g_ref[...], emb_ln_b_ref[...])            # (B*S, H)

    # Encoder layers, fully unrolled; x stays resident in VMEM / vregs.
    for l in range(N_LAYERS):
        qkv = mm(x, qkv_w_ref[l]) + qkv_b_ref[l]            # (B*S, 3H) fused QKV
        ctx_rows = []
        for b in range(B):
            r0 = b * S
            bias_b = mask[b:b + 1, :]                       # (1, S)
            heads = []
            for h in range(N_HEADS):
                c0 = h * HEAD_DIM
                q = qkv[r0:r0 + S, c0:c0 + HEAD_DIM]
                k = qkv[r0:r0 + S, HIDDEN + c0:HIDDEN + c0 + HEAD_DIM]
                v = qkv[r0:r0 + S, 2 * HIDDEN + c0:2 * HIDDEN + c0 + HEAD_DIM]
                s = jax.lax.dot_general(
                    q, k, (((1,), (1,)), ((), ())),
                    preferred_element_type=jnp.float32) * scale   # (S, S)
                s = s + bias_b
                s = s - jnp.max(s, axis=-1, keepdims=True)
                p = jnp.exp(s)
                p = p * pl.reciprocal(jnp.sum(p, axis=-1, keepdims=True),
                                      approx=False)
                heads.append(jnp.dot(p, v, preferred_element_type=jnp.float32))
            ctx_rows.append(jnp.concatenate(heads, axis=-1))      # (S, H)
        ctx = jnp.concatenate(ctx_rows, axis=0)                   # (B*S, H)

        attn_out = mm(ctx, ao_w_ref[l]) + ao_b_ref[l]
        x = ln(attn_out + x, attn_ln_g_ref[l], attn_ln_b_ref[l])
        h1 = gelu(mm(x, ffn_w1_ref[l]) + ffn_b1_ref[l])
        h2 = mm(h1, ffn_w2_ref[l]) + ffn_b2_ref[l]
        x = ln(h2 + x, ffn_ln_g_ref[l], ffn_ln_b_ref[l])

    # Pooler (dense+tanh on [CLS]) + dropout(eval)=identity + Linear(H,1)+sigmoid.
    cls = jnp.concatenate([x[b * S:b * S + 1, :] for b in range(B)], axis=0)  # (B, H)
    pooled = jnp.tanh(mm(cls, pooler_w_ref[...]) + pooler_b_ref[...])
    # N=1 classifier as a VPU lane reduction (avoids 32x1 MXU / masked stores).
    logit = jnp.sum(pooled * fc_w_ref[...], axis=-1, keepdims=True) + fc_b_ref[...]
    out_ref[...] = (1.0 / (1.0 + jnp.exp(-logit))).astype(out_ref.dtype)


# ---- deterministic synthetic parameters ---------------------------------------
def init_params(key):
    def nrm(k, shape, dtype=jnp.float32):
        return (0.02 * jax.random.normal(k, shape, dtype=jnp.float32)).astype(dtype)

    keys = iter(jax.random.split(key, 32))
    L, H, I = N_LAYERS, HIDDEN, INTERMEDIATE
    return {
        "word_emb": nrm(next(keys), (VOCAB, H)),
        "pos_emb": nrm(next(keys), (MAX_POS, H)),
        "type_emb": nrm(next(keys), (TYPE_VOCAB, H)),
        "emb_ln_g": jnp.ones((1, H), jnp.float32),
        "emb_ln_b": jnp.zeros((1, H), jnp.float32),
        # Per-layer weights stacked on a leading layer axis; MXU weights in bf16.
        "qkv_w": nrm(next(keys), (L, H, 3 * H), jnp.bfloat16),   # fused Q|K|V
        "qkv_b": jnp.zeros((L, 1, 3 * H), jnp.float32),
        "ao_w": nrm(next(keys), (L, H, H), jnp.bfloat16),
        "ao_b": jnp.zeros((L, 1, H), jnp.float32),
        "attn_ln_g": jnp.ones((L, 1, H), jnp.float32),
        "attn_ln_b": jnp.zeros((L, 1, H), jnp.float32),
        "ffn_w1": nrm(next(keys), (L, H, I), jnp.bfloat16),
        "ffn_b1": jnp.zeros((L, 1, I), jnp.float32),
        "ffn_w2": nrm(next(keys), (L, I, H), jnp.bfloat16),
        "ffn_b2": jnp.zeros((L, 1, H), jnp.float32),
        "ffn_ln_g": jnp.ones((L, 1, H), jnp.float32),
        "ffn_ln_b": jnp.zeros((L, 1, H), jnp.float32),
        "pooler_w": nrm(next(keys), (H, H), jnp.bfloat16),
        "pooler_b": jnp.zeros((1, H), jnp.float32),
        "fc_w": nrm(next(keys), (1, H), jnp.float32),   # used as lane-reduction row
        "fc_b": jnp.zeros((1, 1), jnp.float32),
    }


# ---- forward pass --------------------------------------------------------------
def bert_classifier_forward(params, input_ids, attention_mask):
    B, S = input_ids.shape

    # Embedding gathers stay in JAX glue (data-dependent gather); everything else
    # happens inside the single fused Pallas kernel.
    word = jnp.take(params["word_emb"], input_ids, axis=0)            # (B, S, H)
    pos = params["pos_emb"][:S][None, :, :]
    typ = params["type_emb"][0][None, None, :]                        # token_type_ids == 0
    emb = (word + pos + typ).reshape(B * S, HIDDEN).astype(jnp.float32)

    # Additive attention mask: 0 for real tokens, -10000 for padding.
    mask_bias = (1.0 - attention_mask.astype(jnp.float32)) * -10000.0  # (B, S)

    return pl.pallas_call(
        _bert_kernel,
        out_shape=jax.ShapeDtypeStruct((B, 1), jnp.float32),
        compiler_params=pltpu.CompilerParams(vmem_limit_bytes=32 * 1024 * 1024),
    )(emb, mask_bias,
      params["emb_ln_g"], params["emb_ln_b"],
      params["qkv_w"], params["qkv_b"], params["ao_w"], params["ao_b"],
      params["attn_ln_g"], params["attn_ln_b"],
      params["ffn_w1"], params["ffn_b1"], params["ffn_w2"], params["ffn_b2"],
      params["ffn_ln_g"], params["ffn_ln_b"],
      params["pooler_w"], params["pooler_b"],
      params["fc_w"], params["fc_b"])


if __name__ == "__main__":
    key = jax.random.PRNGKey(0)
    pkey, ikey = jax.random.split(key)
    params = init_params(pkey)

    B, S = 2, 8
    input_ids = jax.random.randint(ikey, (B, S), 0, VOCAB, dtype=jnp.int32)
    attention_mask = jnp.array([[1, 1, 1, 1, 1, 1, 1, 1],
                                [1, 1, 1, 1, 1, 1, 0, 0]], dtype=jnp.int32)

    fwd = jax.jit(bert_classifier_forward)
    out = fwd(params, input_ids, attention_mask)
    out = jax.block_until_ready(out)
    assert out.shape == (B, 1)
    assert bool(jnp.all(jnp.isfinite(out)))
    assert bool(jnp.all((out >= 0.0) & (out <= 1.0)))
    print("KERNEL_OK")
</pallas_src>

<mosaic_0001>
module attributes {stable_mosaic.version = 11 : i64} {
  func.func @_bert_kernel(%arg0: memref<16x32xf32, #tpu.memory_space<vmem>>, %arg1: memref<2x8xf32, #tpu.memory_space<vmem>>, %arg2: memref<1x32xf32, #tpu.memory_space<vmem>>, %arg3: memref<1x32xf32, #tpu.memory_space<vmem>>, %arg4: memref<2x32x96xbf16, #tpu.memory_space<vmem>>, %arg5: memref<2x1x96xf32, #tpu.memory_space<vmem>>, %arg6: memref<2x32x32xbf16, #tpu.memory_space<vmem>>, %arg7: memref<2x1x32xf32, #tpu.memory_space<vmem>>, %arg8: memref<2x1x32xf32, #tpu.memory_space<vmem>>, %arg9: memref<2x1x32xf32, #tpu.memory_space<vmem>>, %arg10: memref<2x32x64xbf16, #tpu.memory_space<vmem>>, %arg11: memref<2x1x64xf32, #tpu.memory_space<vmem>>, %arg12: memref<2x64x32xbf16, #tpu.memory_space<vmem>>, %arg13: memref<2x1x32xf32, #tpu.memory_space<vmem>>, %arg14: memref<2x1x32xf32, #tpu.memory_space<vmem>>, %arg15: memref<2x1x32xf32, #tpu.memory_space<vmem>>, %arg16: memref<32x32xbf16, #tpu.memory_space<vmem>>, %arg17: memref<1x32xf32, #tpu.memory_space<vmem>>, %arg18: memref<1x32xf32, #tpu.memory_space<vmem>>, %arg19: memref<1x1xf32, #tpu.memory_space<vmem>>, %arg20: memref<2x1xf32, #tpu.memory_space<vmem>>) attributes {dimension_semantics = [], scalar_prefetch = 0 : i64, scratch_operands = 0 : i64, tpu.core_type = #tpu.core_type<tc>} {
    %c0 = arith.constant 0 : index
    %c0_0 = arith.constant 0 : index
    %0 = vector.load %arg1[%c0, %c0_0] : memref<2x8xf32, #tpu.memory_space<vmem>>, vector<2x8xf32>
    %c0_1 = arith.constant 0 : index
    %c0_2 = arith.constant 0 : index
    %1 = vector.load %arg0[%c0_1, %c0_2] : memref<16x32xf32, #tpu.memory_space<vmem>>, vector<16x32xf32>
    %c0_3 = arith.constant 0 : index
    %c0_4 = arith.constant 0 : index
    %2 = vector.load %arg2[%c0_3, %c0_4] : memref<1x32xf32, #tpu.memory_space<vmem>>, vector<1x32xf32>
    %c0_5 = arith.constant 0 : index
    %c0_6 = arith.constant 0 : index
    %3 = vector.load %arg3[%c0_5, %c0_6] : memref<1x32xf32, #tpu.memory_space<vmem>>, vector<1x32xf32>
    %cst = arith.constant dense<0.000000e+00> : vector<16xf32>
    %4 = vector.multi_reduction <add>, %1, %cst [1] : vector<16x32xf32> to vector<16xf32>
    %5 = vector.shape_cast %4 : vector<16xf32> to vector<16x1xf32>
    %cst_7 = arith.constant 3.200000e+01 : f32
    %6 = vector.broadcast %cst_7 : f32 to vector<16x1xf32>
    %7 = arith.divf %5, %6 : vector<16x1xf32>
    %8 = vector.broadcast %7 : vector<16x1xf32> to vector<16x32xf32>
    %9 = arith.subf %1, %8 : vector<16x32xf32>
    %10 = arith.mulf %9, %9 : vector<16x32xf32>
    %cst_8 = arith.constant dense<0.000000e+00> : vector<16xf32>
    %11 = vector.multi_reduction <add>, %10, %cst_8 [1] : vector<16x32xf32> to vector<16xf32>
    %12 = vector.shape_cast %11 : vector<16xf32> to vector<16x1xf32>
    %cst_9 = arith.constant 3.200000e+01 : f32
    %13 = vector.broadcast %cst_9 : f32 to vector<16x1xf32>
    %14 = arith.divf %12, %13 : vector<16x1xf32>
    %cst_10 = arith.constant 9.99999996E-13 : f32
    %15 = vector.broadcast %cst_10 : f32 to vector<16x1xf32>
    %16 = arith.addf %14, %15 : vector<16x1xf32>
    %17 = math.rsqrt %16 : vector<16x1xf32>
    %18 = vector.broadcast %17 : vector<16x1xf32> to vector<16x32xf32>
    %19 = arith.mulf %9, %18 : vector<16x32xf32>
    %20 = vector.broadcast %2 : vector<1x32xf32> to vector<16x32xf32>
    %21 = arith.mulf %19, %20 : vector<16x32xf32>
    %22 = vector.broadcast %3 : vector<1x32xf32> to vector<16x32xf32>
    %23 = arith.addf %21, %22 : vector<16x32xf32>
    %c0_11 = arith.constant 0 : index
    %c0_12 = arith.constant 0 : index
    %c0_13 = arith.constant 0 : index
    %24 = vector.load %arg4[%c0_11, %c0_12, %c0_13] : memref<2x32x96xbf16, #tpu.memory_space<vmem>>, vector<1x32x96xbf16>
    %25 = vector.shape_cast %24 : vector<1x32x96xbf16> to vector<32x96xbf16>
    %26 = arith.truncf %23 : vector<16x32xf32> to vector<16x32xbf16>
    %cst_14 = arith.constant dense<0.000000e+00> : vector<16x96xf32>
    %27 = tpu.matmul %26, %25, %cst_14 {dimension_numbers = #tpu.dot_dimension_numbers<[1], [0], [0], [1], [0, 0, 1, 1], [], []>} : vector<16x32xbf16>, vector<32x96xbf16>, vector<16x96xf32> -> vector<16x96xf32>
    %c0_15 = arith.constant 0 : index
    %c0_16 = arith.constant 0 : index
    %c0_17 = arith.constant 0 : index
    %28 = vector.load %arg5[%c0_15, %c0_16, %c0_17] : memref<2x1x96xf32, #tpu.memory_space<vmem>>, vector<1x1x96xf32>
    %29 = vector.shape_cast %28 : vector<1x1x96xf32> to vector<1x96xf32>
    %30 = vector.broadcast %29 : vector<1x96xf32> to vector<16x96xf32>
    %31 = arith.addf %27, %30 : vector<16x96xf32>
    %32 = vector.extract_strided_slice %0 {offsets = [0, 0], sizes = [1, 8], strides = [1, 1]} : vector<2x8xf32> to vector<1x8xf32>
    %33 = vector.extract_strided_slice %31 {offsets = [0, 0], sizes = [8, 8], strides = [1, 1]} : vector<16x96xf32> to vector<8x8xf32>
    %34 = vector.extract_strided_slice %31 {offsets = [0, 32], sizes = [8, 8], strides = [1, 1]} : vector<16x96xf32> to vector<8x8xf32>
    %35 = vector.extract_strided_slice %31 {offsets = [0, 64], sizes = [8, 8], strides = [1, 1]} : vector<16x96xf32> to vector<8x8xf32>
    %cst_18 = arith.constant dense<0.000000e+00> : vector<8x8xf32>
    %36 = tpu.matmul %33, %34, %cst_18 {dimension_numbers = #tpu.dot_dimension_numbers<[1], [1], [0], [0], [0, 0, 1, 0], [], []>} : vector<8x8xf32>, vector<8x8xf32>, vector<8x8xf32> -> vector<8x8xf32>
    %cst_19 = arith.constant 0.353553385 : f32
    %37 = vector.broadcast %cst_19 : f32 to vector<8x8xf32>
    %38 = arith.mulf %36, %37 : vector<8x8xf32>
    %39 = vector.broadcast %32 : vector<1x8xf32> to vector<8x8xf32>
    %40 = arith.addf %38, %39 : vector<8x8xf32>
    %cst_20 = arith.constant dense<0xFF800000> : vector<8xf32>
    %41 = vector.multi_reduction <maximumf>, %40, %cst_20 [1] : vector<8x8xf32> to vector<8xf32>
    %42 = vector.shape_cast %41 : vector<8xf32> to vector<8x1xf32>
    %43 = vector.broadcast %42 : vector<8x1xf32> to vector<8x8xf32>
    %44 = arith.subf %40, %43 : vector<8x8xf32>
    %45 = math.exp %44 : vector<8x8xf32>
    %cst_21 = arith.constant dense<0.000000e+00> : vector<8xf32>
    %46 = vector.multi_reduction <add>, %45, %cst_21 [1] : vector<8x8xf32> to vector<8xf32>
    %47 = vector.shape_cast %46 : vector<8xf32> to vector<8x1xf32>
    %48 = tpu.reciprocal %47 : vector<8x1xf32> -> vector<8x1xf32>
    %49 = vector.broadcast %48 : vector<8x1xf32> to vector<8x8xf32>
    %50 = arith.mulf %45, %49 : vector<8x8xf32>
    %cst_22 = arith.constant dense<0.000000e+00> : vector<8x8xf32>
    %51 = tpu.matmul %50, %35, %cst_22 {dimension_numbers = #tpu.dot_dimension_numbers<[1], [0], [0], [1], [0, 0, 1, 1], [], []>} : vector<8x8xf32>, vector<8x8xf32>, vector<8x8xf32> -> vector<8x8xf32>
    %52 = vector.extract_strided_slice %31 {offsets = [0, 8], sizes = [8, 8], strides = [1, 1]} : vector<16x96xf32> to vector<8x8xf32>
    %53 = vector.extract_strided_slice %31 {offsets = [0, 40], sizes = [8, 8], strides = [1, 1]} : vector<16x96xf32> to vector<8x8xf32>
    %54 = vector.extract_strided_slice %31 {offsets = [0, 72], sizes = [8, 8], strides = [1, 1]} : vector<16x96xf32> to vector<8x8xf32>
    %cst_23 = arith.constant dense<0.000000e+00> : vector<8x8xf32>
    %55 = tpu.matmul %52, %53, %cst_23 {dimension_numbers = #tpu.dot_dimension_numbers<[1], [1], [0], [0], [0, 0, 1, 0], [], []>} : vector<8x8xf32>, vector<8x8xf32>, vector<8x8xf32> -> vector<8x8xf32>
    %cst_24 = arith.constant 0.353553385 : f32
    %56 = vector.broadcast %cst_24 : f32 to vector<8x8xf32>
    %57 = arith.mulf %55, %56 : vector<8x8xf32>
    %58 = vector.broadcast %32 : vector<1x8xf32> to vector<8x8xf32>
    %59 = arith.addf %57, %58 : vector<8x8xf32>
    %cst_25 = arith.constant dense<0xFF800000> : vector<8xf32>
    %60 = vector.multi_reduction <maximumf>, %59, %cst_25 [1] : vector<8x8xf32> to vector<8xf32>
    %61 = vector.shape_cast %60 : vector<8xf32> to vector<8x1xf32>
    %62 = vector.broadcast %61 : vector<8x1xf32> to vector<8x8xf32>
    %63 = arith.subf %59, %62 : vector<8x8xf32>
    %64 = math.exp %63 : vector<8x8xf32>
    %cst_26 = arith.constant dense<0.000000e+00> : vector<8xf32>
    %65 = vector.multi_reduction <add>, %64, %cst_26 [1] : vector<8x8xf32> to vector<8xf32>
    %66 = vector.shape_cast %65 : vector<8xf32> to vector<8x1xf32>
    %67 = tpu.reciprocal %66 : vector<8x1xf32> -> vector<8x1xf32>
    %68 = vector.broadcast %67 : vector<8x1xf32> to vector<8x8xf32>
    %69 = arith.mulf %64, %68 : vector<8x8xf32>
    %cst_27 = arith.constant dense<0.000000e+00> : vector<8x8xf32>
    %70 = tpu.matmul %69, %54, %cst_27 {dimension_numbers = #tpu.dot_dimension_numbers<[1], [0], [0], [1], [0, 0, 1, 1], [], []>} : vector<8x8xf32>, vector<8x8xf32>, vector<8x8xf32> -> vector<8x8xf32>
    %71 = vector.extract_strided_slice %31 {offsets = [0, 16], sizes = [8, 8], strides = [1, 1]} : vector<16x96xf32> to vector<8x8xf32>
    %72 = vector.extract_strided_slice %31 {offsets = [0, 48], sizes = [8, 8], strides = [1, 1]} : vector<16x96xf32> to vector<8x8xf32>
    %73 = vector.extract_strided_slice %31 {offsets = [0, 80], sizes = [8, 8], strides = [1, 1]} : vector<16x96xf32> to vector<8x8xf32>
    %cst_28 = arith.constant dense<0.000000e+00> : vector<8x8xf32>
    %74 = tpu.matmul %71, %72, %cst_28 {dimension_numbers = #tpu.dot_dimension_numbers<[1], [1], [0], [0], [0, 0, 1, 0], [], []>} : vector<8x8xf32>, vector<8x8xf32>, vector<8x8xf32> -> vector<8x8xf32>
    %cst_29 = arith.constant 0.353553385 : f32
    %75 = vector.broadcast %cst_29 : f32 to vector<8x8xf32>
    %76 = arith.mulf %74, %75 : vector<8x8xf32>
    %77 = vector.broadcast %32 : vector<1x8xf32> to vector<8x8xf32>
    %78 = arith.addf %76, %77 : vector<8x8xf32>
    %cst_30 = arith.constant dense<0xFF800000> : vector<8xf32>
    %79 = vector.multi_reduction <maximumf>, %78, %cst_30 [1] : vector<8x8xf32> to vector<8xf32>
    %80 = vector.shape_cast %79 : vector<8xf32> to vector<8x1xf32>
    %81 = vector.broadcast %80 : vector<8x1xf32> to vector<8x8xf32>
    %82 = arith.subf %78, %81 : vector<8x8xf32>
    %83 = math.exp %82 : vector<8x8xf32>
    %cst_31 = arith.constant dense<0.000000e+00> : vector<8xf32>
    %84 = vector.multi_reduction <add>, %83, %cst_31 [1] : vector<8x8xf32> to vector<8xf32>
    %85 = vector.shape_cast %84 : vector<8xf32> to vector<8x1xf32>
    %86 = tpu.reciprocal %85 : vector<8x1xf32> -> vector<8x1xf32>
    %87 = vector.broadcast %86 : vector<8x1xf32> to vector<8x8xf32>
    %88 = arith.mulf %83, %87 : vector<8x8xf32>
    %cst_32 = arith.constant dense<0.000000e+00> : vector<8x8xf32>
    %89 = tpu.matmul %88, %73, %cst_32 {dimension_numbers = #tpu.dot_dimension_numbers<[1], [0], [0], [1], [0, 0, 1, 1], [], []>} : vector<8x8xf32>, vector<8x8xf32>, vector<8x8xf32> -> vector<8x8xf32>
    %90 = vector.extract_strided_slice %31 {offsets = [0, 24], sizes = [8, 8], strides = [1, 1]} : vector<16x96xf32> to vector<8x8xf32>
    %91 = vector.extract_strided_slice %31 {offsets = [0, 56], sizes = [8, 8], strides = [1, 1]} : vector<16x96xf32> to vector<8x8xf32>
    %92 = vector.extract_strided_slice %31 {offsets = [0, 88], sizes = [8, 8], strides = [1, 1]} : vector<16x96xf32> to vector<8x8xf32>
    %cst_33 = arith.constant dense<0.000000e+00> : vector<8x8xf32>
    %93 = tpu.matmul %90, %91, %cst_33 {dimension_numbers = #tpu.dot_dimension_numbers<[1], [1], [0], [0], [0, 0, 1, 0], [], []>} : vector<8x8xf32>, vector<8x8xf32>, vector<8x8xf32> -> vector<8x8xf32>
    %cst_34 = arith.constant 0.353553385 : f32
    %94 = vector.broadcast %cst_34 : f32 to vector<8x8xf32>
    %95 = arith.mulf %93, %94 : vector<8x8xf32>
    %96 = vector.broadcast %32 : vector<1x8xf32> to vector<8x8xf32>
    %97 = arith.addf %95, %96 : vector<8x8xf32>
    %cst_35 = arith.constant dense<0xFF800000> : vector<8xf32>
    %98 = vector.multi_reduction <maximumf>, %97, %cst_35 [1] : vector<8x8xf32> to vector<8xf32>
    %99 = vector.shape_cast %98 : vector<8xf32> to vector<8x1xf32>
    %100 = vector.broadcast %99 : vector<8x1xf32> to vector<8x8xf32>
    %101 = arith.subf %97, %100 : vector<8x8xf32>
    %102 = math.exp %101 : vector<8x8xf32>
    %cst_36 = arith.constant dense<0.000000e+00> : vector<8xf32>
    %103 = vector.multi_reduction <add>, %102, %cst_36 [1] : vector<8x8xf32> to vector<8xf32>
    %104 = vector.shape_cast %103 : vector<8xf32> to vector<8x1xf32>
    %105 = tpu.reciprocal %104 : vector<8x1xf32> -> vector<8x1xf32>
    %106 = vector.broadcast %105 : vector<8x1xf32> to vector<8x8xf32>
    %107 = arith.mulf %102, %106 : vector<8x8xf32>
    %cst_37 = arith.constant dense<0.000000e+00> : vector<8x8xf32>
    %108 = tpu.matmul %107, %92, %cst_37 {dimension_numbers = #tpu.dot_dimension_numbers<[1], [0], [0], [1], [0, 0, 1, 1], [], []>} : vector<8x8xf32>, vector<8x8xf32>, vector<8x8xf32> -> vector<8x8xf32>
    %109 = tpu.concatenate %51, %70, %89, %108 in 1 : vector<8x8xf32>, vector<8x8xf32>, vector<8x8xf32>, vector<8x8xf32> -> vector<8x32xf32>
    %110 = vector.extract_strided_slice %0 {offsets = [1, 0], sizes = [1, 8], strides = [1, 1]} : vector<2x8xf32> to vector<1x8xf32>
    %111 = vector.extract_strided_slice %31 {offsets = [8, 0], sizes = [8, 8], strides = [1, 1]} : vector<16x96xf32> to vector<8x8xf32>
    %112 = vector.extract_strided_slice %31 {offsets = [8, 32], sizes = [8, 8], strides = [1, 1]} : vector<16x96xf32> to vector<8x8xf32>
    %113 = vector.extract_strided_slice %31 {offsets = [8, 64], sizes = [8, 8], strides = [1, 1]} : vector<16x96xf32> to vector<8x8xf32>
    %cst_38 = arith.constant dense<0.000000e+00> : vector<8x8xf32>
    %114 = tpu.matmul %111, %112, %cst_38 {dimension_numbers = #tpu.dot_dimension_numbers<[1], [1], [0], [0], [0, 0, 1, 0], [], []>} : vector<8x8xf32>, vector<8x8xf32>, vector<8x8xf32> -> vector<8x8xf32>
    %cst_39 = arith.constant 0.353553385 : f32
    %115 = vector.broadcast %cst_39 : f32 to vector<8x8xf32>
    %116 = arith.mulf %114, %115 : vector<8x8xf32>
    %117 = vector.broadcast %110 : vector<1x8xf32> to vector<8x8xf32>
    %118 = arith.addf %116, %117 : vector<8x8xf32>
    %cst_40 = arith.constant dense<0xFF800000> : vector<8xf32>
    %119 = vector.multi_reduction <maximumf>, %118, %cst_40 [1] : vector<8x8xf32> to vector<8xf32>
    %120 = vector.shape_cast %119 : vector<8xf32> to vector<8x1xf32>
    %121 = vector.broadcast %120 : vector<8x1xf32> to vector<8x8xf32>
    %122 = arith.subf %118, %121 : vector<8x8xf32>
    %123 = math.exp %122 : vector<8x8xf32>
    %cst_41 = arith.constant dense<0.000000e+00> : vector<8xf32>
    %124 = vector.multi_reduction <add>, %123, %cst_41 [1] : vector<8x8xf32> to vector<8xf32>
    %125 = vector.shape_cast %124 : vector<8xf32> to vector<8x1xf32>
    %126 = tpu.reciprocal %125 : vector<8x1xf32> -> vector<8x1xf32>
    %127 = vector.broadcast %126 : vector<8x1xf32> to vector<8x8xf32>
    %128 = arith.mulf %123, %127 : vector<8x8xf32>
    %cst_42 = arith.constant dense<0.000000e+00> : vector<8x8xf32>
    %129 = tpu.matmul %128, %113, %cst_42 {dimension_numbers = #tpu.dot_dimension_numbers<[1], [0], [0], [1], [0, 0, 1, 1], [], []>} : vector<8x8xf32>, vector<8x8xf32>, vector<8x8xf32> -> vector<8x8xf32>
    %130 = vector.extract_strided_slice %31 {offsets = [8, 8], sizes = [8, 8], strides = [1, 1]} : vector<16x96xf32> to vector<8x8xf32>
    %131 = vector.extract_strided_slice %31 {offsets = [8, 40], sizes = [8, 8], strides = [1, 1]} : vector<16x96xf32> to vector<8x8xf32>
    %132 = vector.extract_strided_slice %31 {offsets = [8, 72], sizes = [8, 8], strides = [1, 1]} : vector<16x96xf32> to vector<8x8xf32>
    %cst_43 = arith.constant dense<0.000000e+00> : vector<8x8xf32>
    %133 = tpu.matmul %130, %131, %cst_43 {dimension_numbers = #tpu.dot_dimension_numbers<[1], [1], [0], [0], [0, 0, 1, 0], [], []>} : vector<8x8xf32>, vector<8x8xf32>, vector<8x8xf32> -> vector<8x8xf32>
    %cst_44 = arith.constant 0.353553385 : f32
    %134 = vector.broadcast %cst_44 : f32 to vector<8x8xf32>
    %135 = arith.mulf %133, %134 : vector<8x8xf32>
    %136 = vector.broadcast %110 : vector<1x8xf32> to vector<8x8xf32>
    %137 = arith.addf %135, %136 : vector<8x8xf32>
    %cst_45 = arith.constant dense<0xFF800000> : vector<8xf32>
    %138 = vector.multi_reduction <maximumf>, %137, %cst_45 [1] : vector<8x8xf32> to vector<8xf32>
    %139 = vector.shape_cast %138 : vector<8xf32> to vector<8x1xf32>
    %140 = vector.broadcast %139 : vector<8x1xf32> to vector<8x8xf32>
    %141 = arith.subf %137, %140 : vector<8x8xf32>
    %142 = math.exp %141 : vector<8x8xf32>
    %cst_46 = arith.constant dense<0.000000e+00> : vector<8xf32>
    %143 = vector.multi_reduction <add>, %142, %cst_46 [1] : vector<8x8xf32> to vector<8xf32>
    %144 = vector.shape_cast %143 : vector<8xf32> to vector<8x1xf32>
    %145 = tpu.reciprocal %144 : vector<8x1xf32> -> vector<8x1xf32>
    %146 = vector.broadcast %145 : vector<8x1xf32> to vector<8x8xf32>
    %147 = arith.mulf %142, %146 : vector<8x8xf32>
    %cst_47 = arith.constant dense<0.000000e+00> : vector<8x8xf32>
    %148 = tpu.matmul %147, %132, %cst_47 {dimension_numbers = #tpu.dot_dimension_numbers<[1], [0], [0], [1], [0, 0, 1, 1], [], []>} : vector<8x8xf32>, vector<8x8xf32>, vector<8x8xf32> -> vector<8x8xf32>
    %149 = vector.extract_strided_slice %31 {offsets = [8, 16], sizes = [8, 8], strides = [1, 1]} : vector<16x96xf32> to vector<8x8xf32>
    %150 = vector.extract_strided_slice %31 {offsets = [8, 48], sizes = [8, 8], strides = [1, 1]} : vector<16x96xf32> to vector<8x8xf32>
    %151 = vector.extract_strided_slice %31 {offsets = [8, 80], sizes = [8, 8], strides = [1, 1]} : vector<16x96xf32> to vector<8x8xf32>
    %cst_48 = arith.constant dense<0.000000e+00> : vector<8x8xf32>
    %152 = tpu.matmul %149, %150, %cst_48 {dimension_numbers = #tpu.dot_dimension_numbers<[1], [1], [0], [0], [0, 0, 1, 0], [], []>} : vector<8x8xf32>, vector<8x8xf32>, vector<8x8xf32> -> vector<8x8xf32>
    %cst_49 = arith.constant 0.353553385 : f32
    %153 = vector.broadcast %cst_49 : f32 to vector<8x8xf32>
    %154 = arith.mulf %152, %153 : vector<8x8xf32>
    %155 = vector.broadcast %110 : vector<1x8xf32> to vector<8x8xf32>
    %156 = arith.addf %154, %155 : vector<8x8xf32>
    %cst_50 = arith.constant dense<0xFF800000> : vector<8xf32>
    %157 = vector.multi_reduction <maximumf>, %156, %cst_50 [1] : vector<8x8xf32> to vector<8xf32>
    %158 = vector.shape_cast %157 : vector<8xf32> to vector<8x1xf32>
    %159 = vector.broadcast %158 : vector<8x1xf32> to vector<8x8xf32>
    %160 = arith.subf %156, %159 : vector<8x8xf32>
    %161 = math.exp %160 : vector<8x8xf32>
    %cst_51 = arith.constant dense<0.000000e+00> : vector<8xf32>
    %162 = vector.multi_reduction <add>, %161, %cst_51 [1] : vector<8x8xf32> to vector<8xf32>
    %163 = vector.shape_cast %162 : vector<8xf32> to vector<8x1xf32>
    %164 = tpu.reciprocal %163 : vector<8x1xf32> -> vector<8x1xf32>
    %165 = vector.broadcast %164 : vector<8x1xf32> to vector<8x8xf32>
    %166 = arith.mulf %161, %165 : vector<8x8xf32>
    %cst_52 = arith.constant dense<0.000000e+00> : vector<8x8xf32>
    %167 = tpu.matmul %166, %151, %cst_52 {dimension_numbers = #tpu.dot_dimension_numbers<[1], [0], [0], [1], [0, 0, 1, 1], [], []>} : vector<8x8xf32>, vector<8x8xf32>, vector<8x8xf32> -> vector<8x8xf32>
    %168 = vector.extract_strided_slice %31 {offsets = [8, 24], sizes = [8, 8], strides = [1, 1]} : vector<16x96xf32> to vector<8x8xf32>
    %169 = vector.extract_strided_slice %31 {offsets = [8, 56], sizes = [8, 8], strides = [1, 1]} : vector<16x96xf32> to vector<8x8xf32>
    %170 = vector.extract_strided_slice %31 {offsets = [8, 88], sizes = [8, 8], strides = [1, 1]} : vector<16x96xf32> to vector<8x8xf32>
    %cst_53 = arith.constant dense<0.000000e+00> : vector<8x8xf32>
    %171 = tpu.matmul %168, %169, %cst_53 {dimension_numbers = #tpu.dot_dimension_numbers<[1], [1], [0], [0], [0, 0, 1, 0], [], []>} : vector<8x8xf32>, vector<8x8xf32>, vector<8x8xf32> -> vector<8x8xf32>
    %cst_54 = arith.constant 0.353553385 : f32
    %172 = vector.broadcast %cst_54 : f32 to vector<8x8xf32>
    %173 = arith.mulf %171, %172 : vector<8x8xf32>
    %174 = vector.broadcast %110 : vector<1x8xf32> to vector<8x8xf32>
    %175 = arith.addf %173, %174 : vector<8x8xf32>
    %cst_55 = arith.constant dense<0xFF800000> : vector<8xf32>
    %176 = vector.multi_reduction <maximumf>, %175, %cst_55 [1] : vector<8x8xf32> to vector<8xf32>
    %177 = vector.shape_cast %176 : vector<8xf32> to vector<8x1xf32>
    %178 = vector.broadcast %177 : vector<8x1xf32> to vector<8x8xf32>
    %179 = arith.subf %175, %178 : vector<8x8xf32>
    %180 = math.exp %179 : vector<8x8xf32>
    %cst_56 = arith.constant dense<0.000000e+00> : vector<8xf32>
    %181 = vector.multi_reduction <add>, %180, %cst_56 [1] : vector<8x8xf32> to vector<8xf32>
    %182 = vector.shape_cast %181 : vector<8xf32> to vector<8x1xf32>
    %183 = tpu.reciprocal %182 : vector<8x1xf32> -> vector<8x1xf32>
    %184 = vector.broadcast %183 : vector<8x1xf32> to vector<8x8xf32>
    %185 = arith.mulf %180, %184 : vector<8x8xf32>
    %cst_57 = arith.constant dense<0.000000e+00> : vector<8x8xf32>
    %186 = tpu.matmul %185, %170, %cst_57 {dimension_numbers = #tpu.dot_dimension_numbers<[1], [0], [0], [1], [0, 0, 1, 1], [], []>} : vector<8x8xf32>, vector<8x8xf32>, vector<8x8xf32> -> vector<8x8xf32>
    %187 = tpu.concatenate %129, %148, %167, %186 in 1 : vector<8x8xf32>, vector<8x8xf32>, vector<8x8xf32>, vector<8x8xf32> -> vector<8x32xf32>
    %188 = tpu.concatenate %109, %187 in 0 : vector<8x32xf32>, vector<8x32xf32> -> vector<16x32xf32>
    %c0_58 = arith.constant 0 : index
    %c0_59 = arith.constant 0 : index
    %c0_60 = arith.constant 0 : index
    %189 = vector.load %arg6[%c0_58, %c0_59, %c0_60] : memref<2x32x32xbf16, #tpu.memory_space<vmem>>, vector<1x32x32xbf16>
    %190 = vector.shape_cast %189 : vector<1x32x32xbf16> to vector<32x32xbf16>
    %191 = arith.truncf %188 : vector<16x32xf32> to vector<16x32xbf16>
    %cst_61 = arith.constant dense<0.000000e+00> : vector<16x32xf32>
    %192 = tpu.matmul %191, %190, %cst_61 {dimension_numbers = #tpu.dot_dimension_numbers<[1], [0], [0], [1], [0, 0, 1, 1], [], []>} : vector<16x32xbf16>, vector<32x32xbf16>, vector<16x32xf32> -> vector<16x32xf32>
    %c0_62 = arith.constant 0 : index
    %c0_63 = arith.constant 0 : index
    %c0_64 = arith.constant 0 : index
    %193 = vector.load %arg7[%c0_62, %c0_63, %c0_64] : memref<2x1x32xf32, #tpu.memory_space<vmem>>, vector<1x1x32xf32>
    %194 = vector.shape_cast %193 : vector<1x1x32xf32> to vector<1x32xf32>
    %195 = vector.broadcast %194 : vector<1x32xf32> to vector<16x32xf32>
    %196 = arith.addf %192, %195 : vector<16x32xf32>
    %197 = arith.addf %196, %23 : vector<16x32xf32>
    %c0_65 = arith.constant 0 : index
    %c0_66 = arith.constant 0 : index
    %c0_67 = arith.constant 0 : index
    %198 = vector.load %arg8[%c0_65, %c0_66, %c0_67] : memref<2x1x32xf32, #tpu.memory_space<vmem>>, vector<1x1x32xf32>
    %199 = vector.shape_cast %198 : vector<1x1x32xf32> to vector<1x32xf32>
    %c0_68 = arith.constant 0 : index
    %c0_69 = arith.constant 0 : index
    %c0_70 = arith.constant 0 : index
    %200 = vector.load %arg9[%c0_68, %c0_69, %c0_70] : memref<2x1x32xf32, #tpu.memory_space<vmem>>, vector<1x1x32xf32>
    %201 = vector.shape_cast %200 : vector<1x1x32xf32> to vector<1x32xf32>
    %cst_71 = arith.constant dense<0.000000e+00> : vector<16xf32>
    %202 = vector.multi_reduction <add>, %197, %cst_71 [1] : vector<16x32xf32> to vector<16xf32>
    %203 = vector.shape_cast %202 : vector<16xf32> to vector<16x1xf32>
    %cst_72 = arith.constant 3.200000e+01 : f32
    %204 = vector.broadcast %cst_72 : f32 to vector<16x1xf32>
    %205 = arith.divf %203, %204 : vector<16x1xf32>
    %206 = vector.broadcast %205 : vector<16x1xf32> to vector<16x32xf32>
    %207 = arith.subf %197, %206 : vector<16x32xf32>
    %208 = arith.mulf %207, %207 : vector<16x32xf32>
    %cst_73 = arith.constant dense<0.000000e+00> : vector<16xf32>
    %209 = vector.multi_reduction <add>, %208, %cst_73 [1] : vector<16x32xf32> to vector<16xf32>
    %210 = vector.shape_cast %209 : vector<16xf32> to vector<16x1xf32>
    %cst_74 = arith.constant 3.200000e+01 : f32
    %211 = vector.broadcast %cst_74 : f32 to vector<16x1xf32>
    %212 = arith.divf %210, %211 : vector<16x1xf32>
    %cst_75 = arith.constant 9.99999996E-13 : f32
    %213 = vector.broadcast %cst_75 : f32 to vector<16x1xf32>
    %214 = arith.addf %212, %213 : vector<16x1xf32>
    %215 = math.rsqrt %214 : vector<16x1xf32>
    %216 = vector.broadcast %215 : vector<16x1xf32> to vector<16x32xf32>
    %217 = arith.mulf %207, %216 : vector<16x32xf32>
    %218 = vector.broadcast %199 : vector<1x32xf32> to vector<16x32xf32>
    %219 = arith.mulf %217, %218 : vector<16x32xf32>
    %220 = vector.broadcast %201 : vector<1x32xf32> to vector<16x32xf32>
    %221 = arith.addf %219, %220 : vector<16x32xf32>
    %c0_76 = arith.constant 0 : index
    %c0_77 = arith.constant 0 : index
    %c0_78 = arith.constant 0 : index
    %222 = vector.load %arg10[%c0_76, %c0_77, %c0_78] : memref<2x32x64xbf16, #tpu.memory_space<vmem>>, vector<1x32x64xbf16>
    %223 = vector.shape_cast %222 : vector<1x32x64xbf16> to vector<32x64xbf16>
    %224 = arith.truncf %221 : vector<16x32xf32> to vector<16x32xbf16>
    %cst_79 = arith.constant dense<0.000000e+00> : vector<16x64xf32>
    %225 = tpu.matmul %224, %223, %cst_79 {dimension_numbers = #tpu.dot_dimension_numbers<[1], [0], [0], [1], [0, 0, 1, 1], [], []>} : vector<16x32xbf16>, vector<32x64xbf16>, vector<16x64xf32> -> vector<16x64xf32>
    %c0_80 = arith.constant 0 : index
    %c0_81 = arith.constant 0 : index
    %c0_82 = arith.constant 0 : index
    %226 = vector.load %arg11[%c0_80, %c0_81, %c0_82] : memref<2x1x64xf32, #tpu.memory_space<vmem>>, vector<1x1x64xf32>
    %227 = vector.shape_cast %226 : vector<1x1x64xf32> to vector<1x64xf32>
    %228 = vector.broadcast %227 : vector<1x64xf32> to vector<16x64xf32>
    %229 = arith.addf %225, %228 : vector<16x64xf32>
    %cst_83 = arith.constant 5.000000e-01 : f32
    %230 = vector.broadcast %cst_83 : f32 to vector<16x64xf32>
    %231 = arith.mulf %230, %229 : vector<16x64xf32>
    %cst_84 = arith.constant 4.471500e-02 : f32
    %232 = vector.broadcast %cst_84 : f32 to vector<16x64xf32>
    %233 = arith.mulf %232, %229 : vector<16x64xf32>
    %234 = arith.mulf %233, %229 : vector<16x64xf32>
    %235 = arith.mulf %234, %229 : vector<16x64xf32>
    %236 = arith.addf %229, %235 : vector<16x64xf32>
    %cst_85 = arith.constant 0.797884583 : f32
    %237 = vector.broadcast %cst_85 : f32 to vector<16x64xf32>
    %238 = arith.mulf %237, %236 : vector<16x64xf32>
    %239 = math.tanh %238 : vector<16x64xf32>
    %cst_86 = arith.constant 1.000000e+00 : f32
    %240 = vector.broadcast %cst_86 : f32 to vector<16x64xf32>
    %241 = arith.addf %240, %239 : vector<16x64xf32>
    %242 = arith.mulf %231, %241 : vector<16x64xf32>
    %c0_87 = arith.constant 0 : index
    %c0_88 = arith.constant 0 : index
    %c0_89 = arith.constant 0 : index
    %243 = vector.load %arg12[%c0_87, %c0_88, %c0_89] : memref<2x64x32xbf16, #tpu.memory_space<vmem>>, vector<1x64x32xbf16>
    %244 = vector.shape_cast %243 : vector<1x64x32xbf16> to vector<64x32xbf16>
    %245 = arith.truncf %242 : vector<16x64xf32> to vector<16x64xbf16>
    %cst_90 = arith.constant dense<0.000000e+00> : vector<16x32xf32>
    %246 = tpu.matmul %245, %244, %cst_90 {dimension_numbers = #tpu.dot_dimension_numbers<[1], [0], [0], [1], [0, 0, 1, 1], [], []>} : vector<16x64xbf16>, vector<64x32xbf16>, vector<16x32xf32> -> vector<16x32xf32>
    %c0_91 = arith.constant 0 : index
    %c0_92 = arith.constant 0 : index
    %c0_93 = arith.constant 0 : index
    %247 = vector.load %arg13[%c0_91, %c0_92, %c0_93] : memref<2x1x32xf32, #tpu.memory_space<vmem>>, vector<1x1x32xf32>
    %248 = vector.shape_cast %247 : vector<1x1x32xf32> to vector<1x32xf32>
    %249 = vector.broadcast %248 : vector<1x32xf32> to vector<16x32xf32>
    %250 = arith.addf %246, %249 : vector<16x32xf32>
    %251 = arith.addf %250, %221 : vector<16x32xf32>
    %c0_94 = arith.constant 0 : index
    %c0_95 = arith.constant 0 : index
    %c0_96 = arith.constant 0 : index
    %252 = vector.load %arg14[%c0_94, %c0_95, %c0_96] : memref<2x1x32xf32, #tpu.memory_space<vmem>>, vector<1x1x32xf32>
    %253 = vector.shape_cast %252 : vector<1x1x32xf32> to vector<1x32xf32>
    %c0_97 = arith.constant 0 : index
    %c0_98 = arith.constant 0 : index
    %c0_99 = arith.constant 0 : index
    %254 = vector.load %arg15[%c0_97, %c0_98, %c0_99] : memref<2x1x32xf32, #tpu.memory_space<vmem>>, vector<1x1x32xf32>
    %255 = vector.shape_cast %254 : vector<1x1x32xf32> to vector<1x32xf32>
    %cst_100 = arith.constant dense<0.000000e+00> : vector<16xf32>
    %256 = vector.multi_reduction <add>, %251, %cst_100 [1] : vector<16x32xf32> to vector<16xf32>
    %257 = vector.shape_cast %256 : vector<16xf32> to vector<16x1xf32>
    %cst_101 = arith.constant 3.200000e+01 : f32
    %258 = vector.broadcast %cst_101 : f32 to vector<16x1xf32>
    %259 = arith.divf %257, %258 : vector<16x1xf32>
    %260 = vector.broadcast %259 : vector<16x1xf32> to vector<16x32xf32>
    %261 = arith.subf %251, %260 : vector<16x32xf32>
    %262 = arith.mulf %261, %261 : vector<16x32xf32>
    %cst_102 = arith.constant dense<0.000000e+00> : vector<16xf32>
    %263 = vector.multi_reduction <add>, %262, %cst_102 [1] : vector<16x32xf32> to vector<16xf32>
    %264 = vector.shape_cast %263 : vector<16xf32> to vector<16x1xf32>
    %cst_103 = arith.constant 3.200000e+01 : f32
    %265 = vector.broadcast %cst_103 : f32 to vector<16x1xf32>
    %266 = arith.divf %264, %265 : vector<16x1xf32>
    %cst_104 = arith.constant 9.99999996E-13 : f32
    %267 = vector.broadcast %cst_104 : f32 to vector<16x1xf32>
    %268 = arith.addf %266, %267 : vector<16x1xf32>
    %269 = math.rsqrt %268 : vector<16x1xf32>
    %270 = vector.broadcast %269 : vector<16x1xf32> to vector<16x32xf32>
    %271 = arith.mulf %261, %270 : vector<16x32xf32>
    %272 = vector.broadcast %253 : vector<1x32xf32> to vector<16x32xf32>
    %273 = arith.mulf %271, %272 : vector<16x32xf32>
    %274 = vector.broadcast %255 : vector<1x32xf32> to vector<16x32xf32>
    %275 = arith.addf %273, %274 : vector<16x32xf32>
    %c1 = arith.constant 1 : index
    %c0_105 = arith.constant 0 : index
    %c0_106 = arith.constant 0 : index
    %276 = vector.load %arg4[%c1, %c0_105, %c0_106] : memref<2x32x96xbf16, #tpu.memory_space<vmem>>, vector<1x32x96xbf16>
    %277 = vector.shape_cast %276 : vector<1x32x96xbf16> to vector<32x96xbf16>
    %278 = arith.truncf %275 : vector<16x32xf32> to vector<16x32xbf16>
    %cst_107 = arith.constant dense<0.000000e+00> : vector<16x96xf32>
    %279 = tpu.matmul %278, %277, %cst_107 {dimension_numbers = #tpu.dot_dimension_numbers<[1], [0], [0], [1], [0, 0, 1, 1], [], []>} : vector<16x32xbf16>, vector<32x96xbf16>, vector<16x96xf32> -> vector<16x96xf32>
    %c1_108 = arith.constant 1 : index
    %c0_109 = arith.constant 0 : index
    %c0_110 = arith.constant 0 : index
    %280 = vector.load %arg5[%c1_108, %c0_109, %c0_110] : memref<2x1x96xf32, #tpu.memory_space<vmem>>, vector<1x1x96xf32>
    %281 = vector.shape_cast %280 : vector<1x1x96xf32> to vector<1x96xf32>
    %282 = vector.broadcast %281 : vector<1x96xf32> to vector<16x96xf32>
    %283 = arith.addf %279, %282 : vector<16x96xf32>
    %284 = vector.extract_strided_slice %0 {offsets = [0, 0], sizes = [1, 8], strides = [1, 1]} : vector<2x8xf32> to vector<1x8xf32>
    %285 = vector.extract_strided_slice %283 {offsets = [0, 0], sizes = [8, 8], strides = [1, 1]} : vector<16x96xf32> to vector<8x8xf32>
    %286 = vector.extract_strided_slice %283 {offsets = [0, 32], sizes = [8, 8], strides = [1, 1]} : vector<16x96xf32> to vector<8x8xf32>
    %287 = vector.extract_strided_slice %283 {offsets = [0, 64], sizes = [8, 8], strides = [1, 1]} : vector<16x96xf32> to vector<8x8xf32>
    %cst_111 = arith.constant dense<0.000000e+00> : vector<8x8xf32>
    %288 = tpu.matmul %285, %286, %cst_111 {dimension_numbers = #tpu.dot_dimension_numbers<[1], [1], [0], [0], [0, 0, 1, 0], [], []>} : vector<8x8xf32>, vector<8x8xf32>, vector<8x8xf32> -> vector<8x8xf32>
    %cst_112 = arith.constant 0.353553385 : f32
    %289 = vector.broadcast %cst_112 : f32 to vector<8x8xf32>
    %290 = arith.mulf %288, %289 : vector<8x8xf32>
    %291 = vector.broadcast %284 : vector<1x8xf32> to vector<8x8xf32>
    %292 = arith.addf %290, %291 : vector<8x8xf32>
    %cst_113 = arith.constant dense<0xFF800000> : vector<8xf32>
    %293 = vector.multi_reduction <maximumf>, %292, %cst_113 [1] : vector<8x8xf32> to vector<8xf32>
    %294 = vector.shape_cast %293 : vector<8xf32> to vector<8x1xf32>
    %295 = vector.broadcast %294 : vector<8x1xf32> to vector<8x8xf32>
    %296 = arith.subf %292, %295 : vector<8x8xf32>
    %297 = math.exp %296 : vector<8x8xf32>
    %cst_114 = arith.constant dense<0.000000e+00> : vector<8xf32>
    %298 = vector.multi_reduction <add>, %297, %cst_114 [1] : vector<8x8xf32> to vector<8xf32>
    %299 = vector.shape_cast %298 : vector<8xf32> to vector<8x1xf32>
    %300 = tpu.reciprocal %299 : vector<8x1xf32> -> vector<8x1xf32>
    %301 = vector.broadcast %300 : vector<8x1xf32> to vector<8x8xf32>
    %302 = arith.mulf %297, %301 : vector<8x8xf32>
    %cst_115 = arith.constant dense<0.000000e+00> : vector<8x8xf32>
    %303 = tpu.matmul %302, %287, %cst_115 {dimension_numbers = #tpu.dot_dimension_numbers<[1], [0], [0], [1], [0, 0, 1, 1], [], []>} : vector<8x8xf32>, vector<8x8xf32>, vector<8x8xf32> -> vector<8x8xf32>
    %304 = vector.extract_strided_slice %283 {offsets = [0, 8], sizes = [8, 8], strides = [1, 1]} : vector<16x96xf32> to vector<8x8xf32>
    %305 = vector.extract_strided_slice %283 {offsets = [0, 40], sizes = [8, 8], strides = [1, 1]} : vector<16x96xf32> to vector<8x8xf32>
    %306 = vector.extract_strided_slice %283 {offsets = [0, 72], sizes = [8, 8], strides = [1, 1]} : vector<16x96xf32> to vector<8x8xf32>
    %cst_116 = arith.constant dense<0.000000e+00> : vector<8x8xf32>
    %307 = tpu.matmul %304, %305, %cst_116 {dimension_numbers = #tpu.dot_dimension_numbers<[1], [1], [0], [0], [0, 0, 1, 0], [], []>} : vector<8x8xf32>, vector<8x8xf32>, vector<8x8xf32> -> vector<8x8xf32>
    %cst_117 = arith.constant 0.353553385 : f32
    %308 = vector.broadcast %cst_117 : f32 to vector<8x8xf32>
    %309 = arith.mulf %307, %308 : vector<8x8xf32>
    %310 = vector.broadcast %284 : vector<1x8xf32> to vector<8x8xf32>
    %311 = arith.addf %309, %310 : vector<8x8xf32>
    %cst_118 = arith.constant dense<0xFF800000> : vector<8xf32>
    %312 = vector.multi_reduction <maximumf>, %311, %cst_118 [1] : vector<8x8xf32> to vector<8xf32>
    %313 = vector.shape_cast %312 : vector<8xf32> to vector<8x1xf32>
    %314 = vector.broadcast %313 : vector<8x1xf32> to vector<8x8xf32>
    %315 = arith.subf %311, %314 : vector<8x8xf32>
    %316 = math.exp %315 : vector<8x8xf32>
    %cst_119 = arith.constant dense<0.000000e+00> : vector<8xf32>
    %317 = vector.multi_reduction <add>, %316, %cst_119 [1] : vector<8x8xf32> to vector<8xf32>
    %318 = vector.shape_cast %317 : vector<8xf32> to vector<8x1xf32>
    %319 = tpu.reciprocal %318 : vector<8x1xf32> -> vector<8x1xf32>
    %320 = vector.broadcast %319 : vector<8x1xf32> to vector<8x8xf32>
    %321 = arith.mulf %316, %320 : vector<8x8xf32>
    %cst_120 = arith.constant dense<0.000000e+00> : vector<8x8xf32>
    %322 = tpu.matmul %321, %306, %cst_120 {dimension_numbers = #tpu.dot_dimension_numbers<[1], [0], [0], [1], [0, 0, 1, 1], [], []>} : vector<8x8xf32>, vector<8x8xf32>, vector<8x8xf32> -> vector<8x8xf32>
    %323 = vector.extract_strided_slice %283 {offsets = [0, 16], sizes = [8, 8], strides = [1, 1]} : vector<16x96xf32> to vector<8x8xf32>
    %324 = vector.extract_strided_slice %283 {offsets = [0, 48], sizes = [8, 8], strides = [1, 1]} : vector<16x96xf32> to vector<8x8xf32>
    %325 = vector.extract_strided_slice %283 {offsets = [0, 80], sizes = [8, 8], strides = [1, 1]} : vector<16x96xf32> to vector<8x8xf32>
    %cst_121 = arith.constant dense<0.000000e+00> : vector<8x8xf32>
    %326 = tpu.matmul %323, %324, %cst_121 {dimension_numbers = #tpu.dot_dimension_numbers<[1], [1], [0], [0], [0, 0, 1, 0], [], []>} : vector<8x8xf32>, vector<8x8xf32>, vector<8x8xf32> -> vector<8x8xf32>
    %cst_122 = arith.constant 0.353553385 : f32
    %327 = vector.broadcast %cst_122 : f32 to vector<8x8xf32>
    %328 = arith.mulf %326, %327 : vector<8x8xf32>
    %329 = vector.broadcast %284 : vector<1x8xf32> to vector<8x8xf32>
    %330 = arith.addf %328, %329 : vector<8x8xf32>
    %cst_123 = arith.constant dense<0xFF800000> : vector<8xf32>
    %331 = vector.multi_reduction <maximumf>, %330, %cst_123 [1] : vector<8x8xf32> to vector<8xf32>
    %332 = vector.shape_cast %331 : vector<8xf32> to vector<8x1xf32>
    %333 = vector.broadcast %332 : vector<8x1xf32> to vector<8x8xf32>
    %334 = arith.subf %330, %333 : vector<8x8xf32>
    %335 = math.exp %334 : vector<8x8xf32>
    %cst_124 = arith.constant dense<0.000000e+00> : vector<8xf32>
    %336 = vector.multi_reduction <add>, %335, %cst_124 [1] : vector<8x8xf32> to vector<8xf32>
    %337 = vector.shape_cast %336 : vector<8xf32> to vector<8x1xf32>
    %338 = tpu.reciprocal %337 : vector<8x1xf32> -> vector<8x1xf32>
    %339 = vector.broadcast %338 : vector<8x1xf32> to vector<8x8xf32>
    %340 = arith.mulf %335, %339 : vector<8x8xf32>
    %cst_125 = arith.constant dense<0.000000e+00> : vector<8x8xf32>
    %341 = tpu.matmul %340, %325, %cst_125 {dimension_numbers = #tpu.dot_dimension_numbers<[1], [0], [0], [1], [0, 0, 1, 1], [], []>} : vector<8x8xf32>, vector<8x8xf32>, vector<8x8xf32> -> vector<8x8xf32>
    %342 = vector.extract_strided_slice %283 {offsets = [0, 24], sizes = [8, 8], strides = [1, 1]} : vector<16x96xf32> to vector<8x8xf32>
    %343 = vector.extract_strided_slice %283 {offsets = [0, 56], sizes = [8, 8], strides = [1, 1]} : vector<16x96xf32> to vector<8x8xf32>
    %344 = vector.extract_strided_slice %283 {offsets = [0, 88], sizes = [8, 8], strides = [1, 1]} : vector<16x96xf32> to vector<8x8xf32>
    %cst_126 = arith.constant dense<0.000000e+00> : vector<8x8xf32>
    %345 = tpu.matmul %342, %343, %cst_126 {dimension_numbers = #tpu.dot_dimension_numbers<[1], [1], [0], [0], [0, 0, 1, 0], [], []>} : vector<8x8xf32>, vector<8x8xf32>, vector<8x8xf32> -> vector<8x8xf32>
    %cst_127 = arith.constant 0.353553385 : f32
    %346 = vector.broadcast %cst_127 : f32 to vector<8x8xf32>
    %347 = arith.mulf %345, %346 : vector<8x8xf32>
    %348 = vector.broadcast %284 : vector<1x8xf32> to vector<8x8xf32>
    %349 = arith.addf %347, %348 : vector<8x8xf32>
    %cst_128 = arith.constant dense<0xFF800000> : vector<8xf32>
    %350 = vector.multi_reduction <maximumf>, %349, %cst_128 [1] : vector<8x8xf32> to vector<8xf32>
    %351 = vector.shape_cast %350 : vector<8xf32> to vector<8x1xf32>
    %352 = vector.broadcast %351 : vector<8x1xf32> to vector<8x8xf32>
    %353 = arith.subf %349, %352 : vector<8x8xf32>
    %354 = math.exp %353 : vector<8x8xf32>
    %cst_129 = arith.constant dense<0.000000e+00> : vector<8xf32>
    %355 = vector.multi_reduction <add>, %354, %cst_129 [1] : vector<8x8xf32> to vector<8xf32>
    %356 = vector.shape_cast %355 : vector<8xf32> to vector<8x1xf32>
    %357 = tpu.reciprocal %356 : vector<8x1xf32> -> vector<8x1xf32>
    %358 = vector.broadcast %357 : vector<8x1xf32> to vector<8x8xf32>
    %359 = arith.mulf %354, %358 : vector<8x8xf32>
    %cst_130 = arith.constant dense<0.000000e+00> : vector<8x8xf32>
    %360 = tpu.matmul %359, %344, %cst_130 {dimension_numbers = #tpu.dot_dimension_numbers<[1], [0], [0], [1], [0, 0, 1, 1], [], []>} : vector<8x8xf32>, vector<8x8xf32>, vector<8x8xf32> -> vector<8x8xf32>
    %361 = tpu.concatenate %303, %322, %341, %360 in 1 : vector<8x8xf32>, vector<8x8xf32>, vector<8x8xf32>, vector<8x8xf32> -> vector<8x32xf32>
    %362 = vector.extract_strided_slice %0 {offsets = [1, 0], sizes = [1, 8], strides = [1, 1]} : vector<2x8xf32> to vector<1x8xf32>
    %363 = vector.extract_strided_slice %283 {offsets = [8, 0], sizes = [8, 8], strides = [1, 1]} : vector<16x96xf32> to vector<8x8xf32>
    %364 = vector.extract_strided_slice %283 {offsets = [8, 32], sizes = [8, 8], strides = [1, 1]} : vector<16x96xf32> to vector<8x8xf32>
    %365 = vector.extract_strided_slice %283 {offsets = [8, 64], sizes = [8, 8], strides = [1, 1]} : vector<16x96xf32> to vector<8x8xf32>
    %cst_131 = arith.constant dense<0.000000e+00> : vector<8x8xf32>
    %366 = tpu.matmul %363, %364, %cst_131 {dimension_numbers = #tpu.dot_dimension_numbers<[1], [1], [0], [0], [0, 0, 1, 0], [], []>} : vector<8x8xf32>, vector<8x8xf32>, vector<8x8xf32> -> vector<8x8xf32>
    %cst_132 = arith.constant 0.353553385 : f32
    %367 = vector.broadcast %cst_132 : f32 to vector<8x8xf32>
    %368 = arith.mulf %366, %367 : vector<8x8xf32>
    %369 = vector.broadcast %362 : vector<1x8xf32> to vector<8x8xf32>
    %370 = arith.addf %368, %369 : vector<8x8xf32>
    %cst_133 = arith.constant dense<0xFF800000> : vector<8xf32>
    %371 = vector.multi_reduction <maximumf>, %370, %cst_133 [1] : vector<8x8xf32> to vector<8xf32>
    %372 = vector.shape_cast %371 : vector<8xf32> to vector<8x1xf32>
    %373 = vector.broadcast %372 : vector<8x1xf32> to vector<8x8xf32>
    %374 = arith.subf %370, %373 : vector<8x8xf32>
    %375 = math.exp %374 : vector<8x8xf32>
    %cst_134 = arith.constant dense<0.000000e+00> : vector<8xf32>
    %376 = vector.multi_reduction <add>, %375, %cst_134 [1] : vector<8x8xf32> to vector<8xf32>
    %377 = vector.shape_cast %376 : vector<8xf32> to vector<8x1xf32>
    %378 = tpu.reciprocal %377 : vector<8x1xf32> -> vector<8x1xf32>
    %379 = vector.broadcast %378 : vector<8x1xf32> to vector<8x8xf32>
    %380 = arith.mulf %375, %379 : vector<8x8xf32>
    %cst_135 = arith.constant dense<0.000000e+00> : vector<8x8xf32>
    %381 = tpu.matmul %380, %365, %cst_135 {dimension_numbers = #tpu.dot_dimension_numbers<[1], [0], [0], [1], [0, 0, 1, 1], [], []>} : vector<8x8xf32>, vector<8x8xf32>, vector<8x8xf32> -> vector<8x8xf32>
    %382 = vector.extract_strided_slice %283 {offsets = [8, 8], sizes = [8, 8], strides = [1, 1]} : vector<16x96xf32> to vector<8x8xf32>
    %383 = vector.extract_strided_slice %283 {offsets = [8, 40], sizes = [8, 8], strides = [1, 1]} : vector<16x96xf32> to vector<8x8xf32>
    %384 = vector.extract_strided_slice %283 {offsets = [8, 72], sizes = [8, 8], strides = [1, 1]} : vector<16x96xf32> to vector<8x8xf32>
    %cst_136 = arith.constant dense<0.000000e+00> : vector<8x8xf32>
    %385 = tpu.matmul %382, %383, %cst_136 {dimension_numbers = #tpu.dot_dimension_numbers<[1], [1], [0], [0], [0, 0, 1, 0], [], []>} : vector<8x8xf32>, vector<8x8xf32>, vector<8x8xf32> -> vector<8x8xf32>
    %cst_137 = arith.constant 0.353553385 : f32
    %386 = vector.broadcast %cst_137 : f32 to vector<8x8xf32>
    %387 = arith.mulf %385, %386 : vector<8x8xf32>
    %388 = vector.broadcast %362 : vector<1x8xf32> to vector<8x8xf32>
    %389 = arith.addf %387, %388 : vector<8x8xf32>
    %cst_138 = arith.constant dense<0xFF800000> : vector<8xf32>
    %390 = vector.multi_reduction <maximumf>, %389, %cst_138 [1] : vector<8x8xf32> to vector<8xf32>
    %391 = vector.shape_cast %390 : vector<8xf32> to vector<8x1xf32>
    %392 = vector.broadcast %391 : vector<8x1xf32> to vector<8x8xf32>
    %393 = arith.subf %389, %392 : vector<8x8xf32>
    %394 = math.exp %393 : vector<8x8xf32>
    %cst_139 = arith.constant dense<0.000000e+00> : vector<8xf32>
    %395 = vector.multi_reduction <add>, %394, %cst_139 [1] : vector<8x8xf32> to vector<8xf32>
    %396 = vector.shape_cast %395 : vector<8xf32> to vector<8x1xf32>
    %397 = tpu.reciprocal %396 : vector<8x1xf32> -> vector<8x1xf32>
    %398 = vector.broadcast %397 : vector<8x1xf32> to vector<8x8xf32>
    %399 = arith.mulf %394, %398 : vector<8x8xf32>
    %cst_140 = arith.constant dense<0.000000e+00> : vector<8x8xf32>
    %400 = tpu.matmul %399, %384, %cst_140 {dimension_numbers = #tpu.dot_dimension_numbers<[1], [0], [0], [1], [0, 0, 1, 1], [], []>} : vector<8x8xf32>, vector<8x8xf32>, vector<8x8xf32> -> vector<8x8xf32>
    %401 = vector.extract_strided_slice %283 {offsets = [8, 16], sizes = [8, 8], strides = [1, 1]} : vector<16x96xf32> to vector<8x8xf32>
    %402 = vector.extract_strided_slice %283 {offsets = [8, 48], sizes = [8, 8], strides = [1, 1]} : vector<16x96xf32> to vector<8x8xf32>
    %403 = vector.extract_strided_slice %283 {offsets = [8, 80], sizes = [8, 8], strides = [1, 1]} : vector<16x96xf32> to vector<8x8xf32>
    %cst_141 = arith.constant dense<0.000000e+00> : vector<8x8xf32>
    %404 = tpu.matmul %401, %402, %cst_141 {dimension_numbers = #tpu.dot_dimension_numbers<[1], [1], [0], [0], [0, 0, 1, 0], [], []>} : vector<8x8xf32>, vector<8x8xf32>, vector<8x8xf32> -> vector<8x8xf32>
    %cst_142 = arith.constant 0.353553385 : f32
    %405 = vector.broadcast %cst_142 : f32 to vector<8x8xf32>
    %406 = arith.mulf %404, %405 : vector<8x8xf32>
    %407 = vector.broadcast %362 : vector<1x8xf32> to vector<8x8xf32>
    %408 = arith.addf %406, %407 : vector<8x8xf32>
    %cst_143 = arith.constant dense<0xFF800000> : vector<8xf32>
    %409 = vector.multi_reduction <maximumf>, %408, %cst_143 [1] : vector<8x8xf32> to vector<8xf32>
    %410 = vector.shape_cast %409 : vector<8xf32> to vector<8x1xf32>
    %411 = vector.broadcast %410 : vector<8x1xf32> to vector<8x8xf32>
    %412 = arith.subf %408, %411 : vector<8x8xf32>
    %413 = math.exp %412 : vector<8x8xf32>
    %cst_144 = arith.constant dense<0.000000e+00> : vector<8xf32>
    %414 = vector.multi_reduction <add>, %413, %cst_144 [1] : vector<8x8xf32> to vector<8xf32>
    %415 = vector.shape_cast %414 : vector<8xf32> to vector<8x1xf32>
    %416 = tpu.reciprocal %415 : vector<8x1xf32> -> vector<8x1xf32>
    %417 = vector.broadcast %416 : vector<8x1xf32> to vector<8x8xf32>
    %418 = arith.mulf %413, %417 : vector<8x8xf32>
    %cst_145 = arith.constant dense<0.000000e+00> : vector<8x8xf32>
    %419 = tpu.matmul %418, %403, %cst_145 {dimension_numbers = #tpu.dot_dimension_numbers<[1], [0], [0], [1], [0, 0, 1, 1], [], []>} : vector<8x8xf32>, vector<8x8xf32>, vector<8x8xf32> -> vector<8x8xf32>
    %420 = vector.extract_strided_slice %283 {offsets = [8, 24], sizes = [8, 8], strides = [1, 1]} : vector<16x96xf32> to vector<8x8xf32>
    %421 = vector.extract_strided_slice %283 {offsets = [8, 56], sizes = [8, 8], strides = [1, 1]} : vector<16x96xf32> to vector<8x8xf32>
    %422 = vector.extract_strided_slice %283 {offsets = [8, 88], sizes = [8, 8], strides = [1, 1]} : vector<16x96xf32> to vector<8x8xf32>
    %cst_146 = arith.constant dense<0.000000e+00> : vector<8x8xf32>
    %423 = tpu.matmul %420, %421, %cst_146 {dimension_numbers = #tpu.dot_dimension_numbers<[1], [1], [0], [0], [0, 0, 1, 0], [], []>} : vector<8x8xf32>, vector<8x8xf32>, vector<8x8xf32> -> vector<8x8xf32>
    %cst_147 = arith.constant 0.353553385 : f32
    %424 = vector.broadcast %cst_147 : f32 to vector<8x8xf32>
    %425 = arith.mulf %423, %424 : vector<8x8xf32>
    %426 = vector.broadcast %362 : vector<1x8xf32> to vector<8x8xf32>
    %427 = arith.addf %425, %426 : vector<8x8xf32>
    %cst_148 = arith.constant dense<0xFF800000> : vector<8xf32>
    %428 = vector.multi_reduction <maximumf>, %427, %cst_148 [1] : vector<8x8xf32> to vector<8xf32>
    %429 = vector.shape_cast %428 : vector<8xf32> to vector<8x1xf32>
    %430 = vector.broadcast %429 : vector<8x1xf32> to vector<8x8xf32>
    %431 = arith.subf %427, %430 : vector<8x8xf32>
    %432 = math.exp %431 : vector<8x8xf32>
    %cst_149 = arith.constant dense<0.000000e+00> : vector<8xf32>
    %433 = vector.multi_reduction <add>, %432, %cst_149 [1] : vector<8x8xf32> to vector<8xf32>
    %434 = vector.shape_cast %433 : vector<8xf32> to vector<8x1xf32>
    %435 = tpu.reciprocal %434 : vector<8x1xf32> -> vector<8x1xf32>
    %436 = vector.broadcast %435 : vector<8x1xf32> to vector<8x8xf32>
    %437 = arith.mulf %432, %436 : vector<8x8xf32>
    %cst_150 = arith.constant dense<0.000000e+00> : vector<8x8xf32>
    %438 = tpu.matmul %437, %422, %cst_150 {dimension_numbers = #tpu.dot_dimension_numbers<[1], [0], [0], [1], [0, 0, 1, 1], [], []>} : vector<8x8xf32>, vector<8x8xf32>, vector<8x8xf32> -> vector<8x8xf32>
    %439 = tpu.concatenate %381, %400, %419, %438 in 1 : vector<8x8xf32>, vector<8x8xf32>, vector<8x8xf32>, vector<8x8xf32> -> vector<8x32xf32>
    %440 = tpu.concatenate %361, %439 in 0 : vector<8x32xf32>, vector<8x32xf32> -> vector<16x32xf32>
    %c1_151 = arith.constant 1 : index
    %c0_152 = arith.constant 0 : index
    %c0_153 = arith.constant 0 : index
    %441 = vector.load %arg6[%c1_151, %c0_152, %c0_153] : memref<2x32x32xbf16, #tpu.memory_space<vmem>>, vector<1x32x32xbf16>
    %442 = vector.shape_cast %441 : vector<1x32x32xbf16> to vector<32x32xbf16>
    %443 = arith.truncf %440 : vector<16x32xf32> to vector<16x32xbf16>
    %cst_154 = arith.constant dense<0.000000e+00> : vector<16x32xf32>
    %444 = tpu.matmul %443, %442, %cst_154 {dimension_numbers = #tpu.dot_dimension_numbers<[1], [0], [0], [1], [0, 0, 1, 1], [], []>} : vector<16x32xbf16>, vector<32x32xbf16>, vector<16x32xf32> -> vector<16x32xf32>
    %c1_155 = arith.constant 1 : index
    %c0_156 = arith.constant 0 : index
    %c0_157 = arith.constant 0 : index
    %445 = vector.load %arg7[%c1_155, %c0_156, %c0_157] : memref<2x1x32xf32, #tpu.memory_space<vmem>>, vector<1x1x32xf32>
    %446 = vector.shape_cast %445 : vector<1x1x32xf32> to vector<1x32xf32>
    %447 = vector.broadcast %446 : vector<1x32xf32> to vector<16x32xf32>
    %448 = arith.addf %444, %447 : vector<16x32xf32>
    %449 = arith.addf %448, %275 : vector<16x32xf32>
    %c1_158 = arith.constant 1 : index
    %c0_159 = arith.constant 0 : index
    %c0_160 = arith.constant 0 : index
    %450 = vector.load %arg8[%c1_158, %c0_159, %c0_160] : memref<2x1x32xf32, #tpu.memory_space<vmem>>, vector<1x1x32xf32>
    %451 = vector.shape_cast %450 : vector<1x1x32xf32> to vector<1x32xf32>
    %c1_161 = arith.constant 1 : index
    %c0_162 = arith.constant 0 : index
    %c0_163 = arith.constant 0 : index
    %452 = vector.load %arg9[%c1_161, %c0_162, %c0_163] : memref<2x1x32xf32, #tpu.memory_space<vmem>>, vector<1x1x32xf32>
    %453 = vector.shape_cast %452 : vector<1x1x32xf32> to vector<1x32xf32>
    %cst_164 = arith.constant dense<0.000000e+00> : vector<16xf32>
    %454 = vector.multi_reduction <add>, %449, %cst_164 [1] : vector<16x32xf32> to vector<16xf32>
    %455 = vector.shape_cast %454 : vector<16xf32> to vector<16x1xf32>
    %cst_165 = arith.constant 3.200000e+01 : f32
    %456 = vector.broadcast %cst_165 : f32 to vector<16x1xf32>
    %457 = arith.divf %455, %456 : vector<16x1xf32>
    %458 = vector.broadcast %457 : vector<16x1xf32> to vector<16x32xf32>
    %459 = arith.subf %449, %458 : vector<16x32xf32>
    %460 = arith.mulf %459, %459 : vector<16x32xf32>
    %cst_166 = arith.constant dense<0.000000e+00> : vector<16xf32>
    %461 = vector.multi_reduction <add>, %460, %cst_166 [1] : vector<16x32xf32> to vector<16xf32>
    %462 = vector.shape_cast %461 : vector<16xf32> to vector<16x1xf32>
    %cst_167 = arith.constant 3.200000e+01 : f32
    %463 = vector.broadcast %cst_167 : f32 to vector<16x1xf32>
    %464 = arith.divf %462, %463 : vector<16x1xf32>
    %cst_168 = arith.constant 9.99999996E-13 : f32
    %465 = vector.broadcast %cst_168 : f32 to vector<16x1xf32>
    %466 = arith.addf %464, %465 : vector<16x1xf32>
    %467 = math.rsqrt %466 : vector<16x1xf32>
    %468 = vector.broadcast %467 : vector<16x1xf32> to vector<16x32xf32>
    %469 = arith.mulf %459, %468 : vector<16x32xf32>
    %470 = vector.broadcast %451 : vector<1x32xf32> to vector<16x32xf32>
    %471 = arith.mulf %469, %470 : vector<16x32xf32>
    %472 = vector.broadcast %453 : vector<1x32xf32> to vector<16x32xf32>
    %473 = arith.addf %471, %472 : vector<16x32xf32>
    %c1_169 = arith.constant 1 : index
    %c0_170 = arith.constant 0 : index
    %c0_171 = arith.constant 0 : index
    %474 = vector.load %arg10[%c1_169, %c0_170, %c0_171] : memref<2x32x64xbf16, #tpu.memory_space<vmem>>, vector<1x32x64xbf16>
    %475 = vector.shape_cast %474 : vector<1x32x64xbf16> to vector<32x64xbf16>
    %476 = arith.truncf %473 : vector<16x32xf32> to vector<16x32xbf16>
    %cst_172 = arith.constant dense<0.000000e+00> : vector<16x64xf32>
    %477 = tpu.matmul %476, %475, %cst_172 {dimension_numbers = #tpu.dot_dimension_numbers<[1], [0], [0], [1], [0, 0, 1, 1], [], []>} : vector<16x32xbf16>, vector<32x64xbf16>, vector<16x64xf32> -> vector<16x64xf32>
    %c1_173 = arith.constant 1 : index
    %c0_174 = arith.constant 0 : index
    %c0_175 = arith.constant 0 : index
    %478 = vector.load %arg11[%c1_173, %c0_174, %c0_175] : memref<2x1x64xf32, #tpu.memory_space<vmem>>, vector<1x1x64xf32>
    %479 = vector.shape_cast %478 : vector<1x1x64xf32> to vector<1x64xf32>
    %480 = vector.broadcast %479 : vector<1x64xf32> to vector<16x64xf32>
    %481 = arith.addf %477, %480 : vector<16x64xf32>
    %cst_176 = arith.constant 5.000000e-01 : f32
    %482 = vector.broadcast %cst_176 : f32 to vector<16x64xf32>
    %483 = arith.mulf %482, %481 : vector<16x64xf32>
    %cst_177 = arith.constant 4.471500e-02 : f32
    %484 = vector.broadcast %cst_177 : f32 to vector<16x64xf32>
    %485 = arith.mulf %484, %481 : vector<16x64xf32>
    %486 = arith.mulf %485, %481 : vector<16x64xf32>
    %487 = arith.mulf %486, %481 : vector<16x64xf32>
    %488 = arith.addf %481, %487 : vector<16x64xf32>
    %cst_178 = arith.constant 0.797884583 : f32
    %489 = vector.broadcast %cst_178 : f32 to vector<16x64xf32>
    %490 = arith.mulf %489, %488 : vector<16x64xf32>
    %491 = math.tanh %490 : vector<16x64xf32>
    %cst_179 = arith.constant 1.000000e+00 : f32
    %492 = vector.broadcast %cst_179 : f32 to vector<16x64xf32>
    %493 = arith.addf %492, %491 : vector<16x64xf32>
    %494 = arith.mulf %483, %493 : vector<16x64xf32>
    %c1_180 = arith.constant 1 : index
    %c0_181 = arith.constant 0 : index
    %c0_182 = arith.constant 0 : index
    %495 = vector.load %arg12[%c1_180, %c0_181, %c0_182] : memref<2x64x32xbf16, #tpu.memory_space<vmem>>, vector<1x64x32xbf16>
    %496 = vector.shape_cast %495 : vector<1x64x32xbf16> to vector<64x32xbf16>
    %497 = arith.truncf %494 : vector<16x64xf32> to vector<16x64xbf16>
    %cst_183 = arith.constant dense<0.000000e+00> : vector<16x32xf32>
    %498 = tpu.matmul %497, %496, %cst_183 {dimension_numbers = #tpu.dot_dimension_numbers<[1], [0], [0], [1], [0, 0, 1, 1], [], []>} : vector<16x64xbf16>, vector<64x32xbf16>, vector<16x32xf32> -> vector<16x32xf32>
    %c1_184 = arith.constant 1 : index
    %c0_185 = arith.constant 0 : index
    %c0_186 = arith.constant 0 : index
    %499 = vector.load %arg13[%c1_184, %c0_185, %c0_186] : memref<2x1x32xf32, #tpu.memory_space<vmem>>, vector<1x1x32xf32>
    %500 = vector.shape_cast %499 : vector<1x1x32xf32> to vector<1x32xf32>
    %501 = vector.broadcast %500 : vector<1x32xf32> to vector<16x32xf32>
    %502 = arith.addf %498, %501 : vector<16x32xf32>
    %503 = arith.addf %502, %473 : vector<16x32xf32>
    %c1_187 = arith.constant 1 : index
    %c0_188 = arith.constant 0 : index
    %c0_189 = arith.constant 0 : index
    %504 = vector.load %arg14[%c1_187, %c0_188, %c0_189] : memref<2x1x32xf32, #tpu.memory_space<vmem>>, vector<1x1x32xf32>
    %505 = vector.shape_cast %504 : vector<1x1x32xf32> to vector<1x32xf32>
    %c1_190 = arith.constant 1 : index
    %c0_191 = arith.constant 0 : index
    %c0_192 = arith.constant 0 : index
    %506 = vector.load %arg15[%c1_190, %c0_191, %c0_192] : memref<2x1x32xf32, #tpu.memory_space<vmem>>, vector<1x1x32xf32>
    %507 = vector.shape_cast %506 : vector<1x1x32xf32> to vector<1x32xf32>
    %cst_193 = arith.constant dense<0.000000e+00> : vector<16xf32>
    %508 = vector.multi_reduction <add>, %503, %cst_193 [1] : vector<16x32xf32> to vector<16xf32>
    %509 = vector.shape_cast %508 : vector<16xf32> to vector<16x1xf32>
    %cst_194 = arith.constant 3.200000e+01 : f32
    %510 = vector.broadcast %cst_194 : f32 to vector<16x1xf32>
    %511 = arith.divf %509, %510 : vector<16x1xf32>
    %512 = vector.broadcast %511 : vector<16x1xf32> to vector<16x32xf32>
    %513 = arith.subf %503, %512 : vector<16x32xf32>
    %514 = arith.mulf %513, %513 : vector<16x32xf32>
    %cst_195 = arith.constant dense<0.000000e+00> : vector<16xf32>
    %515 = vector.multi_reduction <add>, %514, %cst_195 [1] : vector<16x32xf32> to vector<16xf32>
    %516 = vector.shape_cast %515 : vector<16xf32> to vector<16x1xf32>
    %cst_196 = arith.constant 3.200000e+01 : f32
    %517 = vector.broadcast %cst_196 : f32 to vector<16x1xf32>
    %518 = arith.divf %516, %517 : vector<16x1xf32>
    %cst_197 = arith.constant 9.99999996E-13 : f32
    %519 = vector.broadcast %cst_197 : f32 to vector<16x1xf32>
    %520 = arith.addf %518, %519 : vector<16x1xf32>
    %521 = math.rsqrt %520 : vector<16x1xf32>
    %522 = vector.broadcast %521 : vector<16x1xf32> to vector<16x32xf32>
    %523 = arith.mulf %513, %522 : vector<16x32xf32>
    %524 = vector.broadcast %505 : vector<1x32xf32> to vector<16x32xf32>
    %525 = arith.mulf %523, %524 : vector<16x32xf32>
    %526 = vector.broadcast %507 : vector<1x32xf32> to vector<16x32xf32>
    %527 = arith.addf %525, %526 : vector<16x32xf32>
    %528 = vector.extract_strided_slice %527 {offsets = [0, 0], sizes = [1, 32], strides = [1, 1]} : vector<16x32xf32> to vector<1x32xf32>
    %529 = vector.extract_strided_slice %527 {offsets = [8, 0], sizes = [1, 32], strides = [1, 1]} : vector<16x32xf32> to vector<1x32xf32>
    %530 = tpu.concatenate %528, %529 in 0 : vector<1x32xf32>, vector<1x32xf32> -> vector<2x32xf32>
    %c0_198 = arith.constant 0 : index
    %c0_199 = arith.constant 0 : index
    %531 = vector.load %arg16[%c0_198, %c0_199] : memref<32x32xbf16, #tpu.memory_space<vmem>>, vector<32x32xbf16>
    %532 = arith.truncf %530 : vector<2x32xf32> to vector<2x32xbf16>
    %cst_200 = arith.constant dense<0.000000e+00> : vector<2x32xf32>
    %533 = tpu.matmul %532, %531, %cst_200 {dimension_numbers = #tpu.dot_dimension_numbers<[1], [0], [0], [1], [0, 0, 1, 1], [], []>} : vector<2x32xbf16>, vector<32x32xbf16>, vector<2x32xf32> -> vector<2x32xf32>
    %c0_201 = arith.constant 0 : index
    %c0_202 = arith.constant 0 : index
    %534 = vector.load %arg17[%c0_201, %c0_202] : memref<1x32xf32, #tpu.memory_space<vmem>>, vector<1x32xf32>
    %535 = vector.broadcast %534 : vector<1x32xf32> to vector<2x32xf32>
    %536 = arith.addf %533, %535 : vector<2x32xf32>
    %537 = math.tanh %536 : vector<2x32xf32>
    %c0_203 = arith.constant 0 : index
    %c0_204 = arith.constant 0 : index
    %538 = vector.load %arg18[%c0_203, %c0_204] : memref<1x32xf32, #tpu.memory_space<vmem>>, vector<1x32xf32>
    %539 = vector.broadcast %538 : vector<1x32xf32> to vector<2x32xf32>
    %540 = arith.mulf %537, %539 : vector<2x32xf32>
    %cst_205 = arith.constant dense<0.000000e+00> : vector<2xf32>
    %541 = vector.multi_reduction <add>, %540, %cst_205 [1] : vector<2x32xf32> to vector<2xf32>
    %542 = vector.shape_cast %541 : vector<2xf32> to vector<2x1xf32>
    %c0_206 = arith.constant 0 : index
    %c0_207 = arith.constant 0 : index
    %543 = vector.load %arg19[%c0_206, %c0_207] : memref<1x1xf32, #tpu.memory_space<vmem>>, vector<1x1xf32>
    %544 = vector.broadcast %543 : vector<1x1xf32> to vector<2x1xf32>
    %545 = arith.addf %542, %544 : vector<2x1xf32>
    %cst_208 = arith.constant 0.000000e+00 : f32
    %546 = vector.broadcast %cst_208 : f32 to vector<2x1xf32>
    %547 = arith.subf %546, %545 : vector<2x1xf32>
    %548 = math.exp %547 : vector<2x1xf32>
    %cst_209 = arith.constant 1.000000e+00 : f32
    %549 = vector.broadcast %cst_209 : f32 to vector<2x1xf32>
    %550 = arith.addf %549, %548 : vector<2x1xf32>
    %cst_210 = arith.constant 1.000000e+00 : f32
    %551 = vector.broadcast %cst_210 : f32 to vector<2x1xf32>
    %552 = arith.divf %551, %550 : vector<2x1xf32>
    %c0_211 = arith.constant 0 : index
    %c0_212 = arith.constant 0 : index
    %553 = vector.load %arg20[%c0_211, %c0_212] : memref<2x1xf32, #tpu.memory_space<vmem>>, vector<2x1xf32>
    tpu.vector_store %arg20[%c0_211, %c0_212], %552 {strides = array<i32>} : memref<2x1xf32, #tpu.memory_space<vmem>>, vector<2x1xf32>,
    return
  }
}

</mosaic_0001>

<llo_original>
// kernel: bert_classifier_forward.1
$region0: #{bert_classifier_forward.1}
  #allocation0 [shape = 'u32[]', space=smem, size = 0x4, offset = 0x4, fixed_abs, tag = 'smem constant byte address 0x4 - core index']
  #allocation1 [shape = 'u32[144,128]{1,0:T(1,128)}', space=vmem, size = 0x12000, scoped, tag = 'internal scratch']
  #allocation2 [shape = 'f32[1,1]{1,0:T(1,128)S(1)}', space=vmem, size = 0x200, scoped, tag = 'scoped memory for bert_classifier_forward.1']
  %s0 = inlined_call_operand.vmem [shape: f32[16,32], index: 0, kind: input, shape index: {}]
  %s1 = inlined_call_operand.vmem [shape: f32[2,8], index: 1, kind: input, shape index: {}]
  %s2 = inlined_call_operand.vmem [shape: f32[1,32], index: 2, kind: input, shape index: {}]
  %s3 = inlined_call_operand.vmem [shape: f32[1,32], index: 3, kind: input, shape index: {}]
  %s4 = inlined_call_operand.vmem [shape: bf16[2,32,96], index: 4, kind: input, shape index: {}]
  %s5 = inlined_call_operand.vmem [shape: f32[2,1,96], index: 5, kind: input, shape index: {}]
  %s6 = inlined_call_operand.vmem [shape: bf16[2,32,32], index: 6, kind: input, shape index: {}]
  %s7 = inlined_call_operand.vmem [shape: f32[2,1,32], index: 7, kind: input, shape index: {}]
  %s8 = inlined_call_operand.vmem [shape: f32[2,1,32], index: 8, kind: input, shape index: {}]
  %s9 = inlined_call_operand.vmem [shape: f32[2,1,32], index: 9, kind: input, shape index: {}]
  %s10 = inlined_call_operand.vmem [shape: bf16[2,32,64], index: 10, kind: input, shape index: {}]
  %s11 = inlined_call_operand.vmem [shape: f32[2,1,64], index: 11, kind: input, shape index: {}]
  %s12 = inlined_call_operand.vmem [shape: bf16[2,64,32], index: 12, kind: input, shape index: {}]
  %s13 = inlined_call_operand.vmem [shape: f32[2,1,32], index: 13, kind: input, shape index: {}]
  %s14 = inlined_call_operand.vmem [shape: f32[2,1,32], index: 14, kind: input, shape index: {}]
  %s15 = inlined_call_operand.vmem [shape: f32[2,1,32], index: 15, kind: input, shape index: {}]
  %s16 = inlined_call_operand.vmem [shape: bf16[32,32], index: 16, kind: input, shape index: {}]
  %s17 = inlined_call_operand.vmem [shape: f32[1,32], index: 17, kind: input, shape index: {}]
  %s18 = inlined_call_operand.vmem [shape: f32[1,32], index: 18, kind: input, shape index: {}]
  %s19 = inlined_call_operand.<no memory space> [shape: f32[1,1], index: 19, kind: input, shape index: {}]
  %s20 = inlined_call_operand.vmem [shape: f32[2,1], index: 20, kind: output, shape index: {}]
  %s21 = sld [smem:[#allocation0]]
  $region90: #{bert_classifier_forward.1} parent=0
    _
  %s23 = ssub.s32 1, %s21
  %s24 = scalar_select 0, %s23, %s21
  %v25 = vstv %s19
  %26 = vst [vmem:[#allocation2] sm:$0x1] %v25
  // Predicated region
  $region2: #{bert_classifier_forward.1} parent=0 // pred_check
    _
  $region3: #{bert_classifier_forward.1} parent=0 // pred_check_branch
    %28 = sbr.rel (0) target = $region5
  $region4: #{bert_classifier_forward.1} parent=0 // pred_region
    _
  $region5: #{bert_classifier_forward.1} parent=0 // pred_fallthru
    _
  // Predicated region
  $region6: #{bert_classifier_forward.1} parent=0 // pred_check
    _
  $region7: #{bert_classifier_forward.1} parent=0 // pred_check_branch
    %30 = sbr.rel (0) target = $region9
  $region8: #{bert_classifier_forward.1} parent=0 // pred_region
    _
  $region9: #{bert_classifier_forward.1} parent=0 // pred_fallthru
    _
  // Predicated region
  $region10: #{bert_classifier_forward.1} parent=0 // pred_check
    _
  $region11: #{bert_classifier_forward.1} parent=0 // pred_check_branch
    %32 = sbr.rel (0) target = $region13
  $region12: #{bert_classifier_forward.1} parent=0 // pred_region
    _
  $region13: #{bert_classifier_forward.1} parent=0 // pred_fallthru
    _
  // Predicated region
  $region14: #{bert_classifier_forward.1} parent=0 // pred_check
    _
  $region15: #{bert_classifier_forward.1} parent=0 // pred_check_branch
    %34 = sbr.rel (0) target = $region17
  $region16: #{bert_classifier_forward.1} parent=0 // pred_region
    _
  $region17: #{bert_classifier_forward.1} parent=0 // pred_fallthru
    _
  // Predicated region
  $region18: #{bert_classifier_forward.1} parent=0 // pred_check
    _
  $region19: #{bert_classifier_forward.1} parent=0 // pred_check_branch
    %36 = sbr.rel (0) target = $region21
  $region20: #{bert_classifier_forward.1} parent=0 // pred_region
    _
  $region21: #{bert_classifier_forward.1} parent=0 // pred_fallthru
    _
  // Predicated region
  $region22: #{bert_classifier_forward.1} parent=0 // pred_check
    _
  $region23: #{bert_classifier_forward.1} parent=0 // pred_check_branch
    %38 = sbr.rel (0) target = $region25
  $region24: #{bert_classifier_forward.1} parent=0 // pred_region
    _
  $region25: #{bert_classifier_forward.1} parent=0 // pred_fallthru
    _
  // Predicated region
  $region26: #{bert_classifier_forward.1} parent=0 // pred_check
    _
  $region27: #{bert_classifier_forward.1} parent=0 // pred_check_branch
    %40 = sbr.rel (0) target = $region29
  $region28: #{bert_classifier_forward.1} parent=0 // pred_region
    _
  $region29: #{bert_classifier_forward.1} parent=0 // pred_fallthru
    _
  // Predicated region
  $region30: #{bert_classifier_forward.1} parent=0 // pred_check
    _
  $region31: #{bert_classifier_forward.1} parent=0 // pred_check_branch
    %42 = sbr.rel (0) target = $region33
  $region32: #{bert_classifier_forward.1} parent=0 // pred_region
    _
  $region33: #{bert_classifier_forward.1} parent=0 // pred_fallthru
    _
  // Predicated region
  $region34: #{bert_classifier_forward.1} parent=0 // pred_check
    _
  $region35: #{bert_classifier_forward.1} parent=0 // pred_check_branch
    %44 = sbr.rel (0) target = $region37
  $region36: #{bert_classifier_forward.1} parent=0 // pred_region
    _
  $region37: #{bert_classifier_forward.1} parent=0 // pred_fallthru
    _
  // Predicated region
  $region38: #{bert_classifier_forward.1} parent=0 // pred_check
    _
  $region39: #{bert_classifier_forward.1} parent=0 // pred_check_branch
    %46 = sbr.rel (0) target = $region41
  $region40: #{bert_classifier_forward.1} parent=0 // pred_region
    _
  $region41: #{bert_classifier_forward.1} parent=0 // pred_fallthru
    _
  // Predicated region
  $region42: #{bert_classifier_forward.1} parent=0 // pred_check
    _
  $region43: #{bert_classifier_forward.1} parent=0 // pred_check_branch
    %48 = sbr.rel (0) target = $region45
  $region44: #{bert_classifier_forward.1} parent=0 // pred_region
    _
  $region45: #{bert_classifier_forward.1} parent=0 // pred_fallthru
    _
  // Predicated region
  $region46: #{bert_classifier_forward.1} parent=0 // pred_check
    _
  $region47: #{bert_classifier_forward.1} parent=0 // pred_check_branch
    %50 = sbr.rel (0) target = $region49
  $region48: #{bert_classifier_forward.1} parent=0 // pred_region
    _
  $region49: #{bert_classifier_forward.1} parent=0 // pred_fallthru
    _
  // Predicated region
  $region50: #{bert_classifier_forward.1} parent=0 // pred_check
    _
  $region51: #{bert_classifier_forward.1} parent=0 // pred_check_branch
    %52 = sbr.rel (0) target = $region53
  $region52: #{bert_classifier_forward.1} parent=0 // pred_region
    _
  $region53: #{bert_classifier_forward.1} parent=0 // pred_fallthru
    _
  // Predicated region
  $region54: #{bert_classifier_forward.1} parent=0 // pred_check
    _
  $region55: #{bert_classifier_forward.1} parent=0 // pred_check_branch
    %54 = sbr.rel (0) target = $region57
  $region56: #{bert_classifier_forward.1} parent=0 // pred_region
    _
  $region57: #{bert_classifier_forward.1} parent=0 // pred_fallthru
    _
  // Predicated region
  $region58: #{bert_classifier_forward.1} parent=0 // pred_check
    _
  $region59: #{bert_classifier_forward.1} parent=0 // pred_check_branch
    %56 = sbr.rel (0) target = $region61
  $region60: #{bert_classifier_forward.1} parent=0 // pred_region
    _
  $region61: #{bert_classifier_forward.1} parent=0 // pred_fallthru
    _
  // Predicated region
  $region62: #{bert_classifier_forward.1} parent=0 // pred_check
    _
  $region63: #{bert_classifier_forward.1} parent=0 // pred_check_branch
    %58 = sbr.rel (0) target = $region65
  $region64: #{bert_classifier_forward.1} parent=0 // pred_region
    _
  $region65: #{bert_classifier_forward.1} parent=0 // pred_fallthru
    _
  // Predicated region
  $region66: #{bert_classifier_forward.1} parent=0 // pred_check
    _
  $region67: #{bert_classifier_forward.1} parent=0 // pred_check_branch
    %60 = sbr.rel (0) target = $region69
  $region68: #{bert_classifier_forward.1} parent=0 // pred_region
    _
  $region69: #{bert_classifier_forward.1} parent=0 // pred_fallthru
    _
  // Predicated region
  $region70: #{bert_classifier_forward.1} parent=0 // pred_check
    _
  $region71: #{bert_classifier_forward.1} parent=0 // pred_check_branch
    %62 = sbr.rel (0) target = $region73
  $region72: #{bert_classifier_forward.1} parent=0 // pred_region
    _
  $region73: #{bert_classifier_forward.1} parent=0 // pred_fallthru
    _
  // Predicated region
  $region74: #{bert_classifier_forward.1} parent=0 // pred_check
    _
  $region75: #{bert_classifier_forward.1} parent=0 // pred_check_branch
    %64 = sbr.rel (0) target = $region77
  $region76: #{bert_classifier_forward.1} parent=0 // pred_region
    _
  $region77: #{bert_classifier_forward.1} parent=0 // pred_fallthru
    _
  // Predicated region
  $region78: #{bert_classifier_forward.1} parent=0 // pred_check
    _
  $region79: #{bert_classifier_forward.1} parent=0 // pred_check_branch
    %66 = sbr.rel (0) target = $region81
  $region80: #{bert_classifier_forward.1} parent=0 // pred_region
    _
  $region81: #{bert_classifier_forward.1} parent=0 // pred_fallthru
    _
  %v68 = vld [vmem:[%s1] sm:$0x3]
  %v69 = vld [vmem:[%s0] sm:$0xff]
  %v70 = vld [vmem:[%s0 + $0x8] sm:$0xff]
  %v71 = vld [vmem:[%s2] sm:$0x1]
  %v72 = vld [vmem:[%s3] sm:$0x1]
  %vm73 = vcmask 261120
  %v74 = vsel %vm73, %v69, 0.0
  %75 = vadd.xlane.f32.xlu0 %v74
  %v76 = vpop.xlane.xlu0 %75
  %v77 = vsel %vm73, %v70, 0.0
  %78 = vadd.xlane.f32.xlu0 %v77
  %v79 = vpop.xlane.xlu0 %78
  %v80 = vrcp.pop 32.0
  %v81 = vmul.f32 %v76, %v80
  %v82 = vmul.f32 %v79, %v80
  %v83 = vsub.f32 %v69, %v81
  %v84 = vsub.f32 %v70, %v82
  %v85 = vmul.f32 %v83, %v83
  %v86 = vmul.f32 %v84, %v84
  %v87 = vsel %vm73, %v85, 0.0
  %88 = vadd.xlane.f32.xlu0 %v87
  %v89 = vpop.xlane.xlu0 %88
  %v90 = vsel %vm73, %v86, 0.0
  %91 = vadd.xlane.f32.xlu0 %v90
  %v92 = vpop.xlane.xlu0 %91
  %v93 = vmul.f32 %v89, %v80
  %v94 = vmul.f32 %v92, %v80
  %v95 = vadd.f32 %v93, 1e-12
  %v96 = vadd.f32 %v94, 1e-12
  %v97 = vrsqrt.pop %v95
  %v98 = vrsqrt.pop %v96
  %v99 = vmul.f32 %v83, %v97
  %v100 = vmul.f32 %v84, %v98
  %v102 = vlaneseq
  %v103 = vshrl.u32 %v102, 7
  %v104 = vsub.s32 0, %v103
  %v105 = vrot.slane %v71, %v104
  %v107 = vmul.f32 %v99, %v105
  %v108 = vmul.f32 %v100, %v105
  %v110 = vlaneseq
  %v111 = vshrl.u32 %v110, 7
  %v112 = vsub.s32 0, %v111
  %v113 = vrot.slane %v72, %v112
  %v115 = vadd.f32 %v107, %v113
  %v116 = vadd.f32 %v108, %v113
  %v117 = vld [vmem:[%s4] sm:$0xf]
  %v118 = vld [vmem:[%s4 + $0x4] sm:$0xf]
  %v119 = vld [vmem:[%s4 + $0x8] sm:$0xf]
  %v120 = vld [vmem:[%s4 + $0xc] sm:$0xf]
  %v121 = vpack.c.bf16 %v116, %v115
  %v122 = vld [vmem:[%s5] sm:$0x1]
  %v124 = vlaneseq
  %v125 = vshrl.u32 %v124, 7
  %v126 = vsub.s32 0, %v125
  %v127 = vrot.slane %v122, %v126
  %v133 = vunpack.c.l.b16 %v117
  %v134 = vunpack.c.l.b16 %v118
  %v135 = vunpack.c.l.b16 %v119
  %v136 = vunpack.c.l.b16 %v120
  %v137 = vpack.c.b16 %v134, %v133
  %v138 = vpack.c.b16 %v136, %v135
  %v142 = vsel %vm73, %v121, 0
  %144 = vmatprep.subr.bf16.mxu0 0
  %145 = vmatpush1.bf16.msra.mxu0 0
  %146 = vmatprep.subr.bf16.mxu0 0
  %147 = vmatpush1.bf16.msra.mxu0 0
  %148 = vmatprep.subr.bf16.mxu0 0
  %149 = vmatpush1.bf16.msra.mxu0 0
  %150 = vmatprep.subr.bf16.mxu0 0
  %151 = vmatpush1.bf16.msra.mxu0 0
  %152 = vmatprep.subr.bf16.mxu0 0
  %153 = vmatpush1.bf16.msra.mxu0 0
  %154 = vmatprep.subr.bf16.mxu0 0
  %155 = vmatpush1.bf16.msra.mxu0 0
  %156 = vmatprep.subr.bf16.mxu0 0
  %157 = vmatpush1.bf16.msra.mxu0 %v138
  %158 = vmatprep.subr.bf16.mxu0 0
  %159 = vmatpush1.bf16.msra.mxu0 %v137
  %160 = vmatprep.subr.bf16.mxu0 0
  %161 = vmatpush2.bf16.msra.mxu0 0
  %162 = vmatprep.subr.bf16.mxu0 0
  %163 = vmatpush2.bf16.msra.mxu0 0
  %164 = vmatprep.subr.bf16.mxu0 0
  %165 = vmatpush2.bf16.msra.mxu0 0
  %166 = vmatprep.subr.bf16.mxu0 0
  %167 = vmatpush2.bf16.msra.mxu0 0
  %168 = vmatprep.subr.bf16.mxu0 0
  %169 = vmatpush2.bf16.msra.mxu0 0
  %170 = vmatprep.subr.bf16.mxu0 0
  %171 = vmatpush2.bf16.msra.mxu0 0
  %172 = vmatprep.subr.bf16.mxu0 0
  %173 = vmatpush2.bf16.msra.mxu0 0
  %174 = vmatprep.subr.bf16.mxu0 0
  %175 = vmatpush2.bf16.msra.mxu0 0
  %176 = vmatprep.mubr.bf16.mxu0 0
  %177 = vmatmul.mubr.bf16.gmra.mxu0 %v142
  %v178 = vpop.f32.mrf.mxu0
  %v179 = vadd.f32 %v127, %v178
  %v180 = vpop.f32.mrf.mxu0
  %v181 = vpop.f32.mrf.mxu0
  %v182 = vadd.f32 %v127, %v181
  %v183 = vpop.f32.mrf.mxu0
  %184 = vdwg.mxu0
  %186 = vrot.lane.b32.xlu0 %v179, 96
  %v187 = vpop.permute.xlu0 %186
  %vm188 = vcmask 64512
  %v189 = vsel %vm188, %v179, 0
  %v191 = vsel %vm188, %v187, 0
  %193 = vmatprep.subr.mxu0 0.0
  %194 = vmatpush1.xpose.msra.mxu0 0.0
  %195 = vmatprep.subr.mxu0 0.0
  %196 = vmatpush1.xpose.msra.mxu0 0.0
  %197 = vmatprep.subr.mxu0 0.0
  %198 = vmatpush1.xpose.msra.mxu0 0.0
  %199 = vmatprep.subr.mxu0 0.0
  %200 = vmatpush1.xpose.msra.mxu0 0.0
  %201 = vmatprep.subr.mxu0 0.0
  %202 = vmatpush1.xpose.msra.mxu0 0.0
  %203 = vmatprep.subr.mxu0 0.0
  %204 = vmatpush1.xpose.msra.mxu0 0.0
  %205 = vmatprep.subr.mxu0 0.0
  %206 = vmatpush1.xpose.msra.mxu0 0.0
  %207 = vmatprep.subr.mxu0 0.0
  %208 = vmatpush1.xpose.msra.mxu0 0.0
  %209 = vmatprep.subr.mxu0 0.0
  %210 = vmatpush1.xpose.msra.mxu0 0.0
  %211 = vmatprep.subr.mxu0 0.0
  %212 = vmatpush1.xpose.msra.mxu0 0.0
  %213 = vmatprep.subr.mxu0 0.0
  %214 = vmatpush1.xpose.msra.mxu0 0.0
  %215 = vmatprep.subr.mxu0 0.0
  %216 = vmatpush1.xpose.msra.mxu0 0.0
  %217 = vmatprep.subr.mxu0 0.0
  %218 = vmatpush1.xpose.msra.mxu0 0.0
  %219 = vmatprep.subr.mxu0 0.0
  %220 = vmatpush1.xpose.msra.mxu0 0.0
  %221 = vmatprep.subr.mxu0 0.0
  %222 = vmatpush1.xpose.msra.mxu0 0.0
  %223 = vmatprep.subr.mxu0 0.0
  %224 = vmatpush1.xpose.msra.mxu0 %v191
  %225 = vmatprep.subr.mxu0 0.0
  %226 = vmatpush2.xpose.msra.mxu0 0.0
  %227 = vmatprep.subr.mxu0 0.0
  %228 = vmatpush2.xpose.msra.mxu0 0.0
  %229 = vmatprep.subr.mxu0 0.0
  %230 = vmatpush2.xpose.msra.mxu0 0.0
  %231 = vmatprep.subr.mxu0 0.0
  %232 = vmatpush2.xpose.msra.mxu0 0.0
  %233 = vmatprep.subr.mxu0 0.0
  %234 = vmatpush2.xpose.msra.mxu0 0.0
  %235 = vmatprep.subr.mxu0 0.0
  %236 = vmatpush2.xpose.msra.mxu0 0.0
  %237 = vmatprep.subr.mxu0 0.0
  %238 = vmatpush2.xpose.msra.mxu0 0.0
  %239 = vmatprep.subr.mxu0 0.0
  %240 = vmatpush2.xpose.msra.mxu0 0.0
  %241 = vmatprep.subr.mxu0 0.0
  %242 = vmatpush2.xpose.msra.mxu0 0.0
  %243 = vmatprep.subr.mxu0 0.0
  %244 = vmatpush2.xpose.msra.mxu0 0.0
  %245 = vmatprep.subr.mxu0 0.0
  %246 = vmatpush2.xpose.msra.mxu0 0.0
  %247 = vmatprep.subr.mxu0 0.0
  %248 = vmatpush2.xpose.msra.mxu0 0.0
  %249 = vmatprep.subr.mxu0 0.0
  %250 = vmatpush2.xpose.msra.mxu0 0.0
  %251 = vmatprep.subr.mxu0 0.0
  %252 = vmatpush2.xpose.msra.mxu0 0.0
  %253 = vmatprep.subr.mxu0 0.0
  %254 = vmatpush2.xpose.msra.mxu0 0.0
  %255 = vmatprep.subr.mxu0 0.0
  %256 = vmatpush2.xpose.msra.mxu0 0.0
  %257 = vmatprep.mubr.f32.mxu0 0.0
  %258 = vmatmul.mubr.f32.gmra.mxu0 %v189
  %v259 = vpop.f32.mrf.mxu0
  %v260 = vadd.f32 0.0, %v259
  %v261 = vpop.f32.mrf.mxu0
  %262 = vdwg.mxu0
  %v263 = vmul.f32 %v260, 0.35355338
  %v264 = vlaneseq
  %v265 = vshrl.u32 %v264, 7
  %v266 = vsub.s32 0, %v265
  %v267 = vrot.slane %v68, %v266
  %v268 = vadd.f32 %v263, %v267
  %v269 = vsel %vm188, %v268, -inf
  %270 = vmax.xlane.f32.xlu0 %v269
  %v271 = vpop.xlane.xlu0 %270
  %v272 = vsub.f32 %v268, %v271
  %v273 = vmul.f32 %v272, 1.442695
  %v274 = vpow.pop %v273
  %v275 = vsel %vm188, %v274, 0.0
  %276 = vadd.xlane.f32.xlu0 %v275
  %v277 = vpop.xlane.xlu0 %276
  %v278 = vrcp.pop %v277
  %v279 = vmul.f32 %v274, %v278
  %280 = vrot.lane.b32.xlu0 %v179, 64
  %v281 = vpop.permute.xlu0 %280
  %v284 = vsel %vm188, %v279, 0
  %286 = vmatprep.subr.mxu0 0.0
  %287 = vmatpush1.msra.mxu0 0.0
  %288 = vmatprep.subr.mxu0 0.0
  %289 = vmatpush1.msra.mxu0 0.0
  %290 = vmatprep.subr.mxu0 0.0
  %291 = vmatpush1.msra.mxu0 0.0
  %292 = vmatprep.subr.mxu0 0.0
  %293 = vmatpush1.msra.mxu0 0.0
  %294 = vmatprep.subr.mxu0 0.0
  %295 = vmatpush1.msra.mxu0 0.0
  %296 = vmatprep.subr.mxu0 0.0
  %297 = vmatpush1.msra.mxu0 0.0
  %298 = vmatprep.subr.mxu0 0.0
  %299 = vmatpush1.msra.mxu0 0.0
  %300 = vmatprep.subr.mxu0 0.0
  %301 = vmatpush1.msra.mxu0 0.0
  %302 = vmatprep.subr.mxu0 0.0
  %303 = vmatpush1.msra.mxu0 0.0
  %304 = vmatprep.subr.mxu0 0.0
  %305 = vmatpush1.msra.mxu0 0.0
  %306 = vmatprep.subr.mxu0 0.0
  %307 = vmatpush1.msra.mxu0 0.0
  %308 = vmatprep.subr.mxu0 0.0
  %309 = vmatpush1.msra.mxu0 0.0
  %310 = vmatprep.subr.mxu0 0.0
  %311 = vmatpush1.msra.mxu0 0.0
  %312 = vmatprep.subr.mxu0 0.0
  %313 = vmatpush1.msra.mxu0 0.0
  %314 = vmatprep.subr.mxu0 0.0
  %315 = vmatpush1.msra.mxu0 0.0
  %316 = vmatprep.subr.mxu0 0.0
  %317 = vmatpush1.msra.mxu0 %v281
  %318 = vmatprep.subr.mxu0 0.0
  %319 = vmatpush2.msra.mxu0 0.0
  %320 = vmatprep.subr.mxu0 0.0
  %321 = vmatpush2.msra.mxu0 0.0
  %322 = vmatprep.subr.mxu0 0.0
  %323 = vmatpush2.msra.mxu0 0.0
  %324 = vmatprep.subr.mxu0 0.0
  %325 = vmatpush2.msra.mxu0 0.0
  %326 = vmatprep.subr.mxu0 0.0
  %327 = vmatpush2.msra.mxu0 0.0
  %328 = vmatprep.subr.mxu0 0.0
  %329 = vmatpush2.msra.mxu0 0.0
  %330 = vmatprep.subr.mxu0 0.0
  %331 = vmatpush2.msra.mxu0 0.0
  %332 = vmatprep.subr.mxu0 0.0
  %333 = vmatpush2.msra.mxu0 0.0
  %334 = vmatprep.subr.mxu0 0.0
  %335 = vmatpush2.msra.mxu0 0.0
  %336 = vmatprep.subr.mxu0 0.0
  %337 = vmatpush2.msra.mxu0 0.0
  %338 = vmatprep.subr.mxu0 0.0
  %339 = vmatpush2.msra.mxu0 0.0
  %340 = vmatprep.subr.mxu0 0.0
  %341 = vmatpush2.msra.mxu0 0.0
  %342 = vmatprep.subr.mxu0 0.0
  %343 = vmatpush2.msra.mxu0 0.0
  %344 = vmatprep.subr.mxu0 0.0
  %345 = vmatpush2.msra.mxu0 0.0
  %346 = vmatprep.subr.mxu0 0.0
  %347 = vmatpush2.msra.mxu0 0.0
  %348 = vmatprep.subr.mxu0 0.0
  %349 = vmatpush2.msra.mxu0 0.0
  %350 = vmatprep.mubr.f32.mxu0 0.0
  %351 = vmatmul.mubr.f32.gmra.mxu0 %v284
  %v352 = vpop.f32.mrf.mxu0
  %v353 = vadd.f32 0.0, %v352
  %v354 = vpop.f32.mrf.mxu0
  %355 = vdwg.mxu0
  %356 = vrot.lane.b32.xlu0 %v179, 120
  %v357 = vpop.permute.xlu0 %356
  %358 = vrot.lane.b32.xlu0 %v179, 88
  %v359 = vpop.permute.xlu0 %358
  %v360 = vsel %vm188, %v357, 0
  %v362 = vsel %vm188, %v359, 0
  %364 = vmatprep.subr.mxu0 0.0
  %365 = vmatpush1.xpose.msra.mxu0 0.0
  %366 = vmatprep.subr.mxu0 0.0
  %367 = vmatpush1.xpose.msra.mxu0 0.0
  %368 = vmatprep.subr.mxu0 0.0
  %369 = vmatpush1.xpose.msra.mxu0 0.0
  %370 = vmatprep.subr.mxu0 0.0
  %371 = vmatpush1.xpose.msra.mxu0 0.0
  %372 = vmatprep.subr.mxu0 0.0
  %373 = vmatpush1.xpose.msra.mxu0 0.0
  %374 = vmatprep.subr.mxu0 0.0
  %375 = vmatpush1.xpose.msra.mxu0 0.0
  %376 = vmatprep.subr.mxu0 0.0
  %377 = vmatpush1.xpose.msra.mxu0 0.0
  %378 = vmatprep.subr.mxu0 0.0
  %379 = vmatpush1.xpose.msra.mxu0 0.0
  %380 = vmatprep.subr.mxu0 0.0
  %381 = vmatpush1.xpose.msra.mxu0 0.0
  %382 = vmatprep.subr.mxu0 0.0
  %383 = vmatpush1.xpose.msra.mxu0 0.0
  %384 = vmatprep.subr.mxu0 0.0
  %385 = vmatpush1.xpose.msra.mxu0 0.0
  %386 = vmatprep.subr.mxu0 0.0
  %387 = vmatpush1.xpose.msra.mxu0 0.0
  %388 = vmatprep.subr.mxu0 0.0
  %389 = vmatpush1.xpose.msra.mxu0 0.0
  %390 = vmatprep.subr.mxu0 0.0
  %391 = vmatpush1.xpose.msra.mxu0 0.0
  %392 = vmatprep.subr.mxu0 0.0
  %393 = vmatpush1.xpose.msra.mxu0 0.0
  %394 = vmatprep.subr.mxu0 0.0
  %395 = vmatpush1.xpose.msra.mxu0 %v362
  %396 = vmatprep.subr.mxu0 0.0
  %397 = vmatpush2.xpose.msra.mxu0 0.0
  %398 = vmatprep.subr.mxu0 0.0
  %399 = vmatpush2.xpose.msra.mxu0 0.0
  %400 = vmatprep.subr.mxu0 0.0
  %401 = vmatpush2.xpose.msra.mxu0 0.0
  %402 = vmatprep.subr.mxu0 0.0
  %403 = vmatpush2.xpose.msra.mxu0 0.0
  %404 = vmatprep.subr.mxu0 0.0
  %405 = vmatpush2.xpose.msra.mxu0 0.0
  %406 = vmatprep.subr.mxu0 0.0
  %407 = vmatpush2.xpose.msra.mxu0 0.0
  %408 = vmatprep.subr.mxu0 0.0
  %409 = vmatpush2.xpose.msra.mxu0 0.0
  %410 = vmatprep.subr.mxu0 0.0
  %411 = vmatpush2.xpose.msra.mxu0 0.0
  %412 = vmatprep.subr.mxu0 0.0
  %413 = vmatpush2.xpose.msra.mxu0 0.0
  %414 = vmatprep.subr.mxu0 0.0
  %415 = vmatpush2.xpose.msra.mxu0 0.0
  %416 = vmatprep.subr.mxu0 0.0
  %417 = vmatpush2.xpose.msra.mxu0 0.0
  %418 = vmatprep.subr.mxu0 0.0
  %419 = vmatpush2.xpose.msra.mxu0 0.0
  %420 = vmatprep.subr.mxu0 0.0
  %421 = vmatpush2.xpose.msra.mxu0 0.0
  %422 = vmatprep.subr.mxu0 0.0
  %423 = vmatpush2.xpose.msra.mxu0 0.0
  %424 = vmatprep.subr.mxu0 0.0
  %425 = vmatpush2.xpose.msra.mxu0 0.0
  %426 = vmatprep.subr.mxu0 0.0
  %427 = vmatpush2.xpose.msra.mxu0 0.0
  %428 = vmatprep.mubr.f32.mxu0 0.0
  %429 = vmatmul.mubr.f32.gmra.mxu0 %v360
  %v430 = vpop.f32.mrf.mxu0
  %v431 = vadd.f32 0.0, %v430
  %v432 = vpop.f32.mrf.mxu0
  %433 = vdwg.mxu0
  %v434 = vmul.f32 %v431, 0.35355338
  %v435 = vadd.f32 %v434, %v267
  %v436 = vsel %vm188, %v435, -inf
  %437 = vmax.xlane.f32.xlu0 %v436
  %v438 = vpop.xlane.xlu0 %437
  %v439 = vsub.f32 %v435, %v438
  %v440 = vmul.f32 %v439, 1.442695
  %v441 = vpow.pop %v440
  %v442 = vsel %vm188, %v441, 0.0
  %443 = vadd.xlane.f32.xlu0 %v442
  %v444 = vpop.xlane.xlu0 %443
  %v445 = vrcp.pop %v444
  %v446 = vmul.f32 %v441, %v445
  %447 = vrot.lane.b32.xlu0 %v179, 56
  %v448 = vpop.permute.xlu0 %447
  %v451 = vsel %vm188, %v446, 0
  %453 = vmatprep.subr.mxu0 0.0
  %454 = vmatpush1.msra.mxu0 0.0
  %455 = vmatprep.subr.mxu0 0.0
  %456 = vmatpush1.msra.mxu0 0.0
  %457 = vmatprep.subr.mxu0 0.0
  %458 = vmatpush1.msra.mxu0 0.0
  %459 = vmatprep.subr.mxu0 0.0
  %460 = vmatpush1.msra.mxu0 0.0
  %461 = vmatprep.subr.mxu0 0.0
  %462 = vmatpush1.msra.mxu0 0.0
  %463 = vmatprep.subr.mxu0 0.0
  %464 = vmatpush1.msra.mxu0 0.0
  %465 = vmatprep.subr.mxu0 0.0
  %466 = vmatpush1.msra.mxu0 0.0
  %467 = vmatprep.subr.mxu0 0.0
  %468 = vmatpush1.msra.mxu0 0.0
  %469 = vmatprep.subr.mxu0 0.0
  %470 = vmatpush1.msra.mxu0 0.0
  %471 = vmatprep.subr.mxu0 0.0
  %472 = vmatpush1.msra.mxu0 0.0
  %473 = vmatprep.subr.mxu0 0.0
  %474 = vmatpush1.msra.mxu0 0.0
  %475 = vmatprep.subr.mxu0 0.0
  %476 = vmatpush1.msra.mxu0 0.0
  %477 = vmatprep.subr.mxu0 0.0
  %478 = vmatpush1.msra.mxu0 0.0
  %479 = vmatprep.subr.mxu0 0.0
  %480 = vmatpush1.msra.mxu0 0.0
  %481 = vmatprep.subr.mxu0 0.0
  %482 = vmatpush1.msra.mxu0 0.0
  %483 = vmatprep.subr.mxu0 0.0
  %484 = vmatpush1.msra.mxu0 %v448
  %485 = vmatprep.subr.mxu0 0.0
  %486 = vmatpush2.msra.mxu0 0.0
  %487 = vmatprep.subr.mxu0 0.0
  %488 = vmatpush2.msra.mxu0 0.0
  %489 = vmatprep.subr.mxu0 0.0
  %490 = vmatpush2.msra.mxu0 0.0
  %491 = vmatprep.subr.mxu0 0.0
  %492 = vmatpush2.msra.mxu0 0.0
  %493 = vmatprep.subr.mxu0 0.0
  %494 = vmatpush2.msra.mxu0 0.0
  %495 = vmatprep.subr.mxu0 0.0
  %496 = vmatpush2.msra.mxu0 0.0
  %497 = vmatprep.subr.mxu0 0.0
  %498 = vmatpush2.msra.mxu0 0.0
  %499 = vmatprep.subr.mxu0 0.0
  %500 = vmatpush2.msra.mxu0 0.0
  %501 = vmatprep.subr.mxu0 0.0
  %502 = vmatpush2.msra.mxu0 0.0
  %503 = vmatprep.subr.mxu0 0.0
  %504 = vmatpush2.msra.mxu0 0.0
  %505 = vmatprep.subr.mxu0 0.0
  %506 = vmatpush2.msra.mxu0 0.0
  %507 = vmatprep.subr.mxu0 0.0
  %508 = vmatpush2.msra.mxu0 0.0
  %509 = vmatprep.subr.mxu0 0.0
  %510 = vmatpush2.msra.mxu0 0.0
  %511 = vmatprep.subr.mxu0 0.0
  %512 = vmatpush2.msra.mxu0 0.0
  %513 = vmatprep.subr.mxu0 0.0
  %514 = vmatpush2.msra.mxu0 0.0
  %515 = vmatprep.subr.mxu0 0.0
  %516 = vmatpush2.msra.mxu0 0.0
  %517 = vmatprep.mubr.f32.mxu0 0.0
  %518 = vmatmul.mubr.f32.gmra.mxu0 %v451
  %v519 = vpop.f32.mrf.mxu0
  %v520 = vadd.f32 0.0, %v519
  %v521 = vpop.f32.mrf.mxu0
  %522 = vdwg.mxu0
  %523 = vrot.lane.b32.xlu0 %v179, 112
  %v524 = vpop.permute.xlu0 %523
  %525 = vrot.lane.b32.xlu0 %v179, 80
  %v526 = vpop.permute.xlu0 %525
  %v527 = vsel %vm188, %v524, 0
  %v529 = vsel %vm188, %v526, 0
  %531 = vmatprep.subr.mxu0 0.0
  %532 = vmatpush1.xpose.msra.mxu0 0.0
  %533 = vmatprep.subr.mxu0 0.0
  %534 = vmatpush1.xpose.msra.mxu0 0.0
  %535 = vmatprep.subr.mxu0 0.0
  %536 = vmatpush1.xpose.msra.mxu0 0.0
  %537 = vmatprep.subr.mxu0 0.0
  %538 = vmatpush1.xpose.msra.mxu0 0.0
  %539 = vmatprep.subr.mxu0 0.0
  %540 = vmatpush1.xpose.msra.mxu0 0.0
  %541 = vmatprep.subr.mxu0 0.0
  %542 = vmatpush1.xpose.msra.mxu0 0.0
  %543 = vmatprep.subr.mxu0 0.0
  %544 = vmatpush1.xpose.msra.mxu0 0.0
  %545 = vmatprep.subr.mxu0 0.0
  %546 = vmatpush1.xpose.msra.mxu0 0.0
  %547 = vmatprep.subr.mxu0 0.0
  %548 = vmatpush1.xpose.msra.mxu0 0.0
  %549 = vmatprep.subr.mxu0 0.0
  %550 = vmatpush1.xpose.msra.mxu0 0.0
  %551 = vmatprep.subr.mxu0 0.0
  %552 = vmatpush1.xpose.msra.mxu0 0.0
  %553 = vmatprep.subr.mxu0 0.0
  %554 = vmatpush1.xpose.msra.mxu0 0.0
  %555 = vmatprep.subr.mxu0 0.0
  %556 = vmatpush1.xpose.msra.mxu0 0.0
  %557 = vmatprep.subr.mxu0 0.0
  %558 = vmatpush1.xpose.msra.mxu0 0.0
  %559 = vmatprep.subr.mxu0 0.0
  %560 = vmatpush1.xpose.msra.mxu0 0.0
  %561 = vmatprep.subr.mxu0 0.0
  %562 = vmatpush1.xpose.msra.mxu0 %v529
  %563 = vmatprep.subr.mxu0 0.0
  %564 = vmatpush2.xpose.msra.mxu0 0.0
  %565 = vmatprep.subr.mxu0 0.0
  %566 = vmatpush2.xpose.msra.mxu0 0.0
  %567 = vmatprep.subr.mxu0 0.0
  %568 = vmatpush2.xpose.msra.mxu0 0.0
  %569 = vmatprep.subr.mxu0 0.0
  %570 = vmatpush2.xpose.msra.mxu0 0.0
  %571 = vmatprep.subr.mxu0 0.0
  %572 = vmatpush2.xpose.msra.mxu0 0.0
  %573 = vmatprep.subr.mxu0 0.0
  %574 = vmatpush2.xpose.msra.mxu0 0.0
  %575 = vmatprep.subr.mxu0 0.0
  %576 = vmatpush2.xpose.msra.mxu0 0.0
  %577 = vmatprep.subr.mxu0 0.0
  %578 = vmatpush2.xpose.msra.mxu0 0.0
  %579 = vmatprep.subr.mxu0 0.0
  %580 = vmatpush2.xpose.msra.mxu0 0.0
  %581 = vmatprep.subr.mxu0 0.0
  %582 = vmatpush2.xpose.msra.mxu0 0.0
  %583 = vmatprep.subr.mxu0 0.0
  %584 = vmatpush2.xpose.msra.mxu0 0.0
  %585 = vmatprep.subr.mxu0 0.0
  %586 = vmatpush2.xpose.msra.mxu0 0.0
  %587 = vmatprep.subr.mxu0 0.0
  %588 = vmatpush2.xpose.msra.mxu0 0.0
  %589 = vmatprep.subr.mxu0 0.0
  %590 = vmatpush2.xpose.msra.mxu0 0.0
  %591 = vmatprep.subr.mxu0 0.0
  %592 = vmatpush2.xpose.msra.mxu0 0.0
  %593 = vmatprep.subr.mxu0 0.0
  %594 = vmatpush2.xpose.msra.mxu0 0.0
  %595 = vmatprep.mubr.f32.mxu0 0.0
  %596 = vmatmul.mubr.f32.gmra.mxu0 %v527
  %v597 = vpop.f32.mrf.mxu0
  %v598 = vadd.f32 0.0, %v597
  %v599 = vpop.f32.mrf.mxu0
  %600 = vdwg.mxu0
  %v601 = vmul.f32 %v598, 0.35355338
  %v602 = vadd.f32 %v601, %v267
  %v603 = vsel %vm188, %v602, -inf
  %604 = vmax.xlane.f32.xlu0 %v603
  %v605 = vpop.xlane.xlu0 %604
  %v606 = vsub.f32 %v602, %v605
  %v607 = vmul.f32 %v606, 1.442695
  %v608 = vpow.pop %v607
  %v609 = vsel %vm188, %v608, 0.0
  %610 = vadd.xlane.f32.xlu0 %v609
  %v611 = vpop.xlane.xlu0 %610
  %v612 = vrcp.pop %v611
  %v613 = vmul.f32 %v608, %v612
  %614 = vrot.lane.b32.xlu0 %v179, 48
  %v615 = vpop.permute.xlu0 %614
  %v618 = vsel %vm188, %v613, 0
  %620 = vmatprep.subr.mxu0 0.0
  %621 = vmatpush1.msra.mxu0 0.0
  %622 = vmatprep.subr.mxu0 0.0
  %623 = vmatpush1.msra.mxu0 0.0
  %624 = vmatprep.subr.mxu0 0.0
  %625 = vmatpush1.msra.mxu0 0.0
  %626 = vmatprep.subr.mxu0 0.0
  %627 = vmatpush1.msra.mxu0 0.0
  %628 = vmatprep.subr.mxu0 0.0
  %629 = vmatpush1.msra.mxu0 0.0
  %630 = vmatprep.subr.mxu0 0.0
  %631 = vmatpush1.msra.mxu0 0.0
  %632 = vmatprep.subr.mxu0 0.0
  %633 = vmatpush1.msra.mxu0 0.0
  %634 = vmatprep.subr.mxu0 0.0
  %635 = vmatpush1.msra.mxu0 0.0
  %636 = vmatprep.subr.mxu0 0.0
  %637 = vmatpush1.msra.mxu0 0.0
  %638 = vmatprep.subr.mxu0 0.0
  %639 = vmatpush1.msra.mxu0 0.0
  %640 = vmatprep.subr.mxu0 0.0
  %641 = vmatpush1.msra.mxu0 0.0
  %642 = vmatprep.subr.mxu0 0.0
  %643 = vmatpush1.msra.mxu0 0.0
  %644 = vmatprep.subr.mxu0 0.0
  %645 = vmatpush1.msra.mxu0 0.0
  %646 = vmatprep.subr.mxu0 0.0
  %647 = vmatpush1.msra.mxu0 0.0
  %648 = vmatprep.subr.mxu0 0.0
  %649 = vmatpush1.msra.mxu0 0.0
  %650 = vmatprep.subr.mxu0 0.0
  %651 = vmatpush1.msra.mxu0 %v615
  %652 = vmatprep.subr.mxu0 0.0
  %653 = vmatpush2.msra.mxu0 0.0
  %654 = vmatprep.subr.mxu0 0.0
  %655 = vmatpush2.msra.mxu0 0.0
  %656 = vmatprep.subr.mxu0 0.0
  %657 = vmatpush2.msra.mxu0 0.0
  %658 = vmatprep.subr.mxu0 0.0
  %659 = vmatpush2.msra.mxu0 0.0
  %660 = vmatprep.subr.mxu0 0.0
  %661 = vmatpush2.msra.mxu0 0.0
  %662 = vmatprep.subr.mxu0 0.0
  %663 = vmatpush2.msra.mxu0 0.0
  %664 = vmatprep.subr.mxu0 0.0
  %665 = vmatpush2.msra.mxu0 0.0
  %666 = vmatprep.subr.mxu0 0.0
  %667 = vmatpush2.msra.mxu0 0.0
  %668 = vmatprep.subr.mxu0 0.0
  %669 = vmatpush2.msra.mxu0 0.0
  %670 = vmatprep.subr.mxu0 0.0
  %671 = vmatpush2.msra.mxu0 0.0
  %672 = vmatprep.subr.mxu0 0.0
  %673 = vmatpush2.msra.mxu0 0.0
  %674 = vmatprep.subr.mxu0 0.0
  %675 = vmatpush2.msra.mxu0 0.0
  %676 = vmatprep.subr.mxu0 0.0
  %677 = vmatpush2.msra.mxu0 0.0
  %678 = vmatprep.subr.mxu0 0.0
  %679 = vmatpush2.msra.mxu0 0.0
  %680 = vmatprep.subr.mxu0 0.0
  %681 = vmatpush2.msra.mxu0 0.0
  %682 = vmatprep.subr.mxu0 0.0
  %683 = vmatpush2.msra.mxu0 0.0
  %684 = vmatprep.mubr.f32.mxu0 0.0
  %685 = vmatmul.mubr.f32.gmra.mxu0 %v618
  %v686 = vpop.f32.mrf.mxu0
  %v687 = vadd.f32 0.0, %v686
  %v688 = vpop.f32.mrf.mxu0
  %689 = vdwg.mxu0
  %690 = vrot.lane.b32.xlu0 %v179, 104
  %v691 = vpop.permute.xlu0 %690
  %692 = vrot.lane.b32.xlu0 %v179, 72
  %v693 = vpop.permute.xlu0 %692
  %v694 = vsel %vm188, %v691, 0
  %v696 = vsel %vm188, %v693, 0
  %698 = vmatprep.subr.mxu0 0.0
  %699 = vmatpush1.xpose.msra.mxu0 0.0
  %700 = vmatprep.subr.mxu0 0.0
  %701 = vmatpush1.xpose.msra.mxu0 0.0
  %702 = vmatprep.subr.mxu0 0.0
  %703 = vmatpush1.xpose.msra.mxu0 0.0
  %704 = vmatprep.subr.mxu0 0.0
  %705 = vmatpush1.xpose.msra.mxu0 0.0
  %706 = vmatprep.subr.mxu0 0.0
  %707 = vmatpush1.xpose.msra.mxu0 0.0
  %708 = vmatprep.subr.mxu0 0.0
  %709 = vmatpush1.xpose.msra.mxu0 0.0
  %710 = vmatprep.subr.mxu0 0.0
  %711 = vmatpush1.xpose.msra.mxu0 0.0
  %712 = vmatprep.subr.mxu0 0.0
  %713 = vmatpush1.xpose.msra.mxu0 0.0
  %714 = vmatprep.subr.mxu0 0.0
  %715 = vmatpush1.xpose.msra.mxu0 0.0
  %716 = vmatprep.subr.mxu0 0.0
  %717 = vmatpush1.xpose.msra.mxu0 0.0
  %718 = vmatprep.subr.mxu0 0.0
  %719 = vmatpush1.xpose.msra.mxu0 0.0
  %720 = vmatprep.subr.mxu0 0.0
  %721 = vmatpush1.xpose.msra.mxu0 0.0
  %722 = vmatprep.subr.mxu0 0.0
  %723 = vmatpush1.xpose.msra.mxu0 0.0
  %724 = vmatprep.subr.mxu0 0.0
  %725 = vmatpush1.xpose.msra.mxu0 0.0
  %726 = vmatprep.subr.mxu0 0.0
  %727 = vmatpush1.xpose.msra.mxu0 0.0
  %728 = vmatprep.subr.mxu0 0.0
  %729 = vmatpush1.xpose.msra.mxu0 %v696
  %730 = vmatprep.subr.mxu0 0.0
  %731 = vmatpush2.xpose.msra.mxu0 0.0
  %732 = vmatprep.subr.mxu0 0.0
  %733 = vmatpush2.xpose.msra.mxu0 0.0
  %734 = vmatprep.subr.mxu0 0.0
  %735 = vmatpush2.xpose.msra.mxu0 0.0
  %736 = vmatprep.subr.mxu0 0.0
  %737 = vmatpush2.xpose.msra.mxu0 0.0
  %738 = vmatprep.subr.mxu0 0.0
  %739 = vmatpush2.xpose.msra.mxu0 0.0
  %740 = vmatprep.subr.mxu0 0.0
  %741 = vmatpush2.xpose.msra.mxu0 0.0
  %742 = vmatprep.subr.mxu0 0.0
  %743 = vmatpush2.xpose.msra.mxu0 0.0
  %744 = vmatprep.subr.mxu0 0.0
  %745 = vmatpush2.xpose.msra.mxu0 0.0
  %746 = vmatprep.subr.mxu0 0.0
  %747 = vmatpush2.xpose.msra.mxu0 0.0
  %748 = vmatprep.subr.mxu0 0.0
  %749 = vmatpush2.xpose.msra.mxu0 0.0
  %750 = vmatprep.subr.mxu0 0.0
  %751 = vmatpush2.xpose.msra.mxu0 0.0
  %752 = vmatprep.subr.mxu0 0.0
  %753 = vmatpush2.xpose.msra.mxu0 0.0
  %754 = vmatprep.subr.mxu0 0.0
  %755 = vmatpush2.xpose.msra.mxu0 0.0
  %756 = vmatprep.subr.mxu0 0.0
  %757 = vmatpush2.xpose.msra.mxu0 0.0
  %758 = vmatprep.subr.mxu0 0.0
  %759 = vmatpush2.xpose.msra.mxu0 0.0
  %760 = vmatprep.subr.mxu0 0.0
  %761 = vmatpush2.xpose.msra.mxu0 0.0
  %762 = vmatprep.mubr.f32.mxu0 0.0
  %763 = vmatmul.mubr.f32.gmra.mxu0 %v694
  %v764 = vpop.f32.mrf.mxu0
  %v765 = vadd.f32 0.0, %v764
  %v766 = vpop.f32.mrf.mxu0
  %767 = vdwg.mxu0
  %v768 = vmul.f32 %v765, 0.35355338
  %v769 = vadd.f32 %v768, %v267
  %v770 = vsel %vm188, %v769, -inf
  %771 = vmax.xlane.f32.xlu0 %v770
  %v772 = vpop.xlane.xlu0 %771
  %v773 = vsub.f32 %v769, %v772
  %v774 = vmul.f32 %v773, 1.442695
  %v775 = vpow.pop %v774
  %v776 = vsel %vm188, %v775, 0.0
  %777 = vadd.xlane.f32.xlu0 %v776
  %v778 = vpop.xlane.xlu0 %777
  %v779 = vrcp.pop %v778
  %v780 = vmul.f32 %v775, %v779
  %781 = vrot.lane.b32.xlu0 %v179, 40
  %v782 = vpop.permute.xlu0 %781
  %v785 = vsel %vm188, %v780, 0
  %787 = vmatprep.subr.mxu0 0.0
  %788 = vmatpush1.msra.mxu0 0.0
  %789 = vmatprep.subr.mxu0 0.0
  %790 = vmatpush1.msra.mxu0 0.0
  %791 = vmatprep.subr.mxu0 0.0
  %792 = vmatpush1.msra.mxu0 0.0
  %793 = vmatprep.subr.mxu0 0.0
  %794 = vmatpush1.msra.mxu0 0.0
  %795 = vmatprep.subr.mxu0 0.0
  %796 = vmatpush1.msra.mxu0 0.0
  %797 = vmatprep.subr.mxu0 0.0
  %798 = vmatpush1.msra.mxu0 0.0
  %799 = vmatprep.subr.mxu0 0.0
  %800 = vmatpush1.msra.mxu0 0.0
  %801 = vmatprep.subr.mxu0 0.0
  %802 = vmatpush1.msra.mxu0 0.0
  %803 = vmatprep.subr.mxu0 0.0
  %804 = vmatpush1.msra.mxu0 0.0
  %805 = vmatprep.subr.mxu0 0.0
  %806 = vmatpush1.msra.mxu0 0.0
  %807 = vmatprep.subr.mxu0 0.0
  %808 = vmatpush1.msra.mxu0 0.0
  %809 = vmatprep.subr.mxu0 0.0
  %810 = vmatpush1.msra.mxu0 0.0
  %811 = vmatprep.subr.mxu0 0.0
  %812 = vmatpush1.msra.mxu0 0.0
  %813 = vmatprep.subr.mxu0 0.0
  %814 = vmatpush1.msra.mxu0 0.0
  %815 = vmatprep.subr.mxu0 0.0
  %816 = vmatpush1.msra.mxu0 0.0
  %817 = vmatprep.subr.mxu0 0.0
  %818 = vmatpush1.msra.mxu0 %v782
  %819 = vmatprep.subr.mxu0 0.0
  %820 = vmatpush2.msra.mxu0 0.0
  %821 = vmatprep.subr.mxu0 0.0
  %822 = vmatpush2.msra.mxu0 0.0
  %823 = vmatprep.subr.mxu0 0.0
  %824 = vmatpush2.msra.mxu0 0.0
  %825 = vmatprep.subr.mxu0 0.0
  %826 = vmatpush2.msra.mxu0 0.0
  %827 = vmatprep.subr.mxu0 0.0
  %828 = vmatpush2.msra.mxu0 0.0
  %829 = vmatprep.subr.mxu0 0.0
  %830 = vmatpush2.msra.mxu0 0.0
  %831 = vmatprep.subr.mxu0 0.0
  %832 = vmatpush2.msra.mxu0 0.0
  %833 = vmatprep.subr.mxu0 0.0
  %834 = vmatpush2.msra.mxu0 0.0
  %835 = vmatprep.subr.mxu0 0.0
  %836 = vmatpush2.msra.mxu0 0.0
  %837 = vmatprep.subr.mxu0 0.0
  %838 = vmatpush2.msra.mxu0 0.0
  %839 = vmatprep.subr.mxu0 0.0
  %840 = vmatpush2.msra.mxu0 0.0
  %841 = vmatprep.subr.mxu0 0.0
  %842 = vmatpush2.msra.mxu0 0.0
  %843 = vmatprep.subr.mxu0 0.0
  %844 = vmatpush2.msra.mxu0 0.0
  %845 = vmatprep.subr.mxu0 0.0
  %846 = vmatpush2.msra.mxu0 0.0
  %847 = vmatprep.subr.mxu0 0.0
  %848 = vmatpush2.msra.mxu0 0.0
  %849 = vmatprep.subr.mxu0 0.0
  %850 = vmatpush2.msra.mxu0 0.0
  %851 = vmatprep.mubr.f32.mxu0 0.0
  %852 = vmatmul.mubr.f32.gmra.mxu0 %v785
  %v853 = vpop.f32.mrf.mxu0
  %v854 = vadd.f32 0.0, %v853
  %v855 = vpop.f32.mrf.mxu0
  %856 = vdwg.mxu0
  %858 = vrot.lane.b32.xlu0 %v520, 8
  %v859 = vpop.permute.xlu0 %858
  %862 = vrot.lane.b32.xlu0 %v687, 16
  %v863 = vpop.permute.xlu0 %862
  %866 = vrot.lane.b32.xlu0 %v854, 24
  %v867 = vpop.permute.xlu0 %866
  %v869 = vsel %vm188, %v353, %v859
  %vm870 = vcmask 130048
  %v871 = vsel %vm870, %v869, %v863
  %vm872 = vcmask 195584
  %v873 = vsel %vm872, %v871, %v867
  %875 = vrot.lane.b32.xlu0 %v182, 96
  %v876 = vpop.permute.xlu0 %875
  %v877 = vsel %vm188, %v182, 0
  %v879 = vsel %vm188, %v876, 0
  %881 = vmatprep.subr.mxu0 0.0
  %882 = vmatpush1.xpose.msra.mxu0 0.0
  %883 = vmatprep.subr.mxu0 0.0
  %884 = vmatpush1.xpose.msra.mxu0 0.0
  %885 = vmatprep.subr.mxu0 0.0
  %886 = vmatpush1.xpose.msra.mxu0 0.0
  %887 = vmatprep.subr.mxu0 0.0
  %888 = vmatpush1.xpose.msra.mxu0 0.0
  %889 = vmatprep.subr.mxu0 0.0
  %890 = vmatpush1.xpose.msra.mxu0 0.0
  %891 = vmatprep.subr.mxu0 0.0
  %892 = vmatpush1.xpose.msra.mxu0 0.0
  %893 = vmatprep.subr.mxu0 0.0
  %894 = vmatpush1.xpose.msra.mxu0 0.0
  %895 = vmatprep.subr.mxu0 0.0
  %896 = vmatpush1.xpose.msra.mxu0 0.0
  %897 = vmatprep.subr.mxu0 0.0
  %898 = vmatpush1.xpose.msra.mxu0 0.0
  %899 = vmatprep.subr.mxu0 0.0
  %900 = vmatpush1.xpose.msra.mxu0 0.0
  %901 = vmatprep.subr.mxu0 0.0
  %902 = vmatpush1.xpose.msra.mxu0 0.0
  %903 = vmatprep.subr.mxu0 0.0
  %904 = vmatpush1.xpose.msra.mxu0 0.0
  %905 = vmatprep.subr.mxu0 0.0
  %906 = vmatpush1.xpose.msra.mxu0 0.0
  %907 = vmatprep.subr.mxu0 0.0
  %908 = vmatpush1.xpose.msra.mxu0 0.0
  %909 = vmatprep.subr.mxu0 0.0
  %910 = vmatpush1.xpose.msra.mxu0 0.0
  %911 = vmatprep.subr.mxu0 0.0
  %912 = vmatpush1.xpose.msra.mxu0 %v879
  %913 = vmatprep.subr.mxu0 0.0
  %914 = vmatpush2.xpose.msra.mxu0 0.0
  %915 = vmatprep.subr.mxu0 0.0
  %916 = vmatpush2.xpose.msra.mxu0 0.0
  %917 = vmatprep.subr.mxu0 0.0
  %918 = vmatpush2.xpose.msra.mxu0 0.0
  %919 = vmatprep.subr.mxu0 0.0
  %920 = vmatpush2.xpose.msra.mxu0 0.0
  %921 = vmatprep.subr.mxu0 0.0
  %922 = vmatpush2.xpose.msra.mxu0 0.0
  %923 = vmatprep.subr.mxu0 0.0
  %924 = vmatpush2.xpose.msra.mxu0 0.0
  %925 = vmatprep.subr.mxu0 0.0
  %926 = vmatpush2.xpose.msra.mxu0 0.0
  %927 = vmatprep.subr.mxu0 0.0
  %928 = vmatpush2.xpose.msra.mxu0 0.0
  %929 = vmatprep.subr.mxu0 0.0
  %930 = vmatpush2.xpose.msra.mxu0 0.0
  %931 = vmatprep.subr.mxu0 0.0
  %932 = vmatpush2.xpose.msra.mxu0 0.0
  %933 = vmatprep.subr.mxu0 0.0
  %934 = vmatpush2.xpose.msra.mxu0 0.0
  %935 = vmatprep.subr.mxu0 0.0
  %936 = vmatpush2.xpose.msra.mxu0 0.0
  %937 = vmatprep.subr.mxu0 0.0
  %938 = vmatpush2.xpose.msra.mxu0 0.0
  %939 = vmatprep.subr.mxu0 0.0
  %940 = vmatpush2.xpose.msra.mxu0 0.0
  %941 = vmatprep.subr.mxu0 0.0
  %942 = vmatpush2.xpose.msra.mxu0 0.0
  %943 = vmatprep.subr.mxu0 0.0
  %944 = vmatpush2.xpose.msra.mxu0 0.0
  %945 = vmatprep.mubr.f32.mxu0 0.0
  %946 = vmatmul.mubr.f32.gmra.mxu0 %v877
  %v947 = vpop.f32.mrf.mxu0
  %v948 = vadd.f32 0.0, %v947
  %v949 = vpop.f32.mrf.mxu0
  %950 = vdwg.mxu0
  %v951 = vmul.f32 %v948, 0.35355338
  %v952 = vlaneseq
  %v953 = vshrl.u32 %v952, 7
  %v954 = vsub.s32 1, %v953
  %v955 = vrot.slane %v68, %v954
  %v956 = vadd.f32 %v951, %v955
  %v957 = vsel %vm188, %v956, -inf
  %958 = vmax.xlane.f32.xlu0 %v957
  %v959 = vpop.xlane.xlu0 %958
  %v960 = vsub.f32 %v956, %v959
  %v961 = vmul.f32 %v960, 1.442695
  %v962 = vpow.pop %v961
  %v963 = vsel %vm188, %v962, 0.0
  %964 = vadd.xlane.f32.xlu0 %v963
  %v965 = vpop.xlane.xlu0 %964
  %v966 = vrcp.pop %v965
  %v967 = vmul.f32 %v962, %v966
  %968 = vrot.lane.b32.xlu0 %v182, 64
  %v969 = vpop.permute.xlu0 %968
  %v972 = vsel %vm188, %v967, 0
  %974 = vmatprep.subr.mxu0 0.0
  %975 = vmatpush1.msra.mxu0 0.0
  %976 = vmatprep.subr.mxu0 0.0
  %977 = vmatpush1.msra.mxu0 0.0
  %978 = vmatprep.subr.mxu0 0.0
  %979 = vmatpush1.msra.mxu0 0.0
  %980 = vmatprep.subr.mxu0 0.0
  %981 = vmatpush1.msra.mxu0 0.0
  %982 = vmatprep.subr.mxu0 0.0
  %983 = vmatpush1.msra.mxu0 0.0
  %984 = vmatprep.subr.mxu0 0.0
  %985 = vmatpush1.msra.mxu0 0.0
  %986 = vmatprep.subr.mxu0 0.0
  %987 = vmatpush1.msra.mxu0 0.0
  %988 = vmatprep.subr.mxu0 0.0
  %989 = vmatpush1.msra.mxu0 0.0
  %990 = vmatprep.subr.mxu0 0.0
  %991 = vmatpush1.msra.mxu0 0.0
  %992 = vmatprep.subr.mxu0 0.0
  %993 = vmatpush1.msra.mxu0 0.0
  %994 = vmatprep.subr.mxu0 0.0
  %995 = vmatpush1.msra.mxu0 0.0
  %996 = vmatprep.subr.mxu0 0.0
  %997 = vmatpush1.msra.mxu0 0.0
  %998 = vmatprep.subr.mxu0 0.0
  %999 = vmatpush1.msra.mxu0 0.0
  %1000 = vmatprep.subr.mxu0 0.0
  %1001 = vmatpush1.msra.mxu0 0.0
  %1002 = vmatprep.subr.mxu0 0.0
  %1003 = vmatpush1.msra.mxu0 0.0
  %1004 = vmatprep.subr.mxu0 0.0
  %1005 = vmatpush1.msra.mxu0 %v969
  %1006 = vmatprep.subr.mxu0 0.0
  %1007 = vmatpush2.msra.mxu0 0.0
  %1008 = vmatprep.subr.mxu0 0.0
  %1009 = vmatpush2.msra.mxu0 0.0
  %1010 = vmatprep.subr.mxu0 0.0
  %1011 = vmatpush2.msra.mxu0 0.0
  %1012 = vmatprep.subr.mxu0 0.0
  %1013 = vmatpush2.msra.mxu0 0.0
  %1014 = vmatprep.subr.mxu0 0.0
  %1015 = vmatpush2.msra.mxu0 0.0
  %1016 = vmatprep.subr.mxu0 0.0
  %1017 = vmatpush2.msra.mxu0 0.0
  %1018 = vmatprep.subr.mxu0 0.0
  %1019 = vmatpush2.msra.mxu0 0.0
  %1020 = vmatprep.subr.mxu0 0.0
  %1021 = vmatpush2.msra.mxu0 0.0
  %1022 = vmatprep.subr.mxu0 0.0
  %1023 = vmatpush2.msra.mxu0 0.0
  %1024 = vmatprep.subr.mxu0 0.0
  %1025 = vmatpush2.msra.mxu0 0.0
  %1026 = vmatprep.subr.mxu0 0.0
  %1027 = vmatpush2.msra.mxu0 0.0
  %1028 = vmatprep.subr.mxu0 0.0
  %1029 = vmatpush2.msra.mxu0 0.0
  %1030 = vmatprep.subr.mxu0 0.0
  %1031 = vmatpush2.msra.mxu0 0.0
  %1032 = vmatprep.subr.mxu0 0.0
  %1033 = vmatpush2.msra.mxu0 0.0
  %1034 = vmatprep.subr.mxu0 0.0
  %1035 = vmatpush2.msra.mxu0 0.0
  %1036 = vmatprep.subr.mxu0 0.0
  %1037 = vmatpush2.msra.mxu0 0.0
  %1038 = vmatprep.mubr.f32.mxu0 0.0
  %1039 = vmatmul.mubr.f32.gmra.mxu0 %v972
  %v1040 = vpop.f32.mrf.mxu0
  %v1041 = vadd.f32 0.0, %v1040
  %v1042 = vpop.f32.mrf.mxu0
  %1043 = vdwg.mxu0
  %1044 = vrot.lane.b32.xlu0 %v182, 120
  %v1045 = vpop.permute.xlu0 %1044
  %1046 = vrot.lane.b32.xlu0 %v182, 88
  %v1047 = vpop.permute.xlu0 %1046
  %v1048 = vsel %vm188, %v1045, 0
  %v1050 = vsel %vm188, %v1047, 0
  %1052 = vmatprep.subr.mxu0 0.0
  %1053 = vmatpush1.xpose.msra.mxu0 0.0
  %1054 = vmatprep.subr.mxu0 0.0
  %1055 = vmatpush1.xpose.msra.mxu0 0.0
  %1056 = vmatprep.subr.mxu0 0.0
  %1057 = vmatpush1.xpose.msra.mxu0 0.0
  %1058 = vmatprep.subr.mxu0 0.0
  %1059 = vmatpush1.xpose.msra.mxu0 0.0
  %1060 = vmatprep.subr.mxu0 0.0
  %1061 = vmatpush1.xpose.msra.mxu0 0.0
  %1062 = vmatprep.subr.mxu0 0.0
  %1063 = vmatpush1.xpose.msra.mxu0 0.0
  %1064 = vmatprep.subr.mxu0 0.0
  %1065 = vmatpush1.xpose.msra.mxu0 0.0
  %1066 = vmatprep.subr.mxu0 0.0
  %1067 = vmatpush1.xpose.msra.mxu0 0.0
  %1068 = vmatprep.subr.mxu0 0.0
  %1069 = vmatpush1.xpose.msra.mxu0 0.0
  %1070 = vmatprep.subr.mxu0 0.0
  %1071 = vmatpush1.xpose.msra.mxu0 0.0
  %1072 = vmatprep.subr.mxu0 0.0
  %1073 = vmatpush1.xpose.msra.mxu0 0.0
  %1074 = vmatprep.subr.mxu0 0.0
  %1075 = vmatpush1.xpose.msra.mxu0 0.0
  %1076 = vmatprep.subr.mxu0 0.0
  %1077 = vmatpush1.xpose.msra.mxu0 0.0
  %1078 = vmatprep.subr.mxu0 0.0
  %1079 = vmatpush1.xpose.msra.mxu0 0.0
  %1080 = vmatprep.subr.mxu0 0.0
  %1081 = vmatpush1.xpose.msra.mxu0 0.0
  %1082 = vmatprep.subr.mxu0 0.0
  %1083 = vmatpush1.xpose.msra.mxu0 %v1050
  %1084 = vmatprep.subr.mxu0 0.0
  %1085 = vmatpush2.xpose.msra.mxu0 0.0
  %1086 = vmatprep.subr.mxu0 0.0
  %1087 = vmatpush2.xpose.msra.mxu0 0.0
  %1088 = vmatprep.subr.mxu0 0.0
  %1089 = vmatpush2.xpose.msra.mxu0 0.0
  %1090 = vmatprep.subr.mxu0 0.0
  %1091 = vmatpush2.xpose.msra.mxu0 0.0
  %1092 = vmatprep.subr.mxu0 0.0
  %1093 = vmatpush2.xpose.msra.mxu0 0.0
  %1094 = vmatprep.subr.mxu0 0.0
  %1095 = vmatpush2.xpose.msra.mxu0 0.0
  %1096 = vmatprep.subr.mxu0 0.0
  %1097 = vmatpush2.xpose.msra.mxu0 0.0
  %1098 = vmatprep.subr.mxu0 0.0
  %1099 = vmatpush2.xpose.msra.mxu0 0.0
  %1100 = vmatprep.subr.mxu0 0.0
  %1101 = vmatpush2.xpose.msra.mxu0 0.0
  %1102 = vmatprep.subr.mxu0 0.0
  %1103 = vmatpush2.xpose.msra.mxu0 0.0
  %1104 = vmatprep.subr.mxu0 0.0
  %1105 = vmatpush2.xpose.msra.mxu0 0.0
  %1106 = vmatprep.subr.mxu0 0.0
  %1107 = vmatpush2.xpose.msra.mxu0 0.0
  %1108 = vmatprep.subr.mxu0 0.0
  %1109 = vmatpush2.xpose.msra.mxu0 0.0
  %1110 = vmatprep.subr.mxu0 0.0
  %1111 = vmatpush2.xpose.msra.mxu0 0.0
  %1112 = vmatprep.subr.mxu0 0.0
  %1113 = vmatpush2.xpose.msra.mxu0 0.0
  %1114 = vmatprep.subr.mxu0 0.0
  %1115 = vmatpush2.xpose.msra.mxu0 0.0
  %1116 = vmatprep.mubr.f32.mxu0 0.0
  %1117 = vmatmul.mubr.f32.gmra.mxu0 %v1048
  %v1118 = vpop.f32.mrf.mxu0
  %v1119 = vadd.f32 0.0, %v1118
  %v1120 = vpop.f32.mrf.mxu0
  %1121 = vdwg.mxu0
  %v1122 = vmul.f32 %v1119, 0.35355338
  %v1123 = vadd.f32 %v1122, %v955
  %v1124 = vsel %vm188, %v1123, -inf
  %1125 = vmax.xlane.f32.xlu0 %v1124
  %v1126 = vpop.xlane.xlu0 %1125
  %v1127 = vsub.f32 %v1123, %v1126
  %v1128 = vmul.f32 %v1127, 1.442695
  %v1129 = vpow.pop %v1128
  %v1130 = vsel %vm188, %v1129, 0.0
  %1131 = vadd.xlane.f32.xlu0 %v1130
  %v1132 = vpop.xlane.xlu0 %1131
  %v1133 = vrcp.pop %v1132
  %v1134 = vmul.f32 %v1129, %v1133
  %1135 = vrot.lane.b32.xlu0 %v182, 56
  %v1136 = vpop.permute.xlu0 %1135
  %v1139 = vsel %vm188, %v1134, 0
  %1141 = vmatprep.subr.mxu0 0.0
  %1142 = vmatpush1.msra.mxu0 0.0
  %1143 = vmatprep.subr.mxu0 0.0
  %1144 = vmatpush1.msra.mxu0 0.0
  %1145 = vmatprep.subr.mxu0 0.0
  %1146 = vmatpush1.msra.mxu0 0.0
  %1147 = vmatprep.subr.mxu0 0.0
  %1148 = vmatpush1.msra.mxu0 0.0
  %1149 = vmatprep.subr.mxu0 0.0
  %1150 = vmatpush1.msra.mxu0 0.0
  %1151 = vmatprep.subr.mxu0 0.0
  %1152 = vmatpush1.msra.mxu0 0.0
  %1153 = vmatprep.subr.mxu0 0.0
  %1154 = vmatpush1.msra.mxu0 0.0
  %1155 = vmatprep.subr.mxu0 0.0
  %1156 = vmatpush1.msra.mxu0 0.0
  %1157 = vmatprep.subr.mxu0 0.0
  %1158 = vmatpush1.msra.mxu0 0.0
  %1159 = vmatprep.subr.mxu0 0.0
  %1160 = vmatpush1.msra.mxu0 0.0
  %1161 = vmatprep.subr.mxu0 0.0
  %1162 = vmatpush1.msra.mxu0 0.0
  %1163 = vmatprep.subr.mxu0 0.0
  %1164 = vmatpush1.msra.mxu0 0.0
  %1165 = vmatprep.subr.mxu0 0.0
  %1166 = vmatpush1.msra.mxu0 0.0
  %1167 = vmatprep.subr.mxu0 0.0
  %1168 = vmatpush1.msra.mxu0 0.0
  %1169 = vmatprep.subr.mxu0 0.0
  %1170 = vmatpush1.msra.mxu0 0.0
  %1171 = vmatprep.subr.mxu0 0.0
  %1172 = vmatpush1.msra.mxu0 %v1136
  %1173 = vmatprep.subr.mxu0 0.0
  %1174 = vmatpush2.msra.mxu0 0.0
  %1175 = vmatprep.subr.mxu0 0.0
  %1176 = vmatpush2.msra.mxu0 0.0
  %1177 = vmatprep.subr.mxu0 0.0
  %1178 = vmatpush2.msra.mxu0 0.0
  %1179 = vmatprep.subr.mxu0 0.0
  %1180 = vmatpush2.msra.mxu0 0.0
  %1181 = vmatprep.subr.mxu0 0.0
  %1182 = vmatpush2.msra.mxu0 0.0
  %1183 = vmatprep.subr.mxu0 0.0
  %1184 = vmatpush2.msra.mxu0 0.0
  %1185 = vmatprep.subr.mxu0 0.0
  %1186 = vmatpush2.msra.mxu0 0.0
  %1187 = vmatprep.subr.mxu0 0.0
  %1188 = vmatpush2.msra.mxu0 0.0
  %1189 = vmatprep.subr.mxu0 0.0
  %1190 = vmatpush2.msra.mxu0 0.0
  %1191 = vmatprep.subr.mxu0 0.0
  %1192 = vmatpush2.msra.mxu0 0.0
  %1193 = vmatprep.subr.mxu0 0.0
  %1194 = vmatpush2.msra.mxu0 0.0
  %1195 = vmatprep.subr.mxu0 0.0
  %1196 = vmatpush2.msra.mxu0 0.0
  %1197 = vmatprep.subr.mxu0 0.0
  %1198 = vmatpush2.msra.mxu0 0.0
  %1199 = vmatprep.subr.mxu0 0.0
  %1200 = vmatpush2.msra.mxu0 0.0
  %1201 = vmatprep.subr.mxu0 0.0
  %1202 = vmatpush2.msra.mxu0 0.0
  %1203 = vmatprep.subr.mxu0 0.0
  %1204 = vmatpush2.msra.mxu0 0.0
  %1205 = vmatprep.mubr.f32.mxu0 0.0
  %1206 = vmatmul.mubr.f32.gmra.mxu0 %v1139
  %v1207 = vpop.f32.mrf.mxu0
  %v1208 = vadd.f32 0.0, %v1207
  %v1209 = vpop.f32.mrf.mxu0
  %1210 = vdwg.mxu0
  %1211 = vrot.lane.b32.xlu0 %v182, 112
  %v1212 = vpop.permute.xlu0 %1211
  %1213 = vrot.lane.b32.xlu0 %v182, 80
  %v1214 = vpop.permute.xlu0 %1213
  %v1215 = vsel %vm188, %v1212, 0
  %v1217 = vsel %vm188, %v1214, 0
  %1219 = vmatprep.subr.mxu0 0.0
  %1220 = vmatpush1.xpose.msra.mxu0 0.0
  %1221 = vmatprep.subr.mxu0 0.0
  %1222 = vmatpush1.xpose.msra.mxu0 0.0
  %1223 = vmatprep.subr.mxu0 0.0
  %1224 = vmatpush1.xpose.msra.mxu0 0.0
  %1225 = vmatprep.subr.mxu0 0.0
  %1226 = vmatpush1.xpose.msra.mxu0 0.0
  %1227 = vmatprep.subr.mxu0 0.0
  %1228 = vmatpush1.xpose.msra.mxu0 0.0
  %1229 = vmatprep.subr.mxu0 0.0
  %1230 = vmatpush1.xpose.msra.mxu0 0.0
  %1231 = vmatprep.subr.mxu0 0.0
  %1232 = vmatpush1.xpose.msra.mxu0 0.0
  %1233 = vmatprep.subr.mxu0 0.0
  %1234 = vmatpush1.xpose.msra.mxu0 0.0
  %1235 = vmatprep.subr.mxu0 0.0
  %1236 = vmatpush1.xpose.msra.mxu0 0.0
  %1237 = vmatprep.subr.mxu0 0.0
  %1238 = vmatpush1.xpose.msra.mxu0 0.0
  %1239 = vmatprep.subr.mxu0 0.0
  %1240 = vmatpush1.xpose.msra.mxu0 0.0
  %1241 = vmatprep.subr.mxu0 0.0
  %1242 = vmatpush1.xpose.msra.mxu0 0.0
  %1243 = vmatprep.subr.mxu0 0.0
  %1244 = vmatpush1.xpose.msra.mxu0 0.0
  %1245 = vmatprep.subr.mxu0 0.0
  %1246 = vmatpush1.xpose.msra.mxu0 0.0
  %1247 = vmatprep.subr.mxu0 0.0
  %1248 = vmatpush1.xpose.msra.mxu0 0.0
  %1249 = vmatprep.subr.mxu0 0.0
  %1250 = vmatpush1.xpose.msra.mxu0 %v1217
  %1251 = vmatprep.subr.mxu0 0.0
  %1252 = vmatpush2.xpose.msra.mxu0 0.0
  %1253 = vmatprep.subr.mxu0 0.0
  %1254 = vmatpush2.xpose.msra.mxu0 0.0
  %1255 = vmatprep.subr.mxu0 0.0
  %1256 = vmatpush2.xpose.msra.mxu0 0.0
  %1257 = vmatprep.subr.mxu0 0.0
  %1258 = vmatpush2.xpose.msra.mxu0 0.0
  %1259 = vmatprep.subr.mxu0 0.0
  %1260 = vmatpush2.xpose.msra.mxu0 0.0
  %1261 = vmatprep.subr.mxu0 0.0
  %1262 = vmatpush2.xpose.msra.mxu0 0.0
  %1263 = vmatprep.subr.mxu0 0.0
  %1264 = vmatpush2.xpose.msra.mxu0 0.0
  %1265 = vmatprep.subr.mxu0 0.0
  %1266 = vmatpush2.xpose.msra.mxu0 0.0
  %1267 = vmatprep.subr.mxu0 0.0
  %1268 = vmatpush2.xpose.msra.mxu0 0.0
  %1269 = vmatprep.subr.mxu0 0.0
  %1270 = vmatpush2.xpose.msra.mxu0 0.0
  %1271 = vmatprep.subr.mxu0 0.0
  %1272 = vmatpush2.xpose.msra.mxu0 0.0
  %1273 = vmatprep.subr.mxu0 0.0
  %1274 = vmatpush2.xpose.msra.mxu0 0.0
  %1275 = vmatprep.subr.mxu0 0.0
  %1276 = vmatpush2.xpose.msra.mxu0 0.0
  %1277 = vmatprep.subr.mxu0 0.0
  %1278 = vmatpush2.xpose.msra.mxu0 0.0
  %1279 = vmatprep.subr.mxu0 0.0
  %1280 = vmatpush2.xpose.msra.mxu0 0.0
  %1281 = vmatprep.subr.mxu0 0.0
  %1282 = vmatpush2.xpose.msra.mxu0 0.0
  %1283 = vmatprep.mubr.f32.mxu0 0.0
  %1284 = vmatmul.mubr.f32.gmra.mxu0 %v1215
  %v1285 = vpop.f32.mrf.mxu0
  %v1286 = vadd.f32 0.0, %v1285
  %v1287 = vpop.f32.mrf.mxu0
  %1288 = vdwg.mxu0
  %v1289 = vmul.f32 %v1286, 0.35355338
  %v1290 = vadd.f32 %v1289, %v955
  %v1291 = vsel %vm188, %v1290, -inf
  %1292 = vmax.xlane.f32.xlu0 %v1291
  %v1293 = vpop.xlane.xlu0 %1292
  %v1294 = vsub.f32 %v1290, %v1293
  %v1295 = vmul.f32 %v1294, 1.442695
  %v1296 = vpow.pop %v1295
  %v1297 = vsel %vm188, %v1296, 0.0
  %1298 = vadd.xlane.f32.xlu0 %v1297
  %v1299 = vpop.xlane.xlu0 %1298
  %v1300 = vrcp.pop %v1299
  %v1301 = vmul.f32 %v1296, %v1300
  %1302 = vrot.lane.b32.xlu0 %v182, 48
  %v1303 = vpop.permute.xlu0 %1302
  %v1306 = vsel %vm188, %v1301, 0
  %1308 = vmatprep.subr.mxu0 0.0
  %1309 = vmatpush1.msra.mxu0 0.0
  %1310 = vmatprep.subr.mxu0 0.0
  %1311 = vmatpush1.msra.mxu0 0.0
  %1312 = vmatprep.subr.mxu0 0.0
  %1313 = vmatpush1.msra.mxu0 0.0
  %1314 = vmatprep.subr.mxu0 0.0
  %1315 = vmatpush1.msra.mxu0 0.0
  %1316 = vmatprep.subr.mxu0 0.0
  %1317 = vmatpush1.msra.mxu0 0.0
  %1318 = vmatprep.subr.mxu0 0.0
  %1319 = vmatpush1.msra.mxu0 0.0
  %1320 = vmatprep.subr.mxu0 0.0
  %1321 = vmatpush1.msra.mxu0 0.0
  %1322 = vmatprep.subr.mxu0 0.0
  %1323 = vmatpush1.msra.mxu0 0.0
  %1324 = vmatprep.subr.mxu0 0.0
  %1325 = vmatpush1.msra.mxu0 0.0
  %1326 = vmatprep.subr.mxu0 0.0
  %1327 = vmatpush1.msra.mxu0 0.0
  %1328 = vmatprep.subr.mxu0 0.0
  %1329 = vmatpush1.msra.mxu0 0.0
  %1330 = vmatprep.subr.mxu0 0.0
  %1331 = vmatpush1.msra.mxu0 0.0
  %1332 = vmatprep.subr.mxu0 0.0
  %1333 = vmatpush1.msra.mxu0 0.0
  %1334 = vmatprep.subr.mxu0 0.0
  %1335 = vmatpush1.msra.mxu0 0.0
  %1336 = vmatprep.subr.mxu0 0.0
  %1337 = vmatpush1.msra.mxu0 0.0
  %1338 = vmatprep.subr.mxu0 0.0
  %1339 = vmatpush1.msra.mxu0 %v1303
  %1340 = vmatprep.subr.mxu0 0.0
  %1341 = vmatpush2.msra.mxu0 0.0
  %1342 = vmatprep.subr.mxu0 0.0
  %1343 = vmatpush2.msra.mxu0 0.0
  %1344 = vmatprep.subr.mxu0 0.0
  %1345 = vmatpush2.msra.mxu0 0.0
  %1346 = vmatprep.subr.mxu0 0.0
  %1347 = vmatpush2.msra.mxu0 0.0
  %1348 = vmatprep.subr.mxu0 0.0
  %1349 = vmatpush2.msra.mxu0 0.0
  %1350 = vmatprep.subr.mxu0 0.0
  %1351 = vmatpush2.msra.mxu0 0.0
  %1352 = vmatprep.subr.mxu0 0.0
  %1353 = vmatpush2.msra.mxu0 0.0
  %1354 = vmatprep.subr.mxu0 0.0
  %1355 = vmatpush2.msra.mxu0 0.0
  %1356 = vmatprep.subr.mxu0 0.0
  %1357 = vmatpush2.msra.mxu0 0.0
  %1358 = vmatprep.subr.mxu0 0.0
  %1359 = vmatpush2.msra.mxu0 0.0
  %1360 = vmatprep.subr.mxu0 0.0
  %1361 = vmatpush2.msra.mxu0 0.0
  %1362 = vmatprep.subr.mxu0 0.0
  %1363 = vmatpush2.msra.mxu0 0.0
  %1364 = vmatprep.subr.mxu0 0.0
  %1365 = vmatpush2.msra.mxu0 0.0
  %1366 = vmatprep.subr.mxu0 0.0
  %1367 = vmatpush2.msra.mxu0 0.0
  %1368 = vmatprep.subr.mxu0 0.0
  %1369 = vmatpush2.msra.mxu0 0.0
  %1370 = vmatprep.subr.mxu0 0.0
  %1371 = vmatpush2.msra.mxu0 0.0
  %1372 = vmatprep.mubr.f32.mxu0 0.0
  %1373 = vmatmul.mubr.f32.gmra.mxu0 %v1306
  %v1374 = vpop.f32.mrf.mxu0
  %v1375 = vadd.f32 0.0, %v1374
  %v1376 = vpop.f32.mrf.mxu0
  %1377 = vdwg.mxu0
  %1378 = vrot.lane.b32.xlu0 %v182, 104
  %v1379 = vpop.permute.xlu0 %1378
  %1380 = vrot.lane.b32.xlu0 %v182, 72
  %v1381 = vpop.permute.xlu0 %1380
  %v1382 = vsel %vm188, %v1379, 0
  %v1384 = vsel %vm188, %v1381, 0
  %1386 = vmatprep.subr.mxu0 0.0
  %1387 = vmatpush1.xpose.msra.mxu0 0.0
  %1388 = vmatprep.subr.mxu0 0.0
  %1389 = vmatpush1.xpose.msra.mxu0 0.0
  %1390 = vmatprep.subr.mxu0 0.0
  %1391 = vmatpush1.xpose.msra.mxu0 0.0
  %1392 = vmatprep.subr.mxu0 0.0
  %1393 = vmatpush1.xpose.msra.mxu0 0.0
  %1394 = vmatprep.subr.mxu0 0.0
  %1395 = vmatpush1.xpose.msra.mxu0 0.0
  %1396 = vmatprep.subr.mxu0 0.0
  %1397 = vmatpush1.xpose.msra.mxu0 0.0
  %1398 = vmatprep.subr.mxu0 0.0
  %1399 = vmatpush1.xpose.msra.mxu0 0.0
  %1400 = vmatprep.subr.mxu0 0.0
  %1401 = vmatpush1.xpose.msra.mxu0 0.0
  %1402 = vmatprep.subr.mxu0 0.0
  %1403 = vmatpush1.xpose.msra.mxu0 0.0
  %1404 = vmatprep.subr.mxu0 0.0
  %1405 = vmatpush1.xpose.msra.mxu0 0.0
  %1406 = vmatprep.subr.mxu0 0.0
  %1407 = vmatpush1.xpose.msra.mxu0 0.0
  %1408 = vmatprep.subr.mxu0 0.0
  %1409 = vmatpush1.xpose.msra.mxu0 0.0
  %1410 = vmatprep.subr.mxu0 0.0
  %1411 = vmatpush1.xpose.msra.mxu0 0.0
  %1412 = vmatprep.subr.mxu0 0.0
  %1413 = vmatpush1.xpose.msra.mxu0 0.0
  %1414 = vmatprep.subr.mxu0 0.0
  %1415 = vmatpush1.xpose.msra.mxu0 0.0
  %1416 = vmatprep.subr.mxu0 0.0
  %1417 = vmatpush1.xpose.msra.mxu0 %v1384
  %1418 = vmatprep.subr.mxu0 0.0
  %1419 = vmatpush2.xpose.msra.mxu0 0.0
  %1420 = vmatprep.subr.mxu0 0.0
  %1421 = vmatpush2.xpose.msra.mxu0 0.0
  %1422 = vmatprep.subr.mxu0 0.0
  %1423 = vmatpush2.xpose.msra.mxu0 0.0
  %1424 = vmatprep.subr.mxu0 0.0
  %1425 = vmatpush2.xpose.msra.mxu0 0.0
  %1426 = vmatprep.subr.mxu0 0.0
  %1427 = vmatpush2.xpose.msra.mxu0 0.0
  %1428 = vmatprep.subr.mxu0 0.0
  %1429 = vmatpush2.xpose.msra.mxu0 0.0
  %1430 = vmatprep.subr.mxu0 0.0
  %1431 = vmatpush2.xpose.msra.mxu0 0.0
  %1432 = vmatprep.subr.mxu0 0.0
  %1433 = vmatpush2.xpose.msra.mxu0 0.0
  %1434 = vmatprep.subr.mxu0 0.0
  %1435 = vmatpush2.xpose.msra.mxu0 0.0
  %1436 = vmatprep.subr.mxu0 0.0
  %1437 = vmatpush2.xpose.msra.mxu0 0.0
  %1438 = vmatprep.subr.mxu0 0.0
  %1439 = vmatpush2.xpose.msra.mxu0 0.0
  %1440 = vmatprep.subr.mxu0 0.0
  %1441 = vmatpush2.xpose.msra.mxu0 0.0
  %1442 = vmatprep.subr.mxu0 0.0
  %1443 = vmatpush2.xpose.msra.mxu0 0.0
  %1444 = vmatprep.subr.mxu0 0.0
  %1445 = vmatpush2.xpose.msra.mxu0 0.0
  %1446 = vmatprep.subr.mxu0 0.0
  %1447 = vmatpush2.xpose.msra.mxu0 0.0
  %1448 = vmatprep.subr.mxu0 0.0
  %1449 = vmatpush2.xpose.msra.mxu0 0.0
  %1450 = vmatprep.mubr.f32.mxu0 0.0
  %1451 = vmatmul.mubr.f32.gmra.mxu0 %v1382
  %v1452 = vpop.f32.mrf.mxu0
  %v1453 = vadd.f32 0.0, %v1452
  %v1454 = vpop.f32.mrf.mxu0
  %1455 = vdwg.mxu0
  %v1456 = vmul.f32 %v1453, 0.35355338
  %v1457 = vadd.f32 %v1456, %v955
  %v1458 = vsel %vm188, %v1457, -inf
  %1459 = vmax.xlane.f32.xlu0 %v1458
  %v1460 = vpop.xlane.xlu0 %1459
  %v1461 = vsub.f32 %v1457, %v1460
  %v1462 = vmul.f32 %v1461, 1.442695
  %v1463 = vpow.pop %v1462
  %v1464 = vsel %vm188, %v1463, 0.0
  %1465 = vadd.xlane.f32.xlu0 %v1464
  %v1466 = vpop.xlane.xlu0 %1465
  %v1467 = vrcp.pop %v1466
  %v1468 = vmul.f32 %v1463, %v1467
  %1469 = vrot.lane.b32.xlu0 %v182, 40
  %v1470 = vpop.permute.xlu0 %1469
  %v1473 = vsel %vm188, %v1468, 0
  %1475 = vmatprep.subr.mxu0 0.0
  %1476 = vmatpush1.msra.mxu0 0.0
  %1477 = vmatprep.subr.mxu0 0.0
  %1478 = vmatpush1.msra.mxu0 0.0
  %1479 = vmatprep.subr.mxu0 0.0
  %1480 = vmatpush1.msra.mxu0 0.0
  %1481 = vmatprep.subr.mxu0 0.0
  %1482 = vmatpush1.msra.mxu0 0.0
  %1483 = vmatprep.subr.mxu0 0.0
  %1484 = vmatpush1.msra.mxu0 0.0
  %1485 = vmatprep.subr.mxu0 0.0
  %1486 = vmatpush1.msra.mxu0 0.0
  %1487 = vmatprep.subr.mxu0 0.0
  %1488 = vmatpush1.msra.mxu0 0.0
  %1489 = vmatprep.subr.mxu0 0.0
  %1490 = vmatpush1.msra.mxu0 0.0
  %1491 = vmatprep.subr.mxu0 0.0
  %1492 = vmatpush1.msra.mxu0 0.0
  %1493 = vmatprep.subr.mxu0 0.0
  %1494 = vmatpush1.msra.mxu0 0.0
  %1495 = vmatprep.subr.mxu0 0.0
  %1496 = vmatpush1.msra.mxu0 0.0
  %1497 = vmatprep.subr.mxu0 0.0
  %1498 = vmatpush1.msra.mxu0 0.0
  %1499 = vmatprep.subr.mxu0 0.0
  %1500 = vmatpush1.msra.mxu0 0.0
  %1501 = vmatprep.subr.mxu0 0.0
  %1502 = vmatpush1.msra.mxu0 0.0
  %1503 = vmatprep.subr.mxu0 0.0
  %1504 = vmatpush1.msra.mxu0 0.0
  %1505 = vmatprep.subr.mxu0 0.0
  %1506 = vmatpush1.msra.mxu0 %v1470
  %1507 = vmatprep.subr.mxu0 0.0
  %1508 = vmatpush2.msra.mxu0 0.0
  %1509 = vmatprep.subr.mxu0 0.0
  %1510 = vmatpush2.msra.mxu0 0.0
  %1511 = vmatprep.subr.mxu0 0.0
  %1512 = vmatpush2.msra.mxu0 0.0
  %1513 = vmatprep.subr.mxu0 0.0
  %1514 = vmatpush2.msra.mxu0 0.0
  %1515 = vmatprep.subr.mxu0 0.0
  %1516 = vmatpush2.msra.mxu0 0.0
  %1517 = vmatprep.subr.mxu0 0.0
  %1518 = vmatpush2.msra.mxu0 0.0
  %1519 = vmatprep.subr.mxu0 0.0
  %1520 = vmatpush2.msra.mxu0 0.0
  %1521 = vmatprep.subr.mxu0 0.0
  %1522 = vmatpush2.msra.mxu0 0.0
  %1523 = vmatprep.subr.mxu0 0.0
  %1524 = vmatpush2.msra.mxu0 0.0
  %1525 = vmatprep.subr.mxu0 0.0
  %1526 = vmatpush2.msra.mxu0 0.0
  %1527 = vmatprep.subr.mxu0 0.0
  %1528 = vmatpush2.msra.mxu0 0.0
  %1529 = vmatprep.subr.mxu0 0.0
  %1530 = vmatpush2.msra.mxu0 0.0
  %1531 = vmatprep.subr.mxu0 0.0
  %1532 = vmatpush2.msra.mxu0 0.0
  %1533 = vmatprep.subr.mxu0 0.0
  %1534 = vmatpush2.msra.mxu0 0.0
  %1535 = vmatprep.subr.mxu0 0.0
  %1536 = vmatpush2.msra.mxu0 0.0
  %1537 = vmatprep.subr.mxu0 0.0
  %1538 = vmatpush2.msra.mxu0 0.0
  %1539 = vmatprep.mubr.f32.mxu0 0.0
  %1540 = vmatmul.mubr.f32.gmra.mxu0 %v1473
  %v1541 = vpop.f32.mrf.mxu0
  %v1542 = vadd.f32 0.0, %v1541
  %v1543 = vpop.f32.mrf.mxu0
  %1544 = vdwg.mxu0
  %1546 = vrot.lane.b32.xlu0 %v1208, 8
  %v1547 = vpop.permute.xlu0 %1546
  %1550 = vrot.lane.b32.xlu0 %v1375, 16
  %v1551 = vpop.permute.xlu0 %1550
  %1554 = vrot.lane.b32.xlu0 %v1542, 24
  %v1555 = vpop.permute.xlu0 %1554
  %v1557 = vsel %vm188, %v1041, %v1547
  %v1558 = vsel %vm870, %v1557, %v1551
  %v1559 = vsel %vm872, %v1558, %v1555
  %v1560 = vld [vmem:[%s6] sm:$0xf]
  %v1561 = vld [vmem:[%s6 + $0x4] sm:$0xf]
  %v1562 = vld [vmem:[%s6 + $0x8] sm:$0xf]
  %v1563 = vld [vmem:[%s6 + $0xc] sm:$0xf]
  %v1564 = vpack.c.bf16 %v1559, %v873
  %v1565 = vld [vmem:[%s7] sm:$0x1]
  %v1567 = vlaneseq
  %v1568 = vshrl.u32 %v1567, 7
  %v1569 = vsub.s32 0, %v1568
  %v1570 = vrot.slane %v1565, %v1569
  %v1576 = vunpack.c.l.b16 %v1560
  %v1577 = vunpack.c.l.b16 %v1561
  %v1578 = vunpack.c.l.b16 %v1562
  %v1579 = vunpack.c.l.b16 %v1563
  %v1580 = vpack.c.b16 %v1577, %v1576
  %v1581 = vpack.c.b16 %v1579, %v1578
  %v1585 = vsel %vm73, %v1564, 0
  %1587 = vmatprep.subr.bf16.mxu0 0
  %1588 = vmatpush1.bf16.msra.mxu0 0
  %1589 = vmatprep.subr.bf16.mxu0 0
  %1590 = vmatpush1.bf16.msra.mxu0 0
  %1591 = vmatprep.subr.bf16.mxu0 0
  %1592 = vmatpush1.bf16.msra.mxu0 0
  %1593 = vmatprep.subr.bf16.mxu0 0
  %1594 = vmatpush1.bf16.msra.mxu0 0
  %1595 = vmatprep.subr.bf16.mxu0 0
  %1596 = vmatpush1.bf16.msra.mxu0 0
  %1597 = vmatprep.subr.bf16.mxu0 0
  %1598 = vmatpush1.bf16.msra.mxu0 0
  %1599 = vmatprep.subr.bf16.mxu0 0
  %1600 = vmatpush1.bf16.msra.mxu0 %v1581
  %1601 = vmatprep.subr.bf16.mxu0 0
  %1602 = vmatpush1.bf16.msra.mxu0 %v1580
  %1603 = vmatprep.subr.bf16.mxu0 0
  %1604 = vmatpush2.bf16.msra.mxu0 0
  %1605 = vmatprep.subr.bf16.mxu0 0
  %1606 = vmatpush2.bf16.msra.mxu0 0
  %1607 = vmatprep.subr.bf16.mxu0 0
  %1608 = vmatpush2.bf16.msra.mxu0 0
  %1609 = vmatprep.subr.bf16.mxu0 0
  %1610 = vmatpush2.bf16.msra.mxu0 0
  %1611 = vmatprep.subr.bf16.mxu0 0
  %1612 = vmatpush2.bf16.msra.mxu0 0
  %1613 = vmatprep.subr.bf16.mxu0 0
  %1614 = vmatpush2.bf16.msra.mxu0 0
  %1615 = vmatprep.subr.bf16.mxu0 0
  %1616 = vmatpush2.bf16.msra.mxu0 0
  %1617 = vmatprep.subr.bf16.mxu0 0
  %1618 = vmatpush2.bf16.msra.mxu0 0
  %1619 = vmatprep.mubr.bf16.mxu0 0
  %1620 = vmatmul.mubr.bf16.gmra.mxu0 %v1585
  %v1621 = vpop.f32.mrf.mxu0
  %v1622 = vadd.f32 %v1570, %v1621
  %v1623 = vpop.f32.mrf.mxu0
  %v1624 = vpop.f32.mrf.mxu0
  %v1625 = vadd.f32 %v1570, %v1624
  %v1626 = vpop.f32.mrf.mxu0
  %1627 = vdwg.mxu0
  %v1628 = vadd.f32 %v1622, %v115
  %v1629 = vadd.f32 %v1625, %v116
  %v1630 = vld [vmem:[%s8] sm:$0x1]
  %v1631 = vld [vmem:[%s9] sm:$0x1]
  %v1632 = vsel %vm73, %v1628, 0.0
  %1633 = vadd.xlane.f32.xlu0 %v1632
  %v1634 = vpop.xlane.xlu0 %1633
  %v1635 = vsel %vm73, %v1629, 0.0
  %1636 = vadd.xlane.f32.xlu0 %v1635
  %v1637 = vpop.xlane.xlu0 %1636
  %v1638 = vmul.f32 %v1634, %v80
  %v1639 = vmul.f32 %v1637, %v80
  %v1640 = vsub.f32 %v1628, %v1638
  %v1641 = vsub.f32 %v1629, %v1639
  %v1642 = vmul.f32 %v1640, %v1640
  %v1643 = vmul.f32 %v1641, %v1641
  %v1644 = vsel %vm73, %v1642, 0.0
  %1645 = vadd.xlane.f32.xlu0 %v1644
  %v1646 = vpop.xlane.xlu0 %1645
  %v1647 = vsel %vm73, %v1643, 0.0
  %1648 = vadd.xlane.f32.xlu0 %v1647
  %v1649 = vpop.xlane.xlu0 %1648
  %v1650 = vmul.f32 %v1646, %v80
  %v1651 = vmul.f32 %v1649, %v80
  %v1652 = vadd.f32 %v1650, 1e-12
  %v1653 = vadd.f32 %v1651, 1e-12
  %v1654 = vrsqrt.pop %v1652
  %v1655 = vrsqrt.pop %v1653
  %v1656 = vmul.f32 %v1640, %v1654
  %v1657 = vmul.f32 %v1641, %v1655
  %v1659 = vlaneseq
  %v1660 = vshrl.u32 %v1659, 7
  %v1661 = vsub.s32 0, %v1660
  %v1662 = vrot.slane %v1630, %v1661
  %v1664 = vmul.f32 %v1656, %v1662
  %v1665 = vmul.f32 %v1657, %v1662
  %v1667 = vlaneseq
  %v1668 = vshrl.u32 %v1667, 7
  %v1669 = vsub.s32 0, %v1668
  %v1670 = vrot.slane %v1631, %v1669
  %v1672 = vadd.f32 %v1664, %v1670
  %v1673 = vadd.f32 %v1665, %v1670
  %v1674 = vld [vmem:[%s10] sm:$0xf]
  %v1675 = vld [vmem:[%s10 + $0x4] sm:$0xf]
  %v1676 = vld [vmem:[%s10 + $0x8] sm:$0xf]
  %v1677 = vld [vmem:[%s10 + $0xc] sm:$0xf]
  %v1678 = vpack.c.bf16 %v1673, %v1672
  %v1679 = vld [vmem:[%s11] sm:$0x1]
  %v1681 = vlaneseq
  %v1682 = vshrl.u32 %v1681, 7
  %v1683 = vsub.s32 0, %v1682
  %v1684 = vrot.slane %v1679, %v1683
  %v1690 = vunpack.c.l.b16 %v1674
  %v1691 = vunpack.c.l.b16 %v1675
  %v1692 = vunpack.c.l.b16 %v1676
  %v1693 = vunpack.c.l.b16 %v1677
  %v1694 = vpack.c.b16 %v1691, %v1690
  %v1695 = vpack.c.b16 %v1693, %v1692
  %v1699 = vsel %vm73, %v1678, 0
  %1701 = vmatprep.subr.bf16.mxu0 0
  %1702 = vmatpush1.bf16.msra.mxu0 0
  %1703 = vmatprep.subr.bf16.mxu0 0
  %1704 = vmatpush1.bf16.msra.mxu0 0
  %1705 = vmatprep.subr.bf16.mxu0 0
  %1706 = vmatpush1.bf16.msra.mxu0 0
  %1707 = vmatprep.subr.bf16.mxu0 0
  %1708 = vmatpush1.bf16.msra.mxu0 0
  %1709 = vmatprep.subr.bf16.mxu0 0
  %1710 = vmatpush1.bf16.msra.mxu0 0
  %1711 = vmatprep.subr.bf16.mxu0 0
  %1712 = vmatpush1.bf16.msra.mxu0 0
  %1713 = vmatprep.subr.bf16.mxu0 0
  %1714 = vmatpush1.bf16.msra.mxu0 %v1695
  %1715 = vmatprep.subr.bf16.mxu0 0
  %1716 = vmatpush1.bf16.msra.mxu0 %v1694
  %1717 = vmatprep.subr.bf16.mxu0 0
  %1718 = vmatpush2.bf16.msra.mxu0 0
  %1719 = vmatprep.subr.bf16.mxu0 0
  %1720 = vmatpush2.bf16.msra.mxu0 0
  %1721 = vmatprep.subr.bf16.mxu0 0
  %1722 = vmatpush2.bf16.msra.mxu0 0
  %1723 = vmatprep.subr.bf16.mxu0 0
  %1724 = vmatpush2.bf16.msra.mxu0 0
  %1725 = vmatprep.subr.bf16.mxu0 0
  %1726 = vmatpush2.bf16.msra.mxu0 0
  %1727 = vmatprep.subr.bf16.mxu0 0
  %1728 = vmatpush2.bf16.msra.mxu0 0
  %1729 = vmatprep.subr.bf16.mxu0 0
  %1730 = vmatpush2.bf16.msra.mxu0 0
  %1731 = vmatprep.subr.bf16.mxu0 0
  %1732 = vmatpush2.bf16.msra.mxu0 0
  %1733 = vmatprep.mubr.bf16.mxu0 0
  %1734 = vmatmul.mubr.bf16.gmra.mxu0 %v1699
  %v1735 = vpop.f32.mrf.mxu0
  %v1736 = vadd.f32 %v1684, %v1735
  %v1737 = vpop.f32.mrf.mxu0
  %v1738 = vpop.f32.mrf.mxu0
  %v1739 = vadd.f32 %v1684, %v1738
  %v1740 = vpop.f32.mrf.mxu0
  %1741 = vdwg.mxu0
  %v1742 = vmul.f32 %v1736, 0.5
  %v1743 = vmul.f32 %v1739, 0.5
  %v1744 = vmul.f32 %v1736, 0.044715
  %v1745 = vmul.f32 %v1739, 0.044715
  %v1746 = vmul.f32 %v1744, %v1736
  %v1747 = vmul.f32 %v1745, %v1739
  %v1748 = vmul.f32 %v1746, %v1736
  %v1749 = vmul.f32 %v1747, %v1739
  %v1750 = vadd.f32 %v1736, %v1748
  %v1751 = vadd.f32 %v1739, %v1749
  %v1752 = vmul.f32 %v1750, 0.7978846
  %v1753 = vmul.f32 %v1751, 0.7978846
  %v1754 = vtanh.pop %v1752
  %v1755 = vtanh.pop %v1753
  %v1756 = vadd.f32 %v1754, 1.0
  %v1757 = vadd.f32 %v1755, 1.0
  %v1758 = vmul.f32 %v1742, %v1756
  %v1759 = vmul.f32 %v1743, %v1757
  %v1760 = vld [vmem:[%s12] sm:$0xf]
  %v1761 = vld [vmem:[%s12 + $0x4] sm:$0xf]
  %v1762 = vld [vmem:[%s12 + $0x8] sm:$0xf]
  %v1763 = vld [vmem:[%s12 + $0xc] sm:$0xf]
  %v1764 = vld [vmem:[%s12 + $0x10] sm:$0xf]
  %v1765 = vld [vmem:[%s12 + $0x14] sm:$0xf]
  %v1766 = vld [vmem:[%s12 + $0x18] sm:$0xf]
  %v1767 = vld [vmem:[%s12 + $0x1c] sm:$0xf]
  %v1768 = vpack.c.bf16 %v1759, %v1758
  %v1769 = vld [vmem:[%s13] sm:$0x1]
  %v1771 = vlaneseq
  %v1772 = vshrl.u32 %v1771, 7
  %v1773 = vsub.s32 0, %v1772
  %v1774 = vrot.slane %v1769, %v1773
  %v1784 = vunpack.c.l.b16 %v1760
  %v1785 = vunpack.c.l.b16 %v1761
  %v1786 = vunpack.c.l.b16 %v1762
  %v1787 = vunpack.c.l.b16 %v1763
  %v1788 = vunpack.c.l.b16 %v1764
  %v1789 = vunpack.c.l.b16 %v1765
  %v1790 = vunpack.c.l.b16 %v1766
  %v1791 = vunpack.c.l.b16 %v1767
  %v1792 = vpack.c.b16 %v1785, %v1784
  %v1793 = vpack.c.b16 %v1787, %v1786
  %v1794 = vpack.c.b16 %v1789, %v1788
  %v1795 = vpack.c.b16 %v1791, %v1790
  %vm1800 = vcmask 523264
  %v1802 = vsel %vm1800, %v1768, 0
  %1804 = vmatprep.subr.bf16.mxu0 0
  %1805 = vmatpush1.bf16.msra.mxu0 0
  %1806 = vmatprep.subr.bf16.mxu0 0
  %1807 = vmatpush1.bf16.msra.mxu0 0
  %1808 = vmatprep.subr.bf16.mxu0 0
  %1809 = vmatpush1.bf16.msra.mxu0 0
  %1810 = vmatprep.subr.bf16.mxu0 0
  %1811 = vmatpush1.bf16.msra.mxu0 0
  %1812 = vmatprep.subr.bf16.mxu0 0
  %1813 = vmatpush1.bf16.msra.mxu0 %v1795
  %1814 = vmatprep.subr.bf16.mxu0 0
  %1815 = vmatpush1.bf16.msra.mxu0 %v1794
  %1816 = vmatprep.subr.bf16.mxu0 0
  %1817 = vmatpush1.bf16.msra.mxu0 %v1793
  %1818 = vmatprep.subr.bf16.mxu0 0
  %1819 = vmatpush1.bf16.msra.mxu0 %v1792
  %1820 = vmatprep.subr.bf16.mxu0 0
  %1821 = vmatpush2.bf16.msra.mxu0 0
  %1822 = vmatprep.subr.bf16.mxu0 0
  %1823 = vmatpush2.bf16.msra.mxu0 0
  %1824 = vmatprep.subr.bf16.mxu0 0
  %1825 = vmatpush2.bf16.msra.mxu0 0
  %1826 = vmatprep.subr.bf16.mxu0 0
  %1827 = vmatpush2.bf16.msra.mxu0 0
  %1828 = vmatprep.subr.bf16.mxu0 0
  %1829 = vmatpush2.bf16.msra.mxu0 0
  %1830 = vmatprep.subr.bf16.mxu0 0
  %1831 = vmatpush2.bf16.msra.mxu0 0
  %1832 = vmatprep.subr.bf16.mxu0 0
  %1833 = vmatpush2.bf16.msra.mxu0 0
  %1834 = vmatprep.subr.bf16.mxu0 0
  %1835 = vmatpush2.bf16.msra.mxu0 0
  %1836 = vmatprep.mubr.bf16.mxu0 0
  %1837 = vmatmul.mubr.bf16.gmra.mxu0 %v1802
  %v1838 = vpop.f32.mrf.mxu0
  %v1839 = vadd.f32 %v1774, %v1838
  %v1840 = vpop.f32.mrf.mxu0
  %v1841 = vpop.f32.mrf.mxu0
  %v1842 = vadd.f32 %v1774, %v1841
  %v1843 = vpop.f32.mrf.mxu0
  %1844 = vdwg.mxu0
  %v1845 = vadd.f32 %v1839, %v1672
  %v1846 = vadd.f32 %v1842, %v1673
  %v1847 = vld [vmem:[%s14] sm:$0x1]
  %v1848 = vld [vmem:[%s15] sm:$0x1]
  %v1849 = vsel %vm73, %v1845, 0.0
  %1850 = vadd.xlane.f32.xlu0 %v1849
  %v1851 = vpop.xlane.xlu0 %1850
  %v1852 = vsel %vm73, %v1846, 0.0
  %1853 = vadd.xlane.f32.xlu0 %v1852
  %v1854 = vpop.xlane.xlu0 %1853
  %v1855 = vmul.f32 %v1851, %v80
  %v1856 = vmul.f32 %v1854, %v80
  %v1857 = vsub.f32 %v1845, %v1855
  %v1858 = vsub.f32 %v1846, %v1856
  %v1859 = vmul.f32 %v1857, %v1857
  %v1860 = vmul.f32 %v1858, %v1858
  %v1861 = vsel %vm73, %v1859, 0.0
  %1862 = vadd.xlane.f32.xlu0 %v1861
  %v1863 = vpop.xlane.xlu0 %1862
  %v1864 = vsel %vm73, %v1860, 0.0
  %1865 = vadd.xlane.f32.xlu0 %v1864
  %v1866 = vpop.xlane.xlu0 %1865
  %v1867 = vmul.f32 %v1863, %v80
  %v1868 = vmul.f32 %v1866, %v80
  %v1869 = vadd.f32 %v1867, 1e-12
  %v1870 = vadd.f32 %v1868, 1e-12
  %v1871 = vrsqrt.pop %v1869
  %v1872 = vrsqrt.pop %v1870
  %v1873 = vmul.f32 %v1857, %v1871
  %v1874 = vmul.f32 %v1858, %v1872
  %v1876 = vlaneseq
  %v1877 = vshrl.u32 %v1876, 7
  %v1878 = vsub.s32 0, %v1877
  %v1879 = vrot.slane %v1847, %v1878
  %v1881 = vmul.f32 %v1873, %v1879
  %v1882 = vmul.f32 %v1874, %v1879
  %v1884 = vlaneseq
  %v1885 = vshrl.u32 %v1884, 7
  %v1886 = vsub.s32 0, %v1885
  %v1887 = vrot.slane %v1848, %v1886
  %v1889 = vadd.f32 %v1881, %v1887
  %v1890 = vadd.f32 %v1882, %v1887
  %s1891 = scalar_lea.vmem %s4, 16
  %v1892 = vld [vmem:[%s1891] sm:$0xf]
  %v1893 = vld [vmem:[%s1891 + $0x4] sm:$0xf]
  %v1894 = vld [vmem:[%s1891 + $0x8] sm:$0xf]
  %v1895 = vld [vmem:[%s1891 + $0xc] sm:$0xf]
  %v1896 = vpack.c.bf16 %v1890, %v1889
  %s1897 = scalar_lea.vmem %s5, 1
  %v1898 = vld [vmem:[%s1897] sm:$0x1]
  %v1900 = vlaneseq
  %v1901 = vshrl.u32 %v1900, 7
  %v1902 = vsub.s32 0, %v1901
  %v1903 = vrot.slane %v1898, %v1902
  %v1909 = vunpack.c.l.b16 %v1892
  %v1910 = vunpack.c.l.b16 %v1893
  %v1911 = vunpack.c.l.b16 %v1894
  %v1912 = vunpack.c.l.b16 %v1895
  %v1913 = vpack.c.b16 %v1910, %v1909
  %v1914 = vpack.c.b16 %v1912, %v1911
  %v1918 = vsel %vm73, %v1896, 0
  %1920 = vmatprep.subr.bf16.mxu0 0
  %1921 = vmatpush1.bf16.msra.mxu0 0
  %1922 = vmatprep.subr.bf16.mxu0 0
  %1923 = vmatpush1.bf16.msra.mxu0 0
  %1924 = vmatprep.subr.bf16.mxu0 0
  %1925 = vmatpush1.bf16.msra.mxu0 0
  %1926 = vmatprep.subr.bf16.mxu0 0
  %1927 = vmatpush1.bf16.msra.mxu0 0
  %1928 = vmatprep.subr.bf16.mxu0 0
  %1929 = vmatpush1.bf16.msra.mxu0 0
  %1930 = vmatprep.subr.bf16.mxu0 0
  %1931 = vmatpush1.bf16.msra.mxu0 0
  %1932 = vmatprep.subr.bf16.mxu0 0
  %1933 = vmatpush1.bf16.msra.mxu0 %v1914
  %1934 = vmatprep.subr.bf16.mxu0 0
  %1935 = vmatpush1.bf16.msra.mxu0 %v1913
  %1936 = vmatprep.subr.bf16.mxu0 0
  %1937 = vmatpush2.bf16.msra.mxu0 0
  %1938 = vmatprep.subr.bf16.mxu0 0
  %1939 = vmatpush2.bf16.msra.mxu0 0
  %1940 = vmatprep.subr.bf16.mxu0 0
  %1941 = vmatpush2.bf16.msra.mxu0 0
  %1942 = vmatprep.subr.bf16.mxu0 0
  %1943 = vmatpush2.bf16.msra.mxu0 0
  %1944 = vmatprep.subr.bf16.mxu0 0
  %1945 = vmatpush2.bf16.msra.mxu0 0
  %1946 = vmatprep.subr.bf16.mxu0 0
  %1947 = vmatpush2.bf16.msra.mxu0 0
  %1948 = vmatprep.subr.bf16.mxu0 0
  %1949 = vmatpush2.bf16.msra.mxu0 0
  %1950 = vmatprep.subr.bf16.mxu0 0
  %1951 = vmatpush2.bf16.msra.mxu0 0
  %1952 = vmatprep.mubr.bf16.mxu0 0
  %1953 = vmatmul.mubr.bf16.gmra.mxu0 %v1918
  %v1954 = vpop.f32.mrf.mxu0
  %v1955 = vadd.f32 %v1903, %v1954
  %v1956 = vpop.f32.mrf.mxu0
  %v1957 = vpop.f32.mrf.mxu0
  %v1958 = vadd.f32 %v1903, %v1957
  %v1959 = vpop.f32.mrf.mxu0
  %1960 = vdwg.mxu0
  %1962 = vrot.lane.b32.xlu0 %v1955, 96
  %v1963 = vpop.permute.xlu0 %1962
  %v1964 = vsel %vm188, %v1955, 0
  %v1966 = vsel %vm188, %v1963, 0
  %1968 = vmatprep.subr.mxu0 0.0
  %1969 = vmatpush1.xpose.msra.mxu0 0.0
  %1970 = vmatprep.subr.mxu0 0.0
  %1971 = vmatpush1.xpose.msra.mxu0 0.0
  %1972 = vmatprep.subr.mxu0 0.0
  %1973 = vmatpush1.xpose.msra.mxu0 0.0
  %1974 = vmatprep.subr.mxu0 0.0
  %1975 = vmatpush1.xpose.msra.mxu0 0.0
  %1976 = vmatprep.subr.mxu0 0.0
  %1977 = vmatpush1.xpose.msra.mxu0 0.0
  %1978 = vmatprep.subr.mxu0 0.0
  %1979 = vmatpush1.xpose.msra.mxu0 0.0
  %1980 = vmatprep.subr.mxu0 0.0
  %1981 = vmatpush1.xpose.msra.mxu0 0.0
  %1982 = vmatprep.subr.mxu0 0.0
  %1983 = vmatpush1.xpose.msra.mxu0 0.0
  %1984 = vmatprep.subr.mxu0 0.0
  %1985 = vmatpush1.xpose.msra.mxu0 0.0
  %1986 = vmatprep.subr.mxu0 0.0
  %1987 = vmatpush1.xpose.msra.mxu0 0.0
  %1988 = vmatprep.subr.mxu0 0.0
  %1989 = vmatpush1.xpose.msra.mxu0 0.0
  %1990 = vmatprep.subr.mxu0 0.0
  %1991 = vmatpush1.xpose.msra.mxu0 0.0
  %1992 = vmatprep.subr.mxu0 0.0
  %1993 = vmatpush1.xpose.msra.mxu0 0.0
  %1994 = vmatprep.subr.mxu0 0.0
  %1995 = vmatpush1.xpose.msra.mxu0 0.0
  %1996 = vmatprep.subr.mxu0 0.0
  %1997 = vmatpush1.xpose.msra.mxu0 0.0
  %1998 = vmatprep.subr.mxu0 0.0
  %1999 = vmatpush1.xpose.msra.mxu0 %v1966
  %2000 = vmatprep.subr.mxu0 0.0
  %2001 = vmatpush2.xpose.msra.mxu0 0.0
  %2002 = vmatprep.subr.mxu0 0.0
  %2003 = vmatpush2.xpose.msra.mxu0 0.0
  %2004 = vmatprep.subr.mxu0 0.0
  %2005 = vmatpush2.xpose.msra.mxu0 0.0
  %2006 = vmatprep.subr.mxu0 0.0
  %2007 = vmatpush2.xpose.msra.mxu0 0.0
  %2008 = vmatprep.subr.mxu0 0.0
  %2009 = vmatpush2.xpose.msra.mxu0 0.0
  %2010 = vmatprep.subr.mxu0 0.0
  %2011 = vmatpush2.xpose.msra.mxu0 0.0
  %2012 = vmatprep.subr.mxu0 0.0
  %2013 = vmatpush2.xpose.msra.mxu0 0.0
  %2014 = vmatprep.subr.mxu0 0.0
  %2015 = vmatpush2.xpose.msra.mxu0 0.0
  %2016 = vmatprep.subr.mxu0 0.0
  %2017 = vmatpush2.xpose.msra.mxu0 0.0
  %2018 = vmatprep.subr.mxu0 0.0
  %2019 = vmatpush2.xpose.msra.mxu0 0.0
  %2020 = vmatprep.subr.mxu0 0.0
  %2021 = vmatpush2.xpose.msra.mxu0 0.0
  %2022 = vmatprep.subr.mxu0 0.0
  %2023 = vmatpush2.xpose.msra.mxu0 0.0
  %2024 = vmatprep.subr.mxu0 0.0
  %2025 = vmatpush2.xpose.msra.mxu0 0.0
  %2026 = vmatprep.subr.mxu0 0.0
  %2027 = vmatpush2.xpose.msra.mxu0 0.0
  %2028 = vmatprep.subr.mxu0 0.0
  %2029 = vmatpush2.xpose.msra.mxu0 0.0
  %2030 = vmatprep.subr.mxu0 0.0
  %2031 = vmatpush2.xpose.msra.mxu0 0.0
  %2032 = vmatprep.mubr.f32.mxu0 0.0
  %2033 = vmatmul.mubr.f32.gmra.mxu0 %v1964
  %v2034 = vpop.f32.mrf.mxu0
  %v2035 = vadd.f32 0.0, %v2034
  %v2036 = vpop.f32.mrf.mxu0
  %2037 = vdwg.mxu0
  %v2038 = vmul.f32 %v2035, 0.35355338
  %v2039 = vadd.f32 %v2038, %v267
  %v2040 = vsel %vm188, %v2039, -inf
  %2041 = vmax.xlane.f32.xlu0 %v2040
  %v2042 = vpop.xlane.xlu0 %2041
  %v2043 = vsub.f32 %v2039, %v2042
  %v2044 = vmul.f32 %v2043, 1.442695
  %v2045 = vpow.pop %v2044
  %v2046 = vsel %vm188, %v2045, 0.0
  %2047 = vadd.xlane.f32.xlu0 %v2046
  %v2048 = vpop.xlane.xlu0 %2047
  %v2049 = vrcp.pop %v2048
  %v2050 = vmul.f32 %v2045, %v2049
  %2051 = vrot.lane.b32.xlu0 %v1955, 64
  %v2052 = vpop.permute.xlu0 %2051
  %v2055 = vsel %vm188, %v2050, 0
  %2057 = vmatprep.subr.mxu0 0.0
  %2058 = vmatpush1.msra.mxu0 0.0
  %2059 = vmatprep.subr.mxu0 0.0
  %2060 = vmatpush1.msra.mxu0 0.0
  %2061 = vmatprep.subr.mxu0 0.0
  %2062 = vmatpush1.msra.mxu0 0.0
  %2063 = vmatprep.subr.mxu0 0.0
  %2064 = vmatpush1.msra.mxu0 0.0
  %2065 = vmatprep.subr.mxu0 0.0
  %2066 = vmatpush1.msra.mxu0 0.0
  %2067 = vmatprep.subr.mxu0 0.0
  %2068 = vmatpush1.msra.mxu0 0.0
  %2069 = vmatprep.subr.mxu0 0.0
  %2070 = vmatpush1.msra.mxu0 0.0
  %2071 = vmatprep.subr.mxu0 0.0
  %2072 = vmatpush1.msra.mxu0 0.0
  %2073 = vmatprep.subr.mxu0 0.0
  %2074 = vmatpush1.msra.mxu0 0.0
  %2075 = vmatprep.subr.mxu0 0.0
  %2076 = vmatpush1.msra.mxu0 0.0
  %2077 = vmatprep.subr.mxu0 0.0
  %2078 = vmatpush1.msra.mxu0 0.0
  %2079 = vmatprep.subr.mxu0 0.0
  %2080 = vmatpush1.msra.mxu0 0.0
  %2081 = vmatprep.subr.mxu0 0.0
  %2082 = vmatpush1.msra.mxu0 0.0
  %2083 = vmatprep.subr.mxu0 0.0
  %2084 = vmatpush1.msra.mxu0 0.0
  %2085 = vmatprep.subr.mxu0 0.0
  %2086 = vmatpush1.msra.mxu0 0.0
  %2087 = vmatprep.subr.mxu0 0.0
  %2088 = vmatpush1.msra.mxu0 %v2052
  %2089 = vmatprep.subr.mxu0 0.0
  %2090 = vmatpush2.msra.mxu0 0.0
  %2091 = vmatprep.subr.mxu0 0.0
  %2092 = vmatpush2.msra.mxu0 0.0
  %2093 = vmatprep.subr.mxu0 0.0
  %2094 = vmatpush2.msra.mxu0 0.0
  %2095 = vmatprep.subr.mxu0 0.0
  %2096 = vmatpush2.msra.mxu0 0.0
  %2097 = vmatprep.subr.mxu0 0.0
  %2098 = vmatpush2.msra.mxu0 0.0
  %2099 = vmatprep.subr.mxu0 0.0
  %2100 = vmatpush2.msra.mxu0 0.0
  %2101 = vmatprep.subr.mxu0 0.0
  %2102 = vmatpush2.msra.mxu0 0.0
  %2103 = vmatprep.subr.mxu0 0.0
  %2104 = vmatpush2.msra.mxu0 0.0
  %2105 = vmatprep.subr.mxu0 0.0
  %2106 = vmatpush2.msra.mxu0 0.0
  %2107 = vmatprep.subr.mxu0 0.0
  %2108 = vmatpush2.msra.mxu0 0.0
  %2109 = vmatprep.subr.mxu0 0.0
  %2110 = vmatpush2.msra.mxu0 0.0
  %2111 = vmatprep.subr.mxu0 0.0
  %2112 = vmatpush2.msra.mxu0 0.0
  %2113 = vmatprep.subr.mxu0 0.0
  %2114 = vmatpush2.msra.mxu0 0.0
  %2115 = vmatprep.subr.mxu0 0.0
  %2116 = vmatpush2.msra.mxu0 0.0
  %2117 = vmatprep.subr.mxu0 0.0
  %2118 = vmatpush2.msra.mxu0 0.0
  %2119 = vmatprep.subr.mxu0 0.0
  %2120 = vmatpush2.msra.mxu0 0.0
  %2121 = vmatprep.mubr.f32.mxu0 0.0
  %2122 = vmatmul.mubr.f32.gmra.mxu0 %v2055
  %v2123 = vpop.f32.mrf.mxu0
  %v2124 = vadd.f32 0.0, %v2123
  %v2125 = vpop.f32.mrf.mxu0
  %2126 = vdwg.mxu0
  %2127 = vrot.lane.b32.xlu0 %v1955, 120
  %v2128 = vpop.permute.xlu0 %2127
  %2129 = vrot.lane.b32.xlu0 %v1955, 88
  %v2130 = vpop.permute.xlu0 %2129
  %v2131 = vsel %vm188, %v2128, 0
  %v2133 = vsel %vm188, %v2130, 0
  %2135 = vmatprep.subr.mxu0 0.0
  %2136 = vmatpush1.xpose.msra.mxu0 0.0
  %2137 = vmatprep.subr.mxu0 0.0
  %2138 = vmatpush1.xpose.msra.mxu0 0.0
  %2139 = vmatprep.subr.mxu0 0.0
  %2140 = vmatpush1.xpose.msra.mxu0 0.0
  %2141 = vmatprep.subr.mxu0 0.0
  %2142 = vmatpush1.xpose.msra.mxu0 0.0
  %2143 = vmatprep.subr.mxu0 0.0
  %2144 = vmatpush1.xpose.msra.mxu0 0.0
  %2145 = vmatprep.subr.mxu0 0.0
  %2146 = vmatpush1.xpose.msra.mxu0 0.0
  %2147 = vmatprep.subr.mxu0 0.0
  %2148 = vmatpush1.xpose.msra.mxu0 0.0
  %2149 = vmatprep.subr.mxu0 0.0
  %2150 = vmatpush1.xpose.msra.mxu0 0.0
  %2151 = vmatprep.subr.mxu0 0.0
  %2152 = vmatpush1.xpose.msra.mxu0 0.0
  %2153 = vmatprep.subr.mxu0 0.0
  %2154 = vmatpush1.xpose.msra.mxu0 0.0
  %2155 = vmatprep.subr.mxu0 0.0
  %2156 = vmatpush1.xpose.msra.mxu0 0.0
  %2157 = vmatprep.subr.mxu0 0.0
  %2158 = vmatpush1.xpose.msra.mxu0 0.0
  %2159 = vmatprep.subr.mxu0 0.0
  %2160 = vmatpush1.xpose.msra.mxu0 0.0
  %2161 = vmatprep.subr.mxu0 0.0
  %2162 = vmatpush1.xpose.msra.mxu0 0.0
  %2163 = vmatprep.subr.mxu0 0.0
  %2164 = vmatpush1.xpose.msra.mxu0 0.0
  %2165 = vmatprep.subr.mxu0 0.0
  %2166 = vmatpush1.xpose.msra.mxu0 %v2133
  %2167 = vmatprep.subr.mxu0 0.0
  %2168 = vmatpush2.xpose.msra.mxu0 0.0
  %2169 = vmatprep.subr.mxu0 0.0
  %2170 = vmatpush2.xpose.msra.mxu0 0.0
  %2171 = vmatprep.subr.mxu0 0.0
  %2172 = vmatpush2.xpose.msra.mxu0 0.0
  %2173 = vmatprep.subr.mxu0 0.0
  %2174 = vmatpush2.xpose.msra.mxu0 0.0
  %2175 = vmatprep.subr.mxu0 0.0
  %2176 = vmatpush2.xpose.msra.mxu0 0.0
  %2177 = vmatprep.subr.mxu0 0.0
  %2178 = vmatpush2.xpose.msra.mxu0 0.0
  %2179 = vmatprep.subr.mxu0 0.0
  %2180 = vmatpush2.xpose.msra.mxu0 0.0
  %2181 = vmatprep.subr.mxu0 0.0
  %2182 = vmatpush2.xpose.msra.mxu0 0.0
  %2183 = vmatprep.subr.mxu0 0.0
  %2184 = vmatpush2.xpose.msra.mxu0 0.0
  %2185 = vmatprep.subr.mxu0 0.0
  %2186 = vmatpush2.xpose.msra.mxu0 0.0
  %2187 = vmatprep.subr.mxu0 0.0
  %2188 = vmatpush2.xpose.msra.mxu0 0.0
  %2189 = vmatprep.subr.mxu0 0.0
  %2190 = vmatpush2.xpose.msra.mxu0 0.0
  %2191 = vmatprep.subr.mxu0 0.0
  %2192 = vmatpush2.xpose.msra.mxu0 0.0
  %2193 = vmatprep.subr.mxu0 0.0
  %2194 = vmatpush2.xpose.msra.mxu0 0.0
  %2195 = vmatprep.subr.mxu0 0.0
  %2196 = vmatpush2.xpose.msra.mxu0 0.0
  %2197 = vmatprep.subr.mxu0 0.0
  %2198 = vmatpush2.xpose.msra.mxu0 0.0
  %2199 = vmatprep.mubr.f32.mxu0 0.0
  %2200 = vmatmul.mubr.f32.gmra.mxu0 %v2131
  %v2201 = vpop.f32.mrf.mxu0
  %v2202 = vadd.f32 0.0, %v2201
  %v2203 = vpop.f32.mrf.mxu0
  %2204 = vdwg.mxu0
  %v2205 = vmul.f32 %v2202, 0.35355338
  %v2206 = vadd.f32 %v2205, %v267
  %v2207 = vsel %vm188, %v2206, -inf
  %2208 = vmax.xlane.f32.xlu0 %v2207
  %v2209 = vpop.xlane.xlu0 %2208
  %v2210 = vsub.f32 %v2206, %v2209
  %v2211 = vmul.f32 %v2210, 1.442695
  %v2212 = vpow.pop %v2211
  %v2213 = vsel %vm188, %v2212, 0.0
  %2214 = vadd.xlane.f32.xlu0 %v2213
  %v2215 = vpop.xlane.xlu0 %2214
  %v2216 = vrcp.pop %v2215
  %v2217 = vmul.f32 %v2212, %v2216
  %2218 = vrot.lane.b32.xlu0 %v1955, 56
  %v2219 = vpop.permute.xlu0 %2218
  %v2222 = vsel %vm188, %v2217, 0
  %2224 = vmatprep.subr.mxu0 0.0
  %2225 = vmatpush1.msra.mxu0 0.0
  %2226 = vmatprep.subr.mxu0 0.0
  %2227 = vmatpush1.msra.mxu0 0.0
  %2228 = vmatprep.subr.mxu0 0.0
  %2229 = vmatpush1.msra.mxu0 0.0
  %2230 = vmatprep.subr.mxu0 0.0
  %2231 = vmatpush1.msra.mxu0 0.0
  %2232 = vmatprep.subr.mxu0 0.0
  %2233 = vmatpush1.msra.mxu0 0.0
  %2234 = vmatprep.subr.mxu0 0.0
  %2235 = vmatpush1.msra.mxu0 0.0
  %2236 = vmatprep.subr.mxu0 0.0
  %2237 = vmatpush1.msra.mxu0 0.0
  %2238 = vmatprep.subr.mxu0 0.0
  %2239 = vmatpush1.msra.mxu0 0.0
  %2240 = vmatprep.subr.mxu0 0.0
  %2241 = vmatpush1.msra.mxu0 0.0
  %2242 = vmatprep.subr.mxu0 0.0
  %2243 = vmatpush1.msra.mxu0 0.0
  %2244 = vmatprep.subr.mxu0 0.0
  %2245 = vmatpush1.msra.mxu0 0.0
  %2246 = vmatprep.subr.mxu0 0.0
  %2247 = vmatpush1.msra.mxu0 0.0
  %2248 = vmatprep.subr.mxu0 0.0
  %2249 = vmatpush1.msra.mxu0 0.0
  %2250 = vmatprep.subr.mxu0 0.0
  %2251 = vmatpush1.msra.mxu0 0.0
  %2252 = vmatprep.subr.mxu0 0.0
  %2253 = vmatpush1.msra.mxu0 0.0
  %2254 = vmatprep.subr.mxu0 0.0
  %2255 = vmatpush1.msra.mxu0 %v2219
  %2256 = vmatprep.subr.mxu0 0.0
  %2257 = vmatpush2.msra.mxu0 0.0
  %2258 = vmatprep.subr.mxu0 0.0
  %2259 = vmatpush2.msra.mxu0 0.0
  %2260 = vmatprep.subr.mxu0 0.0
  %2261 = vmatpush2.msra.mxu0 0.0
  %2262 = vmatprep.subr.mxu0 0.0
  %2263 = vmatpush2.msra.mxu0 0.0
  %2264 = vmatprep.subr.mxu0 0.0
  %2265 = vmatpush2.msra.mxu0 0.0
  %2266 = vmatprep.subr.mxu0 0.0
  %2267 = vmatpush2.msra.mxu0 0.0
  %2268 = vmatprep.subr.mxu0 0.0
  %2269 = vmatpush2.msra.mxu0 0.0
  %2270 = vmatprep.subr.mxu0 0.0
  %2271 = vmatpush2.msra.mxu0 0.0
  %2272 = vmatprep.subr.mxu0 0.0
  %2273 = vmatpush2.msra.mxu0 0.0
  %2274 = vmatprep.subr.mxu0 0.0
  %2275 = vmatpush2.msra.mxu0 0.0
  %2276 = vmatprep.subr.mxu0 0.0
  %2277 = vmatpush2.msra.mxu0 0.0
  %2278 = vmatprep.subr.mxu0 0.0
  %2279 = vmatpush2.msra.mxu0 0.0
  %2280 = vmatprep.subr.mxu0 0.0
  %2281 = vmatpush2.msra.mxu0 0.0
  %2282 = vmatprep.subr.mxu0 0.0
  %2283 = vmatpush2.msra.mxu0 0.0
  %2284 = vmatprep.subr.mxu0 0.0
  %2285 = vmatpush2.msra.mxu0 0.0
  %2286 = vmatprep.subr.mxu0 0.0
  %2287 = vmatpush2.msra.mxu0 0.0
  %2288 = vmatprep.mubr.f32.mxu0 0.0
  %2289 = vmatmul.mubr.f32.gmra.mxu0 %v2222
  %v2290 = vpop.f32.mrf.mxu0
  %v2291 = vadd.f32 0.0, %v2290
  %v2292 = vpop.f32.mrf.mxu0
  %2293 = vdwg.mxu0
  %2294 = vrot.lane.b32.xlu0 %v1955, 112
  %v2295 = vpop.permute.xlu0 %2294
  %2296 = vrot.lane.b32.xlu0 %v1955, 80
  %v2297 = vpop.permute.xlu0 %2296
  %v2298 = vsel %vm188, %v2295, 0
  %v2300 = vsel %vm188, %v2297, 0
  %2302 = vmatprep.subr.mxu0 0.0
  %2303 = vmatpush1.xpose.msra.mxu0 0.0
  %2304 = vmatprep.subr.mxu0 0.0
  %2305 = vmatpush1.xpose.msra.mxu0 0.0
  %2306 = vmatprep.subr.mxu0 0.0
  %2307 = vmatpush1.xpose.msra.mxu0 0.0
  %2308 = vmatprep.subr.mxu0 0.0
  %2309 = vmatpush1.xpose.msra.mxu0 0.0
  %2310 = vmatprep.subr.mxu0 0.0
  %2311 = vmatpush1.xpose.msra.mxu0 0.0
  %2312 = vmatprep.subr.mxu0 0.0
  %2313 = vmatpush1.xpose.msra.mxu0 0.0
  %2314 = vmatprep.subr.mxu0 0.0
  %2315 = vmatpush1.xpose.msra.mxu0 0.0
  %2316 = vmatprep.subr.mxu0 0.0
  %2317 = vmatpush1.xpose.msra.mxu0 0.0
  %2318 = vmatprep.subr.mxu0 0.0
  %2319 = vmatpush1.xpose.msra.mxu0 0.0
  %2320 = vmatprep.subr.mxu0 0.0
  %2321 = vmatpush1.xpose.msra.mxu0 0.0
  %2322 = vmatprep.subr.mxu0 0.0
  %2323 = vmatpush1.xpose.msra.mxu0 0.0
  %2324 = vmatprep.subr.mxu0 0.0
  %2325 = vmatpush1.xpose.msra.mxu0 0.0
  %2326 = vmatprep.subr.mxu0 0.0
  %2327 = vmatpush1.xpose.msra.mxu0 0.0
  %2328 = vmatprep.subr.mxu0 0.0
  %2329 = vmatpush1.xpose.msra.mxu0 0.0
  %2330 = vmatprep.subr.mxu0 0.0
  %2331 = vmatpush1.xpose.msra.mxu0 0.0
  %2332 = vmatprep.subr.mxu0 0.0
  %2333 = vmatpush1.xpose.msra.mxu0 %v2300
  %2334 = vmatprep.subr.mxu0 0.0
  %2335 = vmatpush2.xpose.msra.mxu0 0.0
  %2336 = vmatprep.subr.mxu0 0.0
  %2337 = vmatpush2.xpose.msra.mxu0 0.0
  %2338 = vmatprep.subr.mxu0 0.0
  %2339 = vmatpush2.xpose.msra.mxu0 0.0
  %2340 = vmatprep.subr.mxu0 0.0
  %2341 = vmatpush2.xpose.msra.mxu0 0.0
  %2342 = vmatprep.subr.mxu0 0.0
  %2343 = vmatpush2.xpose.msra.mxu0 0.0
  %2344 = vmatprep.subr.mxu0 0.0
  %2345 = vmatpush2.xpose.msra.mxu0 0.0
  %2346 = vmatprep.subr.mxu0 0.0
  %2347 = vmatpush2.xpose.msra.mxu0 0.0
  %2348 = vmatprep.subr.mxu0 0.0
  %2349 = vmatpush2.xpose.msra.mxu0 0.0
  %2350 = vmatprep.subr.mxu0 0.0
  %2351 = vmatpush2.xpose.msra.mxu0 0.0
  %2352 = vmatprep.subr.mxu0 0.0
  %2353 = vmatpush2.xpose.msra.mxu0 0.0
  %2354 = vmatprep.subr.mxu0 0.0
  %2355 = vmatpush2.xpose.msra.mxu0 0.0
  %2356 = vmatprep.subr.mxu0 0.0
  %2357 = vmatpush2.xpose.msra.mxu0 0.0
  %2358 = vmatprep.subr.mxu0 0.0
  %2359 = vmatpush2.xpose.msra.mxu0 0.0
  %2360 = vmatprep.subr.mxu0 0.0
  %2361 = vmatpush2.xpose.msra.mxu0 0.0
  %2362 = vmatprep.subr.mxu0 0.0
  %2363 = vmatpush2.xpose.msra.mxu0 0.0
  %2364 = vmatprep.subr.mxu0 0.0
  %2365 = vmatpush2.xpose.msra.mxu0 0.0
  %2366 = vmatprep.mubr.f32.mxu0 0.0
  %2367 = vmatmul.mubr.f32.gmra.mxu0 %v2298
  %v2368 = vpop.f32.mrf.mxu0
  %v2369 = vadd.f32 0.0, %v2368
  %v2370 = vpop.f32.mrf.mxu0
  %2371 = vdwg.mxu0
  %v2372 = vmul.f32 %v2369, 0.35355338
  %v2373 = vadd.f32 %v2372, %v267
  %v2374 = vsel %vm188, %v2373, -inf
  %2375 = vmax.xlane.f32.xlu0 %v2374
  %v2376 = vpop.xlane.xlu0 %2375
  %v2377 = vsub.f32 %v2373, %v2376
  %v2378 = vmul.f32 %v2377, 1.442695
  %v2379 = vpow.pop %v2378
  %v2380 = vsel %vm188, %v2379, 0.0
  %2381 = vadd.xlane.f32.xlu0 %v2380
  %v2382 = vpop.xlane.xlu0 %2381
  %v2383 = vrcp.pop %v2382
  %v2384 = vmul.f32 %v2379, %v2383
  %2385 = vrot.lane.b32.xlu0 %v1955, 48
  %v2386 = vpop.permute.xlu0 %2385
  %v2389 = vsel %vm188, %v2384, 0
  %2391 = vmatprep.subr.mxu0 0.0
  %2392 = vmatpush1.msra.mxu0 0.0
  %2393 = vmatprep.subr.mxu0 0.0
  %2394 = vmatpush1.msra.mxu0 0.0
  %2395 = vmatprep.subr.mxu0 0.0
  %2396 = vmatpush1.msra.mxu0 0.0
  %2397 = vmatprep.subr.mxu0 0.0
  %2398 = vmatpush1.msra.mxu0 0.0
  %2399 = vmatprep.subr.mxu0 0.0
  %2400 = vmatpush1.msra.mxu0 0.0
  %2401 = vmatprep.subr.mxu0 0.0
  %2402 = vmatpush1.msra.mxu0 0.0
  %2403 = vmatprep.subr.mxu0 0.0
  %2404 = vmatpush1.msra.mxu0 0.0
  %2405 = vmatprep.subr.mxu0 0.0
  %2406 = vmatpush1.msra.mxu0 0.0
  %2407 = vmatprep.subr.mxu0 0.0
  %2408 = vmatpush1.msra.mxu0 0.0
  %2409 = vmatprep.subr.mxu0 0.0
  %2410 = vmatpush1.msra.mxu0 0.0
  %2411 = vmatprep.subr.mxu0 0.0
  %2412 = vmatpush1.msra.mxu0 0.0
  %2413 = vmatprep.subr.mxu0 0.0
  %2414 = vmatpush1.msra.mxu0 0.0
  %2415 = vmatprep.subr.mxu0 0.0
  %2416 = vmatpush1.msra.mxu0 0.0
  %2417 = vmatprep.subr.mxu0 0.0
  %2418 = vmatpush1.msra.mxu0 0.0
  %2419 = vmatprep.subr.mxu0 0.0
  %2420 = vmatpush1.msra.mxu0 0.0
  %2421 = vmatprep.subr.mxu0 0.0
  %2422 = vmatpush1.msra.mxu0 %v2386
  %2423 = vmatprep.subr.mxu0 0.0
  %2424 = vmatpush2.msra.mxu0 0.0
  %2425 = vmatprep.subr.mxu0 0.0
  %2426 = vmatpush2.msra.mxu0 0.0
  %2427 = vmatprep.subr.mxu0 0.0
  %2428 = vmatpush2.msra.mxu0 0.0
  %2429 = vmatprep.subr.mxu0 0.0
  %2430 = vmatpush2.msra.mxu0 0.0
  %2431 = vmatprep.subr.mxu0 0.0
  %2432 = vmatpush2.msra.mxu0 0.0
  %2433 = vmatprep.subr.mxu0 0.0
  %2434 = vmatpush2.msra.mxu0 0.0
  %2435 = vmatprep.subr.mxu0 0.0
  %2436 = vmatpush2.msra.mxu0 0.0
  %2437 = vmatprep.subr.mxu0 0.0
  %2438 = vmatpush2.msra.mxu0 0.0
  %2439 = vmatprep.subr.mxu0 0.0
  %2440 = vmatpush2.msra.mxu0 0.0
  %2441 = vmatprep.subr.mxu0 0.0
  %2442 = vmatpush2.msra.mxu0 0.0
  %2443 = vmatprep.subr.mxu0 0.0
  %2444 = vmatpush2.msra.mxu0 0.0
  %2445 = vmatprep.subr.mxu0 0.0
  %2446 = vmatpush2.msra.mxu0 0.0
  %2447 = vmatprep.subr.mxu0 0.0
  %2448 = vmatpush2.msra.mxu0 0.0
  %2449 = vmatprep.subr.mxu0 0.0
  %2450 = vmatpush2.msra.mxu0 0.0
  %2451 = vmatprep.subr.mxu0 0.0
  %2452 = vmatpush2.msra.mxu0 0.0
  %2453 = vmatprep.subr.mxu0 0.0
  %2454 = vmatpush2.msra.mxu0 0.0
  %2455 = vmatprep.mubr.f32.mxu0 0.0
  %2456 = vmatmul.mubr.f32.gmra.mxu0 %v2389
  %v2457 = vpop.f32.mrf.mxu0
  %v2458 = vadd.f32 0.0, %v2457
  %v2459 = vpop.f32.mrf.mxu0
  %2460 = vdwg.mxu0
  %2461 = vrot.lane.b32.xlu0 %v1955, 104
  %v2462 = vpop.permute.xlu0 %2461
  %2463 = vrot.lane.b32.xlu0 %v1955, 72
  %v2464 = vpop.permute.xlu0 %2463
  %v2465 = vsel %vm188, %v2462, 0
  %v2467 = vsel %vm188, %v2464, 0
  %2469 = vmatprep.subr.mxu0 0.0
  %2470 = vmatpush1.xpose.msra.mxu0 0.0
  %2471 = vmatprep.subr.mxu0 0.0
  %2472 = vmatpush1.xpose.msra.mxu0 0.0
  %2473 = vmatprep.subr.mxu0 0.0
  %2474 = vmatpush1.xpose.msra.mxu0 0.0
  %2475 = vmatprep.subr.mxu0 0.0
  %2476 = vmatpush1.xpose.msra.mxu0 0.0
  %2477 = vmatprep.subr.mxu0 0.0
  %2478 = vmatpush1.xpose.msra.mxu0 0.0
  %2479 = vmatprep.subr.mxu0 0.0
  %2480 = vmatpush1.xpose.msra.mxu0 0.0
  %2481 = vmatprep.subr.mxu0 0.0
  %2482 = vmatpush1.xpose.msra.mxu0 0.0
  %2483 = vmatprep.subr.mxu0 0.0
  %2484 = vmatpush1.xpose.msra.mxu0 0.0
  %2485 = vmatprep.subr.mxu0 0.0
  %2486 = vmatpush1.xpose.msra.mxu0 0.0
  %2487 = vmatprep.subr.mxu0 0.0
  %2488 = vmatpush1.xpose.msra.mxu0 0.0
  %2489 = vmatprep.subr.mxu0 0.0
  %2490 = vmatpush1.xpose.msra.mxu0 0.0
  %2491 = vmatprep.subr.mxu0 0.0
  %2492 = vmatpush1.xpose.msra.mxu0 0.0
  %2493 = vmatprep.subr.mxu0 0.0
  %2494 = vmatpush1.xpose.msra.mxu0 0.0
  %2495 = vmatprep.subr.mxu0 0.0
  %2496 = vmatpush1.xpose.msra.mxu0 0.0
  %2497 = vmatprep.subr.mxu0 0.0
  %2498 = vmatpush1.xpose.msra.mxu0 0.0
  %2499 = vmatprep.subr.mxu0 0.0
  %2500 = vmatpush1.xpose.msra.mxu0 %v2467
  %2501 = vmatprep.subr.mxu0 0.0
  %2502 = vmatpush2.xpose.msra.mxu0 0.0
  %2503 = vmatprep.subr.mxu0 0.0
  %2504 = vmatpush2.xpose.msra.mxu0 0.0
  %2505 = vmatprep.subr.mxu0 0.0
  %2506 = vmatpush2.xpose.msra.mxu0 0.0
  %2507 = vmatprep.subr.mxu0 0.0
  %2508 = vmatpush2.xpose.msra.mxu0 0.0
  %2509 = vmatprep.subr.mxu0 0.0
  %2510 = vmatpush2.xpose.msra.mxu0 0.0
  %2511 = vmatprep.subr.mxu0 0.0
  %2512 = vmatpush2.xpose.msra.mxu0 0.0
  %2513 = vmatprep.subr.mxu0 0.0
  %2514 = vmatpush2.xpose.msra.mxu0 0.0
  %2515 = vmatprep.subr.mxu0 0.0
  %2516 = vmatpush2.xpose.msra.mxu0 0.0
  %2517 = vmatprep.subr.mxu0 0.0
  %2518 = vmatpush2.xpose.msra.mxu0 0.0
  %2519 = vmatprep.subr.mxu0 0.0
  %2520 = vmatpush2.xpose.msra.mxu0 0.0
  %2521 = vmatprep.subr.mxu0 0.0
  %2522 = vmatpush2.xpose.msra.mxu0 0.0
  %2523 = vmatprep.subr.mxu0 0.0
  %2524 = vmatpush2.xpose.msra.mxu0 0.0
  %2525 = vmatprep.subr.mxu0 0.0
  %2526 = vmatpush2.xpose.msra.mxu0 0.0
  %2527 = vmatprep.subr.mxu0 0.0
  %2528 = vmatpush2.xpose.msra.mxu0 0.0
  %2529 = vmatprep.subr.mxu0 0.0
  %2530 = vmatpush2.xpose.msra.mxu0 0.0
  %2531 = vmatprep.subr.mxu0 0.0
  %2532 = vmatpush2.xpose.msra.mxu0 0.0
  %2533 = vmatprep.mubr.f32.mxu0 0.0
  %2534 = vmatmul.mubr.f32.gmra.mxu0 %v2465
  %v2535 = vpop.f32.mrf.mxu0
  %v2536 = vadd.f32 0.0, %v2535
  %v2537 = vpop.f32.mrf.mxu0
  %2538 = vdwg.mxu0
  %v2539 = vmul.f32 %v2536, 0.35355338
  %v2540 = vadd.f32 %v2539, %v267
  %v2541 = vsel %vm188, %v2540, -inf
  %2542 = vmax.xlane.f32.xlu0 %v2541
  %v2543 = vpop.xlane.xlu0 %2542
  %v2544 = vsub.f32 %v2540, %v2543
  %v2545 = vmul.f32 %v2544, 1.442695
  %v2546 = vpow.pop %v2545
  %v2547 = vsel %vm188, %v2546, 0.0
  %2548 = vadd.xlane.f32.xlu0 %v2547
  %v2549 = vpop.xlane.xlu0 %2548
  %v2550 = vrcp.pop %v2549
  %v2551 = vmul.f32 %v2546, %v2550
  %2552 = vrot.lane.b32.xlu0 %v1955, 40
  %v2553 = vpop.permute.xlu0 %2552
  %v2556 = vsel %vm188, %v2551, 0
  %2558 = vmatprep.subr.mxu0 0.0
  %2559 = vmatpush1.msra.mxu0 0.0
  %2560 = vmatprep.subr.mxu0 0.0
  %2561 = vmatpush1.msra.mxu0 0.0
  %2562 = vmatprep.subr.mxu0 0.0
  %2563 = vmatpush1.msra.mxu0 0.0
  %2564 = vmatprep.subr.mxu0 0.0
  %2565 = vmatpush1.msra.mxu0 0.0
  %2566 = vmatprep.subr.mxu0 0.0
  %2567 = vmatpush1.msra.mxu0 0.0
  %2568 = vmatprep.subr.mxu0 0.0
  %2569 = vmatpush1.msra.mxu0 0.0
  %2570 = vmatprep.subr.mxu0 0.0
  %2571 = vmatpush1.msra.mxu0 0.0
  %2572 = vmatprep.subr.mxu0 0.0
  %2573 = vmatpush1.msra.mxu0 0.0
  %2574 = vmatprep.subr.mxu0 0.0
  %2575 = vmatpush1.msra.mxu0 0.0
  %2576 = vmatprep.subr.mxu0 0.0
  %2577 = vmatpush1.msra.mxu0 0.0
  %2578 = vmatprep.subr.mxu0 0.0
  %2579 = vmatpush1.msra.mxu0 0.0
  %2580 = vmatprep.subr.mxu0 0.0
  %2581 = vmatpush1.msra.mxu0 0.0
  %2582 = vmatprep.subr.mxu0 0.0
  %2583 = vmatpush1.msra.mxu0 0.0
  %2584 = vmatprep.subr.mxu0 0.0
  %2585 = vmatpush1.msra.mxu0 0.0
  %2586 = vmatprep.subr.mxu0 0.0
  %2587 = vmatpush1.msra.mxu0 0.0
  %2588 = vmatprep.subr.mxu0 0.0
  %2589 = vmatpush1.msra.mxu0 %v2553
  %2590 = vmatprep.subr.mxu0 0.0
  %2591 = vmatpush2.msra.mxu0 0.0
  %2592 = vmatprep.subr.mxu0 0.0
  %2593 = vmatpush2.msra.mxu0 0.0
  %2594 = vmatprep.subr.mxu0 0.0
  %2595 = vmatpush2.msra.mxu0 0.0
  %2596 = vmatprep.subr.mxu0 0.0
  %2597 = vmatpush2.msra.mxu0 0.0
  %2598 = vmatprep.subr.mxu0 0.0
  %2599 = vmatpush2.msra.mxu0 0.0
  %2600 = vmatprep.subr.mxu0 0.0
  %2601 = vmatpush2.msra.mxu0 0.0
  %2602 = vmatprep.subr.mxu0 0.0
  %2603 = vmatpush2.msra.mxu0 0.0
  %2604 = vmatprep.subr.mxu0 0.0
  %2605 = vmatpush2.msra.mxu0 0.0
  %2606 = vmatprep.subr.mxu0 0.0
  %2607 = vmatpush2.msra.mxu0 0.0
  %2608 = vmatprep.subr.mxu0 0.0
  %2609 = vmatpush2.msra.mxu0 0.0
  %2610 = vmatprep.subr.mxu0 0.0
  %2611 = vmatpush2.msra.mxu0 0.0
  %2612 = vmatprep.subr.mxu0 0.0
  %2613 = vmatpush2.msra.mxu0 0.0
  %2614 = vmatprep.subr.mxu0 0.0
  %2615 = vmatpush2.msra.mxu0 0.0
  %2616 = vmatprep.subr.mxu0 0.0
  %2617 = vmatpush2.msra.mxu0 0.0
  %2618 = vmatprep.subr.mxu0 0.0
  %2619 = vmatpush2.msra.mxu0 0.0
  %2620 = vmatprep.subr.mxu0 0.0
  %2621 = vmatpush2.msra.mxu0 0.0
  %2622 = vmatprep.mubr.f32.mxu0 0.0
  %2623 = vmatmul.mubr.f32.gmra.mxu0 %v2556
  %v2624 = vpop.f32.mrf.mxu0
  %v2625 = vadd.f32 0.0, %v2624
  %v2626 = vpop.f32.mrf.mxu0
  %2627 = vdwg.mxu0
  %2629 = vrot.lane.b32.xlu0 %v2291, 8
  %v2630 = vpop.permute.xlu0 %2629
  %2633 = vrot.lane.b32.xlu0 %v2458, 16
  %v2634 = vpop.permute.xlu0 %2633
  %2637 = vrot.lane.b32.xlu0 %v2625, 24
  %v2638 = vpop.permute.xlu0 %2637
  %v2640 = vsel %vm188, %v2124, %v2630
  %v2641 = vsel %vm870, %v2640, %v2634
  %v2642 = vsel %vm872, %v2641, %v2638
  %2644 = vrot.lane.b32.xlu0 %v1958, 96
  %v2645 = vpop.permute.xlu0 %2644
  %v2646 = vsel %vm188, %v1958, 0
  %v2648 = vsel %vm188, %v2645, 0
  %2650 = vmatprep.subr.mxu0 0.0
  %2651 = vmatpush1.xpose.msra.mxu0 0.0
  %2652 = vmatprep.subr.mxu0 0.0
  %2653 = vmatpush1.xpose.msra.mxu0 0.0
  %2654 = vmatprep.subr.mxu0 0.0
  %2655 = vmatpush1.xpose.msra.mxu0 0.0
  %2656 = vmatprep.subr.mxu0 0.0
  %2657 = vmatpush1.xpose.msra.mxu0 0.0
  %2658 = vmatprep.subr.mxu0 0.0
  %2659 = vmatpush1.xpose.msra.mxu0 0.0
  %2660 = vmatprep.subr.mxu0 0.0
  %2661 = vmatpush1.xpose.msra.mxu0 0.0
  %2662 = vmatprep.subr.mxu0 0.0
  %2663 = vmatpush1.xpose.msra.mxu0 0.0
  %2664 = vmatprep.subr.mxu0 0.0
  %2665 = vmatpush1.xpose.msra.mxu0 0.0
  %2666 = vmatprep.subr.mxu0 0.0
  %2667 = vmatpush1.xpose.msra.mxu0 0.0
  %2668 = vmatprep.subr.mxu0 0.0
  %2669 = vmatpush1.xpose.msra.mxu0 0.0
  %2670 = vmatprep.subr.mxu0 0.0
  %2671 = vmatpush1.xpose.msra.mxu0 0.0
  %2672 = vmatprep.subr.mxu0 0.0
  %2673 = vmatpush1.xpose.msra.mxu0 0.0
  %2674 = vmatprep.subr.mxu0 0.0
  %2675 = vmatpush1.xpose.msra.mxu0 0.0
  %2676 = vmatprep.subr.mxu0 0.0
  %2677 = vmatpush1.xpose.msra.mxu0 0.0
  %2678 = vmatprep.subr.mxu0 0.0
  %2679 = vmatpush1.xpose.msra.mxu0 0.0
  %2680 = vmatprep.subr.mxu0 0.0
  %2681 = vmatpush1.xpose.msra.mxu0 %v2648
  %2682 = vmatprep.subr.mxu0 0.0
  %2683 = vmatpush2.xpose.msra.mxu0 0.0
  %2684 = vmatprep.subr.mxu0 0.0
  %2685 = vmatpush2.xpose.msra.mxu0 0.0
  %2686 = vmatprep.subr.mxu0 0.0
  %2687 = vmatpush2.xpose.msra.mxu0 0.0
  %2688 = vmatprep.subr.mxu0 0.0
  %2689 = vmatpush2.xpose.msra.mxu0 0.0
  %2690 = vmatprep.subr.mxu0 0.0
  %2691 = vmatpush2.xpose.msra.mxu0 0.0
  %2692 = vmatprep.subr.mxu0 0.0
  %2693 = vmatpush2.xpose.msra.mxu0 0.0
  %2694 = vmatprep.subr.mxu0 0.0
  %2695 = vmatpush2.xpose.msra.mxu0 0.0
  %2696 = vmatprep.subr.mxu0 0.0
  %2697 = vmatpush2.xpose.msra.mxu0 0.0
  %2698 = vmatprep.subr.mxu0 0.0
  %2699 = vmatpush2.xpose.msra.mxu0 0.0
  %2700 = vmatprep.subr.mxu0 0.0
  %2701 = vmatpush2.xpose.msra.mxu0 0.0
  %2702 = vmatprep.subr.mxu0 0.0
  %2703 = vmatpush2.xpose.msra.mxu0 0.0
  %2704 = vmatprep.subr.mxu0 0.0
  %2705 = vmatpush2.xpose.msra.mxu0 0.0
  %2706 = vmatprep.subr.mxu0 0.0
  %2707 = vmatpush2.xpose.msra.mxu0 0.0
  %2708 = vmatprep.subr.mxu0 0.0
  %2709 = vmatpush2.xpose.msra.mxu0 0.0
  %2710 = vmatprep.subr.mxu0 0.0
  %2711 = vmatpush2.xpose.msra.mxu0 0.0
  %2712 = vmatprep.subr.mxu0 0.0
  %2713 = vmatpush2.xpose.msra.mxu0 0.0
  %2714 = vmatprep.mubr.f32.mxu0 0.0
  %2715 = vmatmul.mubr.f32.gmra.mxu0 %v2646
  %v2716 = vpop.f32.mrf.mxu0
  %v2717 = vadd.f32 0.0, %v2716
  %v2718 = vpop.f32.mrf.mxu0
  %2719 = vdwg.mxu0
  %v2720 = vmul.f32 %v2717, 0.35355338
  %v2721 = vadd.f32 %v2720, %v955
  %v2722 = vsel %vm188, %v2721, -inf
  %2723 = vmax.xlane.f32.xlu0 %v2722
  %v2724 = vpop.xlane.xlu0 %2723
  %v2725 = vsub.f32 %v2721, %v2724
  %v2726 = vmul.f32 %v2725, 1.442695
  %v2727 = vpow.pop %v2726
  %v2728 = vsel %vm188, %v2727, 0.0
  %2729 = vadd.xlane.f32.xlu0 %v2728
  %v2730 = vpop.xlane.xlu0 %2729
  %v2731 = vrcp.pop %v2730
  %v2732 = vmul.f32 %v2727, %v2731
  %2733 = vrot.lane.b32.xlu0 %v1958, 64
  %v2734 = vpop.permute.xlu0 %2733
  %v2737 = vsel %vm188, %v2732, 0
  %2739 = vmatprep.subr.mxu0 0.0
  %2740 = vmatpush1.msra.mxu0 0.0
  %2741 = vmatprep.subr.mxu0 0.0
  %2742 = vmatpush1.msra.mxu0 0.0
  %2743 = vmatprep.subr.mxu0 0.0
  %2744 = vmatpush1.msra.mxu0 0.0
  %2745 = vmatprep.subr.mxu0 0.0
  %2746 = vmatpush1.msra.mxu0 0.0
  %2747 = vmatprep.subr.mxu0 0.0
  %2748 = vmatpush1.msra.mxu0 0.0
  %2749 = vmatprep.subr.mxu0 0.0
  %2750 = vmatpush1.msra.mxu0 0.0
  %2751 = vmatprep.subr.mxu0 0.0
  %2752 = vmatpush1.msra.mxu0 0.0
  %2753 = vmatprep.subr.mxu0 0.0
  %2754 = vmatpush1.msra.mxu0 0.0
  %2755 = vmatprep.subr.mxu0 0.0
  %2756 = vmatpush1.msra.mxu0 0.0
  %2757 = vmatprep.subr.mxu0 0.0
  %2758 = vmatpush1.msra.mxu0 0.0
  %2759 = vmatprep.subr.mxu0 0.0
  %2760 = vmatpush1.msra.mxu0 0.0
  %2761 = vmatprep.subr.mxu0 0.0
  %2762 = vmatpush1.msra.mxu0 0.0
  %2763 = vmatprep.subr.mxu0 0.0
  %2764 = vmatpush1.msra.mxu0 0.0
  %2765 = vmatprep.subr.mxu0 0.0
  %2766 = vmatpush1.msra.mxu0 0.0
  %2767 = vmatprep.subr.mxu0 0.0
  %2768 = vmatpush1.msra.mxu0 0.0
  %2769 = vmatprep.subr.mxu0 0.0
  %2770 = vmatpush1.msra.mxu0 %v2734
  %2771 = vmatprep.subr.mxu0 0.0
  %2772 = vmatpush2.msra.mxu0 0.0
  %2773 = vmatprep.subr.mxu0 0.0
  %2774 = vmatpush2.msra.mxu0 0.0
  %2775 = vmatprep.subr.mxu0 0.0
  %2776 = vmatpush2.msra.mxu0 0.0
  %2777 = vmatprep.subr.mxu0 0.0
  %2778 = vmatpush2.msra.mxu0 0.0
  %2779 = vmatprep.subr.mxu0 0.0
  %2780 = vmatpush2.msra.mxu0 0.0
  %2781 = vmatprep.subr.mxu0 0.0
  %2782 = vmatpush2.msra.mxu0 0.0
  %2783 = vmatprep.subr.mxu0 0.0
  %2784 = vmatpush2.msra.mxu0 0.0
  %2785 = vmatprep.subr.mxu0 0.0
  %2786 = vmatpush2.msra.mxu0 0.0
  %2787 = vmatprep.subr.mxu0 0.0
  %2788 = vmatpush2.msra.mxu0 0.0
  %2789 = vmatprep.subr.mxu0 0.0
  %2790 = vmatpush2.msra.mxu0 0.0
  %2791 = vmatprep.subr.mxu0 0.0
  %2792 = vmatpush2.msra.mxu0 0.0
  %2793 = vmatprep.subr.mxu0 0.0
  %2794 = vmatpush2.msra.mxu0 0.0
  %2795 = vmatprep.subr.mxu0 0.0
  %2796 = vmatpush2.msra.mxu0 0.0
  %2797 = vmatprep.subr.mxu0 0.0
  %2798 = vmatpush2.msra.mxu0 0.0
  %2799 = vmatprep.subr.mxu0 0.0
  %2800 = vmatpush2.msra.mxu0 0.0
  %2801 = vmatprep.subr.mxu0 0.0
  %2802 = vmatpush2.msra.mxu0 0.0
  %2803 = vmatprep.mubr.f32.mxu0 0.0
  %2804 = vmatmul.mubr.f32.gmra.mxu0 %v2737
  %v2805 = vpop.f32.mrf.mxu0
  %v2806 = vadd.f32 0.0, %v2805
  %v2807 = vpop.f32.mrf.mxu0
  %2808 = vdwg.mxu0
  %2809 = vrot.lane.b32.xlu0 %v1958, 120
  %v2810 = vpop.permute.xlu0 %2809
  %2811 = vrot.lane.b32.xlu0 %v1958, 88
  %v2812 = vpop.permute.xlu0 %2811
  %v2813 = vsel %vm188, %v2810, 0
  %v2815 = vsel %vm188, %v2812, 0
  %2817 = vmatprep.subr.mxu0 0.0
  %2818 = vmatpush1.xpose.msra.mxu0 0.0
  %2819 = vmatprep.subr.mxu0 0.0
  %2820 = vmatpush1.xpose.msra.mxu0 0.0
  %2821 = vmatprep.subr.mxu0 0.0
  %2822 = vmatpush1.xpose.msra.mxu0 0.0
  %2823 = vmatprep.subr.mxu0 0.0
  %2824 = vmatpush1.xpose.msra.mxu0 0.0
  %2825 = vmatprep.subr.mxu0 0.0
  %2826 = vmatpush1.xpose.msra.mxu0 0.0
  %2827 = vmatprep.subr.mxu0 0.0
  %2828 = vmatpush1.xpose.msra.mxu0 0.0
  %2829 = vmatprep.subr.mxu0 0.0
  %2830 = vmatpush1.xpose.msra.mxu0 0.0
  %2831 = vmatprep.subr.mxu0 0.0
  %2832 = vmatpush1.xpose.msra.mxu0 0.0
  %2833 = vmatprep.subr.mxu0 0.0
  %2834 = vmatpush1.xpose.msra.mxu0 0.0
  %2835 = vmatprep.subr.mxu0 0.0
  %2836 = vmatpush1.xpose.msra.mxu0 0.0
  %2837 = vmatprep.subr.mxu0 0.0
  %2838 = vmatpush1.xpose.msra.mxu0 0.0
  %2839 = vmatprep.subr.mxu0 0.0
  %2840 = vmatpush1.xpose.msra.mxu0 0.0
  %2841 = vmatprep.subr.mxu0 0.0
  %2842 = vmatpush1.xpose.msra.mxu0 0.0
  %2843 = vmatprep.subr.mxu0 0.0
  %2844 = vmatpush1.xpose.msra.mxu0 0.0
  %2845 = vmatprep.subr.mxu0 0.0
  %2846 = vmatpush1.xpose.msra.mxu0 0.0
  %2847 = vmatprep.subr.mxu0 0.0
  %2848 = vmatpush1.xpose.msra.mxu0 %v2815
  %2849 = vmatprep.subr.mxu0 0.0
  %2850 = vmatpush2.xpose.msra.mxu0 0.0
  %2851 = vmatprep.subr.mxu0 0.0
  %2852 = vmatpush2.xpose.msra.mxu0 0.0
  %2853 = vmatprep.subr.mxu0 0.0
  %2854 = vmatpush2.xpose.msra.mxu0 0.0
  %2855 = vmatprep.subr.mxu0 0.0
  %2856 = vmatpush2.xpose.msra.mxu0 0.0
  %2857 = vmatprep.subr.mxu0 0.0
  %2858 = vmatpush2.xpose.msra.mxu0 0.0
  %2859 = vmatprep.subr.mxu0 0.0
  %2860 = vmatpush2.xpose.msra.mxu0 0.0
  %2861 = vmatprep.subr.mxu0 0.0
  %2862 = vmatpush2.xpose.msra.mxu0 0.0
  %2863 = vmatprep.subr.mxu0 0.0
  %2864 = vmatpush2.xpose.msra.mxu0 0.0
  %2865 = vmatprep.subr.mxu0 0.0
  %2866 = vmatpush2.xpose.msra.mxu0 0.0
  %2867 = vmatprep.subr.mxu0 0.0
  %2868 = vmatpush2.xpose.msra.mxu0 0.0
  %2869 = vmatprep.subr.mxu0 0.0
  %2870 = vmatpush2.xpose.msra.mxu0 0.0
  %2871 = vmatprep.subr.mxu0 0.0
  %2872 = vmatpush2.xpose.msra.mxu0 0.0
  %2873 = vmatprep.subr.mxu0 0.0
  %2874 = vmatpush2.xpose.msra.mxu0 0.0
  %2875 = vmatprep.subr.mxu0 0.0
  %2876 = vmatpush2.xpose.msra.mxu0 0.0
  %2877 = vmatprep.subr.mxu0 0.0
  %2878 = vmatpush2.xpose.msra.mxu0 0.0
  %2879 = vmatprep.subr.mxu0 0.0
  %2880 = vmatpush2.xpose.msra.mxu0 0.0
  %2881 = vmatprep.mubr.f32.mxu0 0.0
  %2882 = vmatmul.mubr.f32.gmra.mxu0 %v2813
  %v2883 = vpop.f32.mrf.mxu0
  %v2884 = vadd.f32 0.0, %v2883
  %v2885 = vpop.f32.mrf.mxu0
  %2886 = vdwg.mxu0
  %v2887 = vmul.f32 %v2884, 0.35355338
  %v2888 = vadd.f32 %v2887, %v955
  %v2889 = vsel %vm188, %v2888, -inf
  %2890 = vmax.xlane.f32.xlu0 %v2889
  %v2891 = vpop.xlane.xlu0 %2890
  %v2892 = vsub.f32 %v2888, %v2891
  %v2893 = vmul.f32 %v2892, 1.442695
  %v2894 = vpow.pop %v2893
  %v2895 = vsel %vm188, %v2894, 0.0
  %2896 = vadd.xlane.f32.xlu0 %v2895
  %v2897 = vpop.xlane.xlu0 %2896
  %v2898 = vrcp.pop %v2897
  %v2899 = vmul.f32 %v2894, %v2898
  %2900 = vrot.lane.b32.xlu0 %v1958, 56
  %v2901 = vpop.permute.xlu0 %2900
  %v2904 = vsel %vm188, %v2899, 0
  %2906 = vmatprep.subr.mxu0 0.0
  %2907 = vmatpush1.msra.mxu0 0.0
  %2908 = vmatprep.subr.mxu0 0.0
  %2909 = vmatpush1.msra.mxu0 0.0
  %2910 = vmatprep.subr.mxu0 0.0
  %2911 = vmatpush1.msra.mxu0 0.0
  %2912 = vmatprep.subr.mxu0 0.0
  %2913 = vmatpush1.msra.mxu0 0.0
  %2914 = vmatprep.subr.mxu0 0.0
  %2915 = vmatpush1.msra.mxu0 0.0
  %2916 = vmatprep.subr.mxu0 0.0
  %2917 = vmatpush1.msra.mxu0 0.0
  %2918 = vmatprep.subr.mxu0 0.0
  %2919 = vmatpush1.msra.mxu0 0.0
  %2920 = vmatprep.subr.mxu0 0.0
  %2921 = vmatpush1.msra.mxu0 0.0
  %2922 = vmatprep.subr.mxu0 0.0
  %2923 = vmatpush1.msra.mxu0 0.0
  %2924 = vmatprep.subr.mxu0 0.0
  %2925 = vmatpush1.msra.mxu0 0.0
  %2926 = vmatprep.subr.mxu0 0.0
  %2927 = vmatpush1.msra.mxu0 0.0
  %2928 = vmatprep.subr.mxu0 0.0
  %2929 = vmatpush1.msra.mxu0 0.0
  %2930 = vmatprep.subr.mxu0 0.0
  %2931 = vmatpush1.msra.mxu0 0.0
  %2932 = vmatprep.subr.mxu0 0.0
  %2933 = vmatpush1.msra.mxu0 0.0
  %2934 = vmatprep.subr.mxu0 0.0
  %2935 = vmatpush1.msra.mxu0 0.0
  %2936 = vmatprep.subr.mxu0 0.0
  %2937 = vmatpush1.msra.mxu0 %v2901
  %2938 = vmatprep.subr.mxu0 0.0
  %2939 = vmatpush2.msra.mxu0 0.0
  %2940 = vmatprep.subr.mxu0 0.0
  %2941 = vmatpush2.msra.mxu0 0.0
  %2942 = vmatprep.subr.mxu0 0.0
  %2943 = vmatpush2.msra.mxu0 0.0
  %2944 = vmatprep.subr.mxu0 0.0
  %2945 = vmatpush2.msra.mxu0 0.0
  %2946 = vmatprep.subr.mxu0 0.0
  %2947 = vmatpush2.msra.mxu0 0.0
  %2948 = vmatprep.subr.mxu0 0.0
  %2949 = vmatpush2.msra.mxu0 0.0
  %2950 = vmatprep.subr.mxu0 0.0
  %2951 = vmatpush2.msra.mxu0 0.0
  %2952 = vmatprep.subr.mxu0 0.0
  %2953 = vmatpush2.msra.mxu0 0.0
  %2954 = vmatprep.subr.mxu0 0.0
  %2955 = vmatpush2.msra.mxu0 0.0
  %2956 = vmatprep.subr.mxu0 0.0
  %2957 = vmatpush2.msra.mxu0 0.0
  %2958 = vmatprep.subr.mxu0 0.0
  %2959 = vmatpush2.msra.mxu0 0.0
  %2960 = vmatprep.subr.mxu0 0.0
  %2961 = vmatpush2.msra.mxu0 0.0
  %2962 = vmatprep.subr.mxu0 0.0
  %2963 = vmatpush2.msra.mxu0 0.0
  %2964 = vmatprep.subr.mxu0 0.0
  %2965 = vmatpush2.msra.mxu0 0.0
  %2966 = vmatprep.subr.mxu0 0.0
  %2967 = vmatpush2.msra.mxu0 0.0
  %2968 = vmatprep.subr.mxu0 0.0
  %2969 = vmatpush2.msra.mxu0 0.0
  %2970 = vmatprep.mubr.f32.mxu0 0.0
  %2971 = vmatmul.mubr.f32.gmra.mxu0 %v2904
  %v2972 = vpop.f32.mrf.mxu0
  %v2973 = vadd.f32 0.0, %v2972
  %v2974 = vpop.f32.mrf.mxu0
  %2975 = vdwg.mxu0
  %2976 = vrot.lane.b32.xlu0 %v1958, 112
  %v2977 = vpop.permute.xlu0 %2976
  %2978 = vrot.lane.b32.xlu0 %v1958, 80
  %v2979 = vpop.permute.xlu0 %2978
  %v2980 = vsel %vm188, %v2977, 0
  %v2982 = vsel %vm188, %v2979, 0
  %2984 = vmatprep.subr.mxu0 0.0
  %2985 = vmatpush1.xpose.msra.mxu0 0.0
  %2986 = vmatprep.subr.mxu0 0.0
  %2987 = vmatpush1.xpose.msra.mxu0 0.0
  %2988 = vmatprep.subr.mxu0 0.0
  %2989 = vmatpush1.xpose.msra.mxu0 0.0
  %2990 = vmatprep.subr.mxu0 0.0
  %2991 = vmatpush1.xpose.msra.mxu0 0.0
  %2992 = vmatprep.subr.mxu0 0.0
  %2993 = vmatpush1.xpose.msra.mxu0 0.0
  %2994 = vmatprep.subr.mxu0 0.0
  %2995 = vmatpush1.xpose.msra.mxu0 0.0
  %2996 = vmatprep.subr.mxu0 0.0
  %2997 = vmatpush1.xpose.msra.mxu0 0.0
  %2998 = vmatprep.subr.mxu0 0.0
  %2999 = vmatpush1.xpose.msra.mxu0 0.0
  %3000 = vmatprep.subr.mxu0 0.0
  %3001 = vmatpush1.xpose.msra.mxu0 0.0
  %3002 = vmatprep.subr.mxu0 0.0
  %3003 = vmatpush1.xpose.msra.mxu0 0.0
  %3004 = vmatprep.subr.mxu0 0.0
  %3005 = vmatpush1.xpose.msra.mxu0 0.0
  %3006 = vmatprep.subr.mxu0 0.0
  %3007 = vmatpush1.xpose.msra.mxu0 0.0
  %3008 = vmatprep.subr.mxu0 0.0
  %3009 = vmatpush1.xpose.msra.mxu0 0.0
  %3010 = vmatprep.subr.mxu0 0.0
  %3011 = vmatpush1.xpose.msra.mxu0 0.0
  %3012 = vmatprep.subr.mxu0 0.0
  %3013 = vmatpush1.xpose.msra.mxu0 0.0
  %3014 = vmatprep.subr.mxu0 0.0
  %3015 = vmatpush1.xpose.msra.mxu0 %v2982
  %3016 = vmatprep.subr.mxu0 0.0
  %3017 = vmatpush2.xpose.msra.mxu0 0.0
  %3018 = vmatprep.subr.mxu0 0.0
  %3019 = vmatpush2.xpose.msra.mxu0 0.0
  %3020 = vmatprep.subr.mxu0 0.0
  %3021 = vmatpush2.xpose.msra.mxu0 0.0
  %3022 = vmatprep.subr.mxu0 0.0
  %3023 = vmatpush2.xpose.msra.mxu0 0.0
  %3024 = vmatprep.subr.mxu0 0.0
  %3025 = vmatpush2.xpose.msra.mxu0 0.0
  %3026 = vmatprep.subr.mxu0 0.0
  %3027 = vmatpush2.xpose.msra.mxu0 0.0
  %3028 = vmatprep.subr.mxu0 0.0
  %3029 = vmatpush2.xpose.msra.mxu0 0.0
  %3030 = vmatprep.subr.mxu0 0.0
  %3031 = vmatpush2.xpose.msra.mxu0 0.0
  %3032 = vmatprep.subr.mxu0 0.0
  %3033 = vmatpush2.xpose.msra.mxu0 0.0
  %3034 = vmatprep.subr.mxu0 0.0
  %3035 = vmatpush2.xpose.msra.mxu0 0.0
  %3036 = vmatprep.subr.mxu0 0.0
  %3037 = vmatpush2.xpose.msra.mxu0 0.0
  %3038 = vmatprep.subr.mxu0 0.0
  %3039 = vmatpush2.xpose.msra.mxu0 0.0
  %3040 = vmatprep.subr.mxu0 0.0
  %3041 = vmatpush2.xpose.msra.mxu0 0.0
  %3042 = vmatprep.subr.mxu0 0.0
  %3043 = vmatpush2.xpose.msra.mxu0 0.0
  %3044 = vmatprep.subr.mxu0 0.0
  %3045 = vmatpush2.xpose.msra.mxu0 0.0
  %3046 = vmatprep.subr.mxu0 0.0
  %3047 = vmatpush2.xpose.msra.mxu0 0.0
  %3048 = vmatprep.mubr.f32.mxu0 0.0
  %3049 = vmatmul.mubr.f32.gmra.mxu0 %v2980
  %v3050 = vpop.f32.mrf.mxu0
  %v3051 = vadd.f32 0.0, %v3050
  %v3052 = vpop.f32.mrf.mxu0
  %3053 = vdwg.mxu0
  %v3054 = vmul.f32 %v3051, 0.35355338
  %v3055 = vadd.f32 %v3054, %v955
  %v3056 = vsel %vm188, %v3055, -inf
  %3057 = vmax.xlane.f32.xlu0 %v3056
  %v3058 = vpop.xlane.xlu0 %3057
  %v3059 = vsub.f32 %v3055, %v3058
  %v3060 = vmul.f32 %v3059, 1.442695
  %v3061 = vpow.pop %v3060
  %v3062 = vsel %vm188, %v3061, 0.0
  %3063 = vadd.xlane.f32.xlu0 %v3062
  %v3064 = vpop.xlane.xlu0 %3063
  %v3065 = vrcp.pop %v3064
  %v3066 = vmul.f32 %v3061, %v3065
  %3067 = vrot.lane.b32.xlu0 %v1958, 48
  %v3068 = vpop.permute.xlu0 %3067
  %v3071 = vsel %vm188, %v3066, 0
  %3073 = vmatprep.subr.mxu0 0.0
  %3074 = vmatpush1.msra.mxu0 0.0
  %3075 = vmatprep.subr.mxu0 0.0
  %3076 = vmatpush1.msra.mxu0 0.0
  %3077 = vmatprep.subr.mxu0 0.0
  %3078 = vmatpush1.msra.mxu0 0.0
  %3079 = vmatprep.subr.mxu0 0.0
  %3080 = vmatpush1.msra.mxu0 0.0
  %3081 = vmatprep.subr.mxu0 0.0
  %3082 = vmatpush1.msra.mxu0 0.0
  %3083 = vmatprep.subr.mxu0 0.0
  %3084 = vmatpush1.msra.mxu0 0.0
  %3085 = vmatprep.subr.mxu0 0.0
  %3086 = vmatpush1.msra.mxu0 0.0
  %3087 = vmatprep.subr.mxu0 0.0
  %3088 = vmatpush1.msra.mxu0 0.0
  %3089 = vmatprep.subr.mxu0 0.0
  %3090 = vmatpush1.msra.mxu0 0.0
  %3091 = vmatprep.subr.mxu0 0.0
  %3092 = vmatpush1.msra.mxu0 0.0
  %3093 = vmatprep.subr.mxu0 0.0
  %3094 = vmatpush1.msra.mxu0 0.0
  %3095 = vmatprep.subr.mxu0 0.0
  %3096 = vmatpush1.msra.mxu0 0.0
  %3097 = vmatprep.subr.mxu0 0.0
  %3098 = vmatpush1.msra.mxu0 0.0
  %3099 = vmatprep.subr.mxu0 0.0
  %3100 = vmatpush1.msra.mxu0 0.0
  %3101 = vmatprep.subr.mxu0 0.0
  %3102 = vmatpush1.msra.mxu0 0.0
  %3103 = vmatprep.subr.mxu0 0.0
  %3104 = vmatpush1.msra.mxu0 %v3068
  %3105 = vmatprep.subr.mxu0 0.0
  %3106 = vmatpush2.msra.mxu0 0.0
  %3107 = vmatprep.subr.mxu0 0.0
  %3108 = vmatpush2.msra.mxu0 0.0
  %3109 = vmatprep.subr.mxu0 0.0
  %3110 = vmatpush2.msra.mxu0 0.0
  %3111 = vmatprep.subr.mxu0 0.0
  %3112 = vmatpush2.msra.mxu0 0.0
  %3113 = vmatprep.subr.mxu0 0.0
  %3114 = vmatpush2.msra.mxu0 0.0
  %3115 = vmatprep.subr.mxu0 0.0
  %3116 = vmatpush2.msra.mxu0 0.0
  %3117 = vmatprep.subr.mxu0 0.0
  %3118 = vmatpush2.msra.mxu0 0.0
  %3119 = vmatprep.subr.mxu0 0.0
  %3120 = vmatpush2.msra.mxu0 0.0
  %3121 = vmatprep.subr.mxu0 0.0
  %3122 = vmatpush2.msra.mxu0 0.0
  %3123 = vmatprep.subr.mxu0 0.0
  %3124 = vmatpush2.msra.mxu0 0.0
  %3125 = vmatprep.subr.mxu0 0.0
  %3126 = vmatpush2.msra.mxu0 0.0
  %3127 = vmatprep.subr.mxu0 0.0
  %3128 = vmatpush2.msra.mxu0 0.0
  %3129 = vmatprep.subr.mxu0 0.0
  %3130 = vmatpush2.msra.mxu0 0.0
  %3131 = vmatprep.subr.mxu0 0.0
  %3132 = vmatpush2.msra.mxu0 0.0
  %3133 = vmatprep.subr.mxu0 0.0
  %3134 = vmatpush2.msra.mxu0 0.0
  %3135 = vmatprep.subr.mxu0 0.0
  %3136 = vmatpush2.msra.mxu0 0.0
  %3137 = vmatprep.mubr.f32.mxu0 0.0
  %3138 = vmatmul.mubr.f32.gmra.mxu0 %v3071
  %v3139 = vpop.f32.mrf.mxu0
  %v3140 = vadd.f32 0.0, %v3139
  %v3141 = vpop.f32.mrf.mxu0
  %3142 = vdwg.mxu0
  %3143 = vrot.lane.b32.xlu0 %v1958, 104
  %v3144 = vpop.permute.xlu0 %3143
  %3145 = vrot.lane.b32.xlu0 %v1958, 72
  %v3146 = vpop.permute.xlu0 %3145
  %v3147 = vsel %vm188, %v3144, 0
  %v3149 = vsel %vm188, %v3146, 0
  %3151 = vmatprep.subr.mxu0 0.0
  %3152 = vmatpush1.xpose.msra.mxu0 0.0
  %3153 = vmatprep.subr.mxu0 0.0
  %3154 = vmatpush1.xpose.msra.mxu0 0.0
  %3155 = vmatprep.subr.mxu0 0.0
  %3156 = vmatpush1.xpose.msra.mxu0 0.0
  %3157 = vmatprep.subr.mxu0 0.0
  %3158 = vmatpush1.xpose.msra.mxu0 0.0
  %3159 = vmatprep.subr.mxu0 0.0
  %3160 = vmatpush1.xpose.msra.mxu0 0.0
  %3161 = vmatprep.subr.mxu0 0.0
  %3162 = vmatpush1.xpose.msra.mxu0 0.0
  %3163 = vmatprep.subr.mxu0 0.0
  %3164 = vmatpush1.xpose.msra.mxu0 0.0
  %3165 = vmatprep.subr.mxu0 0.0
  %3166 = vmatpush1.xpose.msra.mxu0 0.0
  %3167 = vmatprep.subr.mxu0 0.0
  %3168 = vmatpush1.xpose.msra.mxu0 0.0
  %3169 = vmatprep.subr.mxu0 0.0
  %3170 = vmatpush1.xpose.msra.mxu0 0.0
  %3171 = vmatprep.subr.mxu0 0.0
  %3172 = vmatpush1.xpose.msra.mxu0 0.0
  %3173 = vmatprep.subr.mxu0 0.0
  %3174 = vmatpush1.xpose.msra.mxu0 0.0
  %3175 = vmatprep.subr.mxu0 0.0
  %3176 = vmatpush1.xpose.msra.mxu0 0.0
  %3177 = vmatprep.subr.mxu0 0.0
  %3178 = vmatpush1.xpose.msra.mxu0 0.0
  %3179 = vmatprep.subr.mxu0 0.0
  %3180 = vmatpush1.xpose.msra.mxu0 0.0
  %3181 = vmatprep.subr.mxu0 0.0
  %3182 = vmatpush1.xpose.msra.mxu0 %v3149
  %3183 = vmatprep.subr.mxu0 0.0
  %3184 = vmatpush2.xpose.msra.mxu0 0.0
  %3185 = vmatprep.subr.mxu0 0.0
  %3186 = vmatpush2.xpose.msra.mxu0 0.0
  %3187 = vmatprep.subr.mxu0 0.0
  %3188 = vmatpush2.xpose.msra.mxu0 0.0
  %3189 = vmatprep.subr.mxu0 0.0
  %3190 = vmatpush2.xpose.msra.mxu0 0.0
  %3191 = vmatprep.subr.mxu0 0.0
  %3192 = vmatpush2.xpose.msra.mxu0 0.0
  %3193 = vmatprep.subr.mxu0 0.0
  %3194 = vmatpush2.xpose.msra.mxu0 0.0
  %3195 = vmatprep.subr.mxu0 0.0
  %3196 = vmatpush2.xpose.msra.mxu0 0.0
  %3197 = vmatprep.subr.mxu0 0.0
  %3198 = vmatpush2.xpose.msra.mxu0 0.0
  %3199 = vmatprep.subr.mxu0 0.0
  %3200 = vmatpush2.xpose.msra.mxu0 0.0
  %3201 = vmatprep.subr.mxu0 0.0
  %3202 = vmatpush2.xpose.msra.mxu0 0.0
  %3203 = vmatprep.subr.mxu0 0.0
  %3204 = vmatpush2.xpose.msra.mxu0 0.0
  %3205 = vmatprep.subr.mxu0 0.0
  %3206 = vmatpush2.xpose.msra.mxu0 0.0
  %3207 = vmatprep.subr.mxu0 0.0
  %3208 = vmatpush2.xpose.msra.mxu0 0.0
  %3209 = vmatprep.subr.mxu0 0.0
  %3210 = vmatpush2.xpose.msra.mxu0 0.0
  %3211 = vmatprep.subr.mxu0 0.0
  %3212 = vmatpush2.xpose.msra.mxu0 0.0
  %3213 = vmatprep.subr.mxu0 0.0
  %3214 = vmatpush2.xpose.msra.mxu0 0.0
  %3215 = vmatprep.mubr.f32.mxu0 0.0
  %3216 = vmatmul.mubr.f32.gmra.mxu0 %v3147
  %v3217 = vpop.f32.mrf.mxu0
  %v3218 = vadd.f32 0.0, %v3217
  %v3219 = vpop.f32.mrf.mxu0
  %3220 = vdwg.mxu0
  %v3221 = vmul.f32 %v3218, 0.35355338
  %v3222 = vadd.f32 %v3221, %v955
  %v3223 = vsel %vm188, %v3222, -inf
  %3224 = vmax.xlane.f32.xlu0 %v3223
  %v3225 = vpop.xlane.xlu0 %3224
  %v3226 = vsub.f32 %v3222, %v3225
  %v3227 = vmul.f32 %v3226, 1.442695
  %v3228 = vpow.pop %v3227
  %v3229 = vsel %vm188, %v3228, 0.0
  %3230 = vadd.xlane.f32.xlu0 %v3229
  %v3231 = vpop.xlane.xlu0 %3230
  %v3232 = vrcp.pop %v3231
  %v3233 = vmul.f32 %v3228, %v3232
  %3234 = vrot.lane.b32.xlu0 %v1958, 40
  %v3235 = vpop.permute.xlu0 %3234
  %v3238 = vsel %vm188, %v3233, 0
  %3240 = vmatprep.subr.mxu0 0.0
  %3241 = vmatpush1.msra.mxu0 0.0
  %3242 = vmatprep.subr.mxu0 0.0
  %3243 = vmatpush1.msra.mxu0 0.0
  %3244 = vmatprep.subr.mxu0 0.0
  %3245 = vmatpush1.msra.mxu0 0.0
  %3246 = vmatprep.subr.mxu0 0.0
  %3247 = vmatpush1.msra.mxu0 0.0
  %3248 = vmatprep.subr.mxu0 0.0
  %3249 = vmatpush1.msra.mxu0 0.0
  %3250 = vmatprep.subr.mxu0 0.0
  %3251 = vmatpush1.msra.mxu0 0.0
  %3252 = vmatprep.subr.mxu0 0.0
  %3253 = vmatpush1.msra.mxu0 0.0
  %3254 = vmatprep.subr.mxu0 0.0
  %3255 = vmatpush1.msra.mxu0 0.0
  %3256 = vmatprep.subr.mxu0 0.0
  %3257 = vmatpush1.msra.mxu0 0.0
  %3258 = vmatprep.subr.mxu0 0.0
  %3259 = vmatpush1.msra.mxu0 0.0
  %3260 = vmatprep.subr.mxu0 0.0
  %3261 = vmatpush1.msra.mxu0 0.0
  %3262 = vmatprep.subr.mxu0 0.0
  %3263 = vmatpush1.msra.mxu0 0.0
  %3264 = vmatprep.subr.mxu0 0.0
  %3265 = vmatpush1.msra.mxu0 0.0
  %3266 = vmatprep.subr.mxu0 0.0
  %3267 = vmatpush1.msra.mxu0 0.0
  %3268 = vmatprep.subr.mxu0 0.0
  %3269 = vmatpush1.msra.mxu0 0.0
  %3270 = vmatprep.subr.mxu0 0.0
  %3271 = vmatpush1.msra.mxu0 %v3235
  %3272 = vmatprep.subr.mxu0 0.0
  %3273 = vmatpush2.msra.mxu0 0.0
  %3274 = vmatprep.subr.mxu0 0.0
  %3275 = vmatpush2.msra.mxu0 0.0
  %3276 = vmatprep.subr.mxu0 0.0
  %3277 = vmatpush2.msra.mxu0 0.0
  %3278 = vmatprep.subr.mxu0 0.0
  %3279 = vmatpush2.msra.mxu0 0.0
  %3280 = vmatprep.subr.mxu0 0.0
  %3281 = vmatpush2.msra.mxu0 0.0
  %3282 = vmatprep.subr.mxu0 0.0
  %3283 = vmatpush2.msra.mxu0 0.0
  %3284 = vmatprep.subr.mxu0 0.0
  %3285 = vmatpush2.msra.mxu0 0.0
  %3286 = vmatprep.subr.mxu0 0.0
  %3287 = vmatpush2.msra.mxu0 0.0
  %3288 = vmatprep.subr.mxu0 0.0
  %3289 = vmatpush2.msra.mxu0 0.0
  %3290 = vmatprep.subr.mxu0 0.0
  %3291 = vmatpush2.msra.mxu0 0.0
  %3292 = vmatprep.subr.mxu0 0.0
  %3293 = vmatpush2.msra.mxu0 0.0
  %3294 = vmatprep.subr.mxu0 0.0
  %3295 = vmatpush2.msra.mxu0 0.0
  %3296 = vmatprep.subr.mxu0 0.0
  %3297 = vmatpush2.msra.mxu0 0.0
  %3298 = vmatprep.subr.mxu0 0.0
  %3299 = vmatpush2.msra.mxu0 0.0
  %3300 = vmatprep.subr.mxu0 0.0
  %3301 = vmatpush2.msra.mxu0 0.0
  %3302 = vmatprep.subr.mxu0 0.0
  %3303 = vmatpush2.msra.mxu0 0.0
  %3304 = vmatprep.mubr.f32.mxu0 0.0
  %3305 = vmatmul.mubr.f32.gmra.mxu0 %v3238
  %v3306 = vpop.f32.mrf.mxu0
  %v3307 = vadd.f32 0.0, %v3306
  %v3308 = vpop.f32.mrf.mxu0
  %3309 = vdwg.mxu0
  %3311 = vrot.lane.b32.xlu0 %v2973, 8
  %v3312 = vpop.permute.xlu0 %3311
  %3315 = vrot.lane.b32.xlu0 %v3140, 16
  %v3316 = vpop.permute.xlu0 %3315
  %3319 = vrot.lane.b32.xlu0 %v3307, 24
  %v3320 = vpop.permute.xlu0 %3319
  %v3322 = vsel %vm188, %v2806, %v3312
  %v3323 = vsel %vm870, %v3322, %v3316
  %v3324 = vsel %vm872, %v3323, %v3320
  %s3325 = scalar_lea.vmem %s6, 16
  %v3326 = vld [vmem:[%s3325] sm:$0xf]
  %v3327 = vld [vmem:[%s3325 + $0x4] sm:$0xf]
  %v3328 = vld [vmem:[%s3325 + $0x8] sm:$0xf]
  %v3329 = vld [vmem:[%s3325 + $0xc] sm:$0xf]
  %v3330 = vpack.c.bf16 %v3324, %v2642
  %s3331 = scalar_lea.vmem %s7, 1
  %v3332 = vld [vmem:[%s3331] sm:$0x1]
  %v3334 = vlaneseq
  %v3335 = vshrl.u32 %v3334, 7
  %v3336 = vsub.s32 0, %v3335
  %v3337 = vrot.slane %v3332, %v3336
  %v3343 = vunpack.c.l.b16 %v3326
  %v3344 = vunpack.c.l.b16 %v3327
  %v3345 = vunpack.c.l.b16 %v3328
  %v3346 = vunpack.c.l.b16 %v3329
  %v3347 = vpack.c.b16 %v3344, %v3343
  %v3348 = vpack.c.b16 %v3346, %v3345
  %v3352 = vsel %vm73, %v3330, 0
  %3354 = vmatprep.subr.bf16.mxu0 0
  %3355 = vmatpush1.bf16.msra.mxu0 0
  %3356 = vmatprep.subr.bf16.mxu0 0
  %3357 = vmatpush1.bf16.msra.mxu0 0
  %3358 = vmatprep.subr.bf16.mxu0 0
  %3359 = vmatpush1.bf16.msra.mxu0 0
  %3360 = vmatprep.subr.bf16.mxu0 0
  %3361 = vmatpush1.bf16.msra.mxu0 0
  %3362 = vmatprep.subr.bf16.mxu0 0
  %3363 = vmatpush1.bf16.msra.mxu0 0
  %3364 = vmatprep.subr.bf16.mxu0 0
  %3365 = vmatpush1.bf16.msra.mxu0 0
  %3366 = vmatprep.subr.bf16.mxu0 0
  %3367 = vmatpush1.bf16.msra.mxu0 %v3348
  %3368 = vmatprep.subr.bf16.mxu0 0
  %3369 = vmatpush1.bf16.msra.mxu0 %v3347
  %3370 = vmatprep.subr.bf16.mxu0 0
  %3371 = vmatpush2.bf16.msra.mxu0 0
  %3372 = vmatprep.subr.bf16.mxu0 0
  %3373 = vmatpush2.bf16.msra.mxu0 0
  %3374 = vmatprep.subr.bf16.mxu0 0
  %3375 = vmatpush2.bf16.msra.mxu0 0
  %3376 = vmatprep.subr.bf16.mxu0 0
  %3377 = vmatpush2.bf16.msra.mxu0 0
  %3378 = vmatprep.subr.bf16.mxu0 0
  %3379 = vmatpush2.bf16.msra.mxu0 0
  %3380 = vmatprep.subr.bf16.mxu0 0
  %3381 = vmatpush2.bf16.msra.mxu0 0
  %3382 = vmatprep.subr.bf16.mxu0 0
  %3383 = vmatpush2.bf16.msra.mxu0 0
  %3384 = vmatprep.subr.bf16.mxu0 0
  %3385 = vmatpush2.bf16.msra.mxu0 0
  %3386 = vmatprep.mubr.bf16.mxu0 0
  %3387 = vmatmul.mubr.bf16.gmra.mxu0 %v3352
  %v3388 = vpop.f32.mrf.mxu0
  %v3389 = vadd.f32 %v3337, %v3388
  %v3390 = vpop.f32.mrf.mxu0
  %v3391 = vpop.f32.mrf.mxu0
  %v3392 = vadd.f32 %v3337, %v3391
  %v3393 = vpop.f32.mrf.mxu0
  %3394 = vdwg.mxu0
  %v3395 = vadd.f32 %v3389, %v1889
  %v3396 = vadd.f32 %v3392, %v1890
  %s3397 = scalar_lea.vmem %s8, 1
  %v3398 = vld [vmem:[%s3397] sm:$0x1]
  %s3399 = scalar_lea.vmem %s9, 1
  %v3400 = vld [vmem:[%s3399] sm:$0x1]
  %v3401 = vsel %vm73, %v3395, 0.0
  %3402 = vadd.xlane.f32.xlu0 %v3401
  %v3403 = vpop.xlane.xlu0 %3402
  %v3404 = vsel %vm73, %v3396, 0.0
  %3405 = vadd.xlane.f32.xlu0 %v3404
  %v3406 = vpop.xlane.xlu0 %3405
  %v3407 = vmul.f32 %v3403, %v80
  %v3408 = vmul.f32 %v3406, %v80
  %v3409 = vsub.f32 %v3395, %v3407
  %v3410 = vsub.f32 %v3396, %v3408
  %v3411 = vmul.f32 %v3409, %v3409
  %v3412 = vmul.f32 %v3410, %v3410
  %v3413 = vsel %vm73, %v3411, 0.0
  %3414 = vadd.xlane.f32.xlu0 %v3413
  %v3415 = vpop.xlane.xlu0 %3414
  %v3416 = vsel %vm73, %v3412, 0.0
  %3417 = vadd.xlane.f32.xlu0 %v3416
  %v3418 = vpop.xlane.xlu0 %3417
  %v3419 = vmul.f32 %v3415, %v80
  %v3420 = vmul.f32 %v3418, %v80
  %v3421 = vadd.f32 %v3419, 1e-12
  %v3422 = vadd.f32 %v3420, 1e-12
  %v3423 = vrsqrt.pop %v3421
  %v3424 = vrsqrt.pop %v3422
  %v3425 = vmul.f32 %v3409, %v3423
  %v3426 = vmul.f32 %v3410, %v3424
  %v3428 = vlaneseq
  %v3429 = vshrl.u32 %v3428, 7
  %v3430 = vsub.s32 0, %v3429
  %v3431 = vrot.slane %v3398, %v3430
  %v3433 = vmul.f32 %v3425, %v3431
  %v3434 = vmul.f32 %v3426, %v3431
  %v3436 = vlaneseq
  %v3437 = vshrl.u32 %v3436, 7
  %v3438 = vsub.s32 0, %v3437
  %v3439 = vrot.slane %v3400, %v3438
  %v3441 = vadd.f32 %v3433, %v3439
  %v3442 = vadd.f32 %v3434, %v3439
  %s3443 = scalar_lea.vmem %s10, 16
  %v3444 = vld [vmem:[%s3443] sm:$0xf]
  %v3445 = vld [vmem:[%s3443 + $0x4] sm:$0xf]
  %v3446 = vld [vmem:[%s3443 + $0x8] sm:$0xf]
  %v3447 = vld [vmem:[%s3443 + $0xc] sm:$0xf]
  %v3448 = vpack.c.bf16 %v3442, %v3441
  %s3449 = scalar_lea.vmem %s11, 1
  %v3450 = vld [vmem:[%s3449] sm:$0x1]
  %v3452 = vlaneseq
  %v3453 = vshrl.u32 %v3452, 7
  %v3454 = vsub.s32 0, %v3453
  %v3455 = vrot.slane %v3450, %v3454
  %v3461 = vunpack.c.l.b16 %v3444
  %v3462 = vunpack.c.l.b16 %v3445
  %v3463 = vunpack.c.l.b16 %v3446
  %v3464 = vunpack.c.l.b16 %v3447
  %v3465 = vpack.c.b16 %v3462, %v3461
  %v3466 = vpack.c.b16 %v3464, %v3463
  %v3470 = vsel %vm73, %v3448, 0
  %3472 = vmatprep.subr.bf16.mxu0 0
  %3473 = vmatpush1.bf16.msra.mxu0 0
  %3474 = vmatprep.subr.bf16.mxu0 0
  %3475 = vmatpush1.bf16.msra.mxu0 0
  %3476 = vmatprep.subr.bf16.mxu0 0
  %3477 = vmatpush1.bf16.msra.mxu0 0
  %3478 = vmatprep.subr.bf16.mxu0 0
  %3479 = vmatpush1.bf16.msra.mxu0 0
  %3480 = vmatprep.subr.bf16.mxu0 0
  %3481 = vmatpush1.bf16.msra.mxu0 0
  %3482 = vmatprep.subr.bf16.mxu0 0
  %3483 = vmatpush1.bf16.msra.mxu0 0
  %3484 = vmatprep.subr.bf16.mxu0 0
  %3485 = vmatpush1.bf16.msra.mxu0 %v3466
  %3486 = vmatprep.subr.bf16.mxu0 0
  %3487 = vmatpush1.bf16.msra.mxu0 %v3465
  %3488 = vmatprep.subr.bf16.mxu0 0
  %3489 = vmatpush2.bf16.msra.mxu0 0
  %3490 = vmatprep.subr.bf16.mxu0 0
  %3491 = vmatpush2.bf16.msra.mxu0 0
  %3492 = vmatprep.subr.bf16.mxu0 0
  %3493 = vmatpush2.bf16.msra.mxu0 0
  %3494 = vmatprep.subr.bf16.mxu0 0
  %3495 = vmatpush2.bf16.msra.mxu0 0
  %3496 = vmatprep.subr.bf16.mxu0 0
  %3497 = vmatpush2.bf16.msra.mxu0 0
  %3498 = vmatprep.subr.bf16.mxu0 0
  %3499 = vmatpush2.bf16.msra.mxu0 0
  %3500 = vmatprep.subr.bf16.mxu0 0
  %3501 = vmatpush2.bf16.msra.mxu0 0
  %3502 = vmatprep.subr.bf16.mxu0 0
  %3503 = vmatpush2.bf16.msra.mxu0 0
  %3504 = vmatprep.mubr.bf16.mxu0 0
  %3505 = vmatmul.mubr.bf16.gmra.mxu0 %v3470
  %v3506 = vpop.f32.mrf.mxu0
  %v3507 = vadd.f32 %v3455, %v3506
  %v3508 = vpop.f32.mrf.mxu0
  %v3509 = vpop.f32.mrf.mxu0
  %v3510 = vadd.f32 %v3455, %v3509
  %v3511 = vpop.f32.mrf.mxu0
  %3512 = vdwg.mxu0
  %v3513 = vmul.f32 %v3507, 0.5
  %v3514 = vmul.f32 %v3510, 0.5
  %v3515 = vmul.f32 %v3507, 0.044715
  %v3516 = vmul.f32 %v3510, 0.044715
  %v3517 = vmul.f32 %v3515, %v3507
  %v3518 = vmul.f32 %v3516, %v3510
  %v3519 = vmul.f32 %v3517, %v3507
  %v3520 = vmul.f32 %v3518, %v3510
  %v3521 = vadd.f32 %v3507, %v3519
  %v3522 = vadd.f32 %v3510, %v3520
  %v3523 = vmul.f32 %v3521, 0.7978846
  %v3524 = vmul.f32 %v3522, 0.7978846
  %v3525 = vtanh.pop %v3523
  %v3526 = vtanh.pop %v3524
  %v3527 = vadd.f32 %v3525, 1.0
  %v3528 = vadd.f32 %v3526, 1.0
  %v3529 = vmul.f32 %v3513, %v3527
  %v3530 = vmul.f32 %v3514, %v3528
  %s3531 = scalar_lea.vmem %s12, 32
  %v3532 = vld [vmem:[%s3531] sm:$0xf]
  %v3533 = vld [vmem:[%s3531 + $0x4] sm:$0xf]
  %v3534 = vld [vmem:[%s3531 + $0x8] sm:$0xf]
  %v3535 = vld [vmem:[%s3531 + $0xc] sm:$0xf]
  %v3536 = vld [vmem:[%s3531 + $0x10] sm:$0xf]
  %v3537 = vld [vmem:[%s3531 + $0x14] sm:$0xf]
  %v3538 = vld [vmem:[%s3531 + $0x18] sm:$0xf]
  %v3539 = vld [vmem:[%s3531 + $0x1c] sm:$0xf]
  %v3540 = vpack.c.bf16 %v3530, %v3529
  %s3541 = scalar_lea.vmem %s13, 1
  %v3542 = vld [vmem:[%s3541] sm:$0x1]
  %v3544 = vlaneseq
  %v3545 = vshrl.u32 %v3544, 7
  %v3546 = vsub.s32 0, %v3545
  %v3547 = vrot.slane %v3542, %v3546
  %v3557 = vunpack.c.l.b16 %v3532
  %v3558 = vunpack.c.l.b16 %v3533
  %v3559 = vunpack.c.l.b16 %v3534
  %v3560 = vunpack.c.l.b16 %v3535
  %v3561 = vunpack.c.l.b16 %v3536
  %v3562 = vunpack.c.l.b16 %v3537
  %v3563 = vunpack.c.l.b16 %v3538
  %v3564 = vunpack.c.l.b16 %v3539
  %v3565 = vpack.c.b16 %v3558, %v3557
  %v3566 = vpack.c.b16 %v3560, %v3559
  %v3567 = vpack.c.b16 %v3562, %v3561
  %v3568 = vpack.c.b16 %v3564, %v3563
  %v3574 = vsel %vm1800, %v3540, 0
  %3576 = vmatprep.subr.bf16.mxu0 0
  %3577 = vmatpush1.bf16.msra.mxu0 0
  %3578 = vmatprep.subr.bf16.mxu0 0
  %3579 = vmatpush1.bf16.msra.mxu0 0
  %3580 = vmatprep.subr.bf16.mxu0 0
  %3581 = vmatpush1.bf16.msra.mxu0 0
  %3582 = vmatprep.subr.bf16.mxu0 0
  %3583 = vmatpush1.bf16.msra.mxu0 0
  %3584 = vmatprep.subr.bf16.mxu0 0
  %3585 = vmatpush1.bf16.msra.mxu0 %v3568
  %3586 = vmatprep.subr.bf16.mxu0 0
  %3587 = vmatpush1.bf16.msra.mxu0 %v3567
  %3588 = vmatprep.subr.bf16.mxu0 0
  %3589 = vmatpush1.bf16.msra.mxu0 %v3566
  %3590 = vmatprep.subr.bf16.mxu0 0
  %3591 = vmatpush1.bf16.msra.mxu0 %v3565
  %3592 = vmatprep.subr.bf16.mxu0 0
  %3593 = vmatpush2.bf16.msra.mxu0 0
  %3594 = vmatprep.subr.bf16.mxu0 0
  %3595 = vmatpush2.bf16.msra.mxu0 0
  %3596 = vmatprep.subr.bf16.mxu0 0
  %3597 = vmatpush2.bf16.msra.mxu0 0
  %3598 = vmatprep.subr.bf16.mxu0 0
  %3599 = vmatpush2.bf16.msra.mxu0 0
  %3600 = vmatprep.subr.bf16.mxu0 0
  %3601 = vmatpush2.bf16.msra.mxu0 0
  %3602 = vmatprep.subr.bf16.mxu0 0
  %3603 = vmatpush2.bf16.msra.mxu0 0
  %3604 = vmatprep.subr.bf16.mxu0 0
  %3605 = vmatpush2.bf16.msra.mxu0 0
  %3606 = vmatprep.subr.bf16.mxu0 0
  %3607 = vmatpush2.bf16.msra.mxu0 0
  %3608 = vmatprep.mubr.bf16.mxu0 0
  %3609 = vmatmul.mubr.bf16.gmra.mxu0 %v3574
  %v3610 = vpop.f32.mrf.mxu0
  %v3611 = vadd.f32 %v3547, %v3610
  %v3612 = vpop.f32.mrf.mxu0
  %v3613 = vpop.f32.mrf.mxu0
  %v3614 = vadd.f32 %v3547, %v3613
  %v3615 = vpop.f32.mrf.mxu0
  %3616 = vdwg.mxu0
  %v3617 = vadd.f32 %v3611, %v3441
  %v3618 = vadd.f32 %v3614, %v3442
  %s3619 = scalar_lea.vmem %s14, 1
  %v3620 = vld [vmem:[%s3619] sm:$0x1]
  %s3621 = scalar_lea.vmem %s15, 1
  %v3622 = vld [vmem:[%s3621] sm:$0x1]
  %v3623 = vsel %vm73, %v3617, 0.0
  %3624 = vadd.xlane.f32.xlu0 %v3623
  %v3625 = vpop.xlane.xlu0 %3624
  %v3626 = vsel %vm73, %v3618, 0.0
  %3627 = vadd.xlane.f32.xlu0 %v3626
  %v3628 = vpop.xlane.xlu0 %3627
  %v3629 = vmul.f32 %v3625, %v80
  %v3630 = vmul.f32 %v3628, %v80
  %v3631 = vsub.f32 %v3617, %v3629
  %v3632 = vsub.f32 %v3618, %v3630
  %v3633 = vmul.f32 %v3631, %v3631
  %v3634 = vmul.f32 %v3632, %v3632
  %v3635 = vsel %vm73, %v3633, 0.0
  %3636 = vadd.xlane.f32.xlu0 %v3635
  %v3637 = vpop.xlane.xlu0 %3636
  %v3638 = vsel %vm73, %v3634, 0.0
  %3639 = vadd.xlane.f32.xlu0 %v3638
  %v3640 = vpop.xlane.xlu0 %3639
  %v3641 = vmul.f32 %v3637, %v80
  %v3642 = vmul.f32 %v3640, %v80
  %v3643 = vadd.f32 %v3641, 1e-12
  %v3644 = vadd.f32 %v3642, 1e-12
  %v3645 = vrsqrt.pop %v3643
  %v3646 = vrsqrt.pop %v3644
  %v3647 = vmul.f32 %v3631, %v3645
  %v3648 = vmul.f32 %v3632, %v3646
  %v3650 = vlaneseq
  %v3651 = vshrl.u32 %v3650, 7
  %v3652 = vsub.s32 0, %v3651
  %v3653 = vrot.slane %v3620, %v3652
  %v3655 = vmul.f32 %v3647, %v3653
  %v3656 = vmul.f32 %v3648, %v3653
  %v3658 = vlaneseq
  %v3659 = vshrl.u32 %v3658, 7
  %v3660 = vsub.s32 0, %v3659
  %v3661 = vrot.slane %v3622, %v3660
  %v3663 = vadd.f32 %v3655, %v3661
  %v3664 = vadd.f32 %v3656, %v3661
  %v3666 = vrot.slane %v3664, 7
  %vm3668 = vcmask 1040384
  %v3669 = vsel %vm3668, %v3663, %v3666
  %v3670 = vld [vmem:[%s16] sm:$0xf]
  %v3671 = vld [vmem:[%s16 + $0x4] sm:$0xf]
  %v3672 = vld [vmem:[%s16 + $0x8] sm:$0xf]
  %v3673 = vld [vmem:[%s16 + $0xc] sm:$0xf]
  %v3674 = vpack.c.bf16 %v3669, %v3669
  %v3675 = vld [vmem:[%s17] sm:$0x1]
  %v3677 = vlaneseq
  %v3678 = vshrl.u32 %v3677, 7
  %v3679 = vsub.s32 0, %v3678
  %v3680 = vrot.slane %v3675, %v3679
  %v3686 = vunpack.c.l.b16 %v3670
  %v3687 = vunpack.c.l.b16 %v3671
  %v3688 = vunpack.c.l.b16 %v3672
  %v3689 = vunpack.c.l.b16 %v3673
  %v3690 = vpack.c.b16 %v3687, %v3686
  %v3691 = vpack.c.b16 %v3689, %v3688
  %v3695 = vsel %vm73, %v3674, 0
  %3697 = vmatprep.subr.bf16.mxu0 0
  %3698 = vmatpush1.bf16.msra.mxu0 0
  %3699 = vmatprep.subr.bf16.mxu0 0
  %3700 = vmatpush1.bf16.msra.mxu0 0
  %3701 = vmatprep.subr.bf16.mxu0 0
  %3702 = vmatpush1.bf16.msra.mxu0 0
  %3703 = vmatprep.subr.bf16.mxu0 0
  %3704 = vmatpush1.bf16.msra.mxu0 0
  %3705 = vmatprep.subr.bf16.mxu0 0
  %3706 = vmatpush1.bf16.msra.mxu0 0
  %3707 = vmatprep.subr.bf16.mxu0 0
  %3708 = vmatpush1.bf16.msra.mxu0 0
  %3709 = vmatprep.subr.bf16.mxu0 0
  %3710 = vmatpush1.bf16.msra.mxu0 %v3691
  %3711 = vmatprep.subr.bf16.mxu0 0
  %3712 = vmatpush1.bf16.msra.mxu0 %v3690
  %3713 = vmatprep.subr.bf16.mxu0 0
  %3714 = vmatpush2.bf16.msra.mxu0 0
  %3715 = vmatprep.subr.bf16.mxu0 0
  %3716 = vmatpush2.bf16.msra.mxu0 0
  %3717 = vmatprep.subr.bf16.mxu0 0
  %3718 = vmatpush2.bf16.msra.mxu0 0
  %3719 = vmatprep.subr.bf16.mxu0 0
  %3720 = vmatpush2.bf16.msra.mxu0 0
  %3721 = vmatprep.subr.bf16.mxu0 0
  %3722 = vmatpush2.bf16.msra.mxu0 0
  %3723 = vmatprep.subr.bf16.mxu0 0
  %3724 = vmatpush2.bf16.msra.mxu0 0
  %3725 = vmatprep.subr.bf16.mxu0 0
  %3726 = vmatpush2.bf16.msra.mxu0 0
  %3727 = vmatprep.subr.bf16.mxu0 0
  %3728 = vmatpush2.bf16.msra.mxu0 0
  %3729 = vmatprep.mubr.bf16.mxu0 0
  %3730 = vmatmul.mubr.bf16.gmra.mxu0 %v3695
  %v3731 = vpop.f32.mrf.mxu0
  %v3732 = vadd.f32 %v3680, %v3731
  %v3733 = vpop.f32.mrf.mxu0
  %v3734 = vpop.f32.mrf.mxu0
  %v3735 = vpop.f32.mrf.mxu0
  %3736 = vdwg.mxu0
  %v3737 = vtanh.pop %v3732
  %v3738 = vld [vmem:[%s18] sm:$0x1]
  %v3740 = vlaneseq
  %v3741 = vshrl.u32 %v3740, 7
  %v3742 = vsub.s32 0, %v3741
  %v3743 = vrot.slane %v3738, %v3742
  %v3745 = vmul.f32 %v3737, %v3743
  %vm3746 = vcmask 254976
  %v3747 = vsel %vm3746, %v3745, 0.0
  %3748 = vadd.xlane.f32.xlu0 %v3747
  %v3749 = vpop.xlane.xlu0 %3748
  %v3750 = vld [vmem:[#allocation2] sm:$0x1]
  %v3752 = vlaneseq
  %v3753 = vshrl.u32 %v3752, 7
  %v3754 = vsub.s32 0, %v3753
  %v3755 = vrot.slane %v3750, %v3754
  %v3757 = vadd.f32 %v3749, %v3755
  %v3758 = vsub.f32 0.0, %v3757
  %v3759 = vmul.f32 %v3758, 1.442695
  %v3760 = vpow.pop %v3759
  %v3761 = vadd.f32 %v3760, 1.0
  %v3762 = vrcp.pop %v3761
  %v3763 = vmul.f32 1.0, %v3762
  %vm3764 = vcmask 1024
  %3765 = vst.msk [vmem:[%s20] sm:$0x3] %vm3764, %v3763
  // Predicated region
  $region82: #{bert_classifier_forward.1} parent=0 // pred_check
    _
  $region83: #{bert_classifier_forward.1} parent=0 // pred_check_branch
    %3767 = sbr.rel (0) target = $region85
  $region84: #{bert_classifier_forward.1} parent=0 // pred_region
    _
  $region85: #{bert_classifier_forward.1} parent=0 // pred_fallthru
    _
  // Predicated region
  $region86: #{bert_classifier_forward.1} parent=0 // pred_check
    _
  $region87: #{bert_classifier_forward.1} parent=0 // pred_check_branch
    %3769 = sbr.rel (0) target = $region89
  $region88: #{bert_classifier_forward.1} parent=0 // pred_region
    _
  $region89: #{bert_classifier_forward.1} parent=0 // pred_fallthru
    _

</llo_original>
